<compile_context>
chip_gen: v5e
topology: v5e:2x2
jax: 0.10.0
libtpu: 0.0.40
codegen_flags: <defaults>
</compile_context>

<pallas_src>
import jax
import jax.numpy as jnp
from jax.experimental import pallas as pl
from jax.experimental.pallas import tpu as pltpu

DEPTH_TILE = 32  # output depth planes per grid step (whole D when D <= this)


# ---------------------------------------------------------------------------
# Fused AttentionBlock kernel
# ---------------------------------------------------------------------------
def _attention_block_kernel(
    # --- scalar prefetch (SMEM) ---
    d_i0_ref, d_i1_ref, d_w1_ref, bp_ref,
    # --- VMEM inputs ---
    x_ref,        # (Cx, td*HW)      depth tile of x, channels-first, lanes=voxels
    g_ref,        # (Dg, Cg, Hg*Wg)  whole coarse gating volume for this batch
    wxT_ref,      # (Ci, Cx)         folded Wx conv+BN weight
    wgT_ref,      # (Ci, Cg)         folded Wg conv+BN weight
    bxg_ref,      # (Ci, 1)          bx + bg  (merged bias; exact, see note)
    rhwT_ref,     # (Hg*Wg, H*W)     kron(R_h, R_w)^T  H/W upsample operator
    wp_ref,       # (Ci, 1)          folded psi conv+BN weight
    # --- output ---
    o_ref,        # (Cx, td*HW)
    # --- VMEM scratch ---
    g1c_ref,      # (Dg, Ci, H*W)    per-batch coarse-depth g1 planes (persists)
    g1b_ref,      # (Ci, td*HW)      depth-blended g1 for this tile
):
    t = pl.program_id(1)
    n_dg = g_ref.shape[0]
    hw = g1c_ref.shape[2]
    td = x_ref.shape[1] // hw

    # -- once per batch: Wg + merged bias + H/W upsample on the Dg *coarse*
    #    planes.  Hoisting this out of the per-output-plane loop is exact by
    #    linearity of the trilinear resize; folding bx into the bias here is
    #    exact because every resize row and the depth 2-tap blend sum to 1.
    @pl.when(t == 0)
    def _():
        wgT = wgT_ref[...]
        bxg = bxg_ref[...]
        rhwT = rhwT_ref[...]
        for dp in range(n_dg):           # small; each iteration dies at its store
            a = jnp.dot(wgT, g_ref[dp], preferred_element_type=jnp.float32) + bxg
            g1c_ref[dp] = jnp.dot(a, rhwT, preferred_element_type=jnp.float32)

    # -- per fine depth plane: 2-tap depth blend (pure VPU) into one dense
    #    (Ci, td*HW) block.  Each iteration ends in a ref store (lane offsets
    #    are multiples of HW), so no large values stay live across iterations.
    for j in range(td):
        d = t * td + j
        i0 = d_i0_ref[d]
        i1 = d_i1_ref[d]
        w1 = d_w1_ref[d]
        g1b_ref[:, j * hw:(j + 1) * hw] = (1.0 - w1) * g1c_ref[i0] + w1 * g1c_ref[i1]

    # -- batched skip path, psi gate and store: ONE matmul, ONE dense store
    #    per grid step.
    x_blk = x_ref[...]                                                    # (Cx, td*HW)
    x1 = jnp.dot(wxT_ref[...], x_blk, preferred_element_type=jnp.float32)  # (Ci, td*HW)
    h = jnp.maximum(x1 + g1b_ref[...], 0.0)
    logit = jnp.sum(h * wp_ref[...], axis=0, keepdims=True) + bp_ref[0]    # (1, td*HW)
    p = jax.nn.sigmoid(logit)
    o_ref[...] = (p * x_blk).astype(o_ref.dtype)


# ---------------------------------------------------------------------------
# Host-side helpers: trilinear-interp operators (align_corners=False)
# ---------------------------------------------------------------------------
def _resize_matrix(out_size, in_size):
    """Dense 1-D linear-interp matrix matching F.interpolate(align_corners=False)."""
    scale = in_size / out_size
    o = jnp.arange(out_size, dtype=jnp.float32)
    src = jnp.maximum((o + 0.5) * scale - 0.5, 0.0)
    i0 = jnp.minimum(jnp.floor(src).astype(jnp.int32), in_size - 1)
    i1 = jnp.minimum(i0 + 1, in_size - 1)
    w1 = jnp.clip(src - i0.astype(jnp.float32), 0.0, 1.0)
    w0 = 1.0 - w1
    r = jnp.zeros((out_size, in_size), jnp.float32)
    r = r.at[jnp.arange(out_size), i0].add(w0)
    r = r.at[jnp.arange(out_size), i1].add(w1)
    return r


def _depth_tables(d_out, d_in, d_pad):
    """Per-output-depth 2-tap indices/weights, padded (clamped) to d_pad."""
    scale = d_in / d_out
    dd = jnp.minimum(jnp.arange(d_pad), d_out - 1).astype(jnp.float32)
    src = jnp.maximum((dd + 0.5) * scale - 0.5, 0.0)
    i0 = jnp.minimum(jnp.floor(src).astype(jnp.int32), d_in - 1)
    i1 = jnp.minimum(i0 + 1, d_in - 1)
    w1 = jnp.clip(src - i0.astype(jnp.float32), 0.0, 1.0)
    return i0, i1, w1


# ---------------------------------------------------------------------------
# Parameter setup: fold 1x1x1 conv + eval-mode BatchNorm into (W', b')
# ---------------------------------------------------------------------------
def fold_conv_bn(conv_w, conv_b, gamma, beta, mean, var, eps=1e-5):
    scale = gamma / jnp.sqrt(var + eps)
    w = conv_w * scale[None, :]
    b = (conv_b - mean) * scale + beta
    return w.astype(jnp.float32), b.astype(jnp.float32)


def init_conv_bn(key, cin, cout):
    k = jax.random.split(key, 6)
    conv_w = 0.1 * jax.random.normal(k[0], (cin, cout), jnp.float32)
    conv_b = 0.1 * jax.random.normal(k[1], (cout,), jnp.float32)
    gamma = 1.0 + 0.1 * jax.random.normal(k[2], (cout,), jnp.float32)
    beta = 0.1 * jax.random.normal(k[3], (cout,), jnp.float32)
    mean = 0.1 * jax.random.normal(k[4], (cout,), jnp.float32)
    var = 0.5 + jnp.abs(jax.random.normal(k[5], (cout,), jnp.float32))
    return fold_conv_bn(conv_w, conv_b, gamma, beta, mean, var)


# ---------------------------------------------------------------------------
# Full AttentionBlock forward (PyTorch NCDHW interface)
# ---------------------------------------------------------------------------
def attention_block(x, g, params, *, depth_tile=DEPTH_TILE):
    B, Cx, D, H, W = x.shape
    Bg, Cg, Dg, Hg, Wg = g.shape
    HW = H * W
    HgWg = Hg * Wg

    wxT = params["wx"].T                                  # (Ci, Cx)
    wgT = params["wg"].T                                  # (Ci, Cg)
    Ci = wxT.shape[0]
    bxg = (params["bx"] + params["bg"]).reshape(Ci, 1)    # merged bias (exact)
    wp2 = params["wp"].reshape(Ci, 1)
    bp1 = params["bp"].reshape(1).astype(jnp.float32)     # scalar-prefetched (SMEM)

    td = min(depth_tile, D)
    nd = pl.cdiv(D, td)
    d_pad = nd * td

    # channels-first, voxel-lane-dense views (x/out reshape is free; g is coarse)
    x3 = x.reshape(B, Cx, D * HW)
    g4 = jnp.transpose(g, (0, 2, 1, 3, 4)).reshape(Bg, Dg, Cg, HgWg)

    # trilinear-interp operators (align_corners=False)
    rhwT = jnp.kron(_resize_matrix(H, Hg), _resize_matrix(W, Wg)).T   # (HgWg, HW)
    d_i0, d_i1, d_w1 = _depth_tables(D, Dg, d_pad)

    grid_spec = pltpu.PrefetchScalarGridSpec(
        num_scalar_prefetch=4,
        grid=(B, nd),
        in_specs=[
            pl.BlockSpec((None, Cx, td * HW), lambda b, t, *_: (b, 0, t)),      # x
            pl.BlockSpec((None, Dg, Cg, HgWg), lambda b, t, *_: (b, 0, 0, 0)),  # g (per-batch resident)
            pl.BlockSpec((Ci, Cx), lambda b, t, *_: (0, 0)),                    # wxT
            pl.BlockSpec((Ci, Cg), lambda b, t, *_: (0, 0)),                    # wgT
            pl.BlockSpec((Ci, 1), lambda b, t, *_: (0, 0)),                     # bx+bg
            pl.BlockSpec((HgWg, HW), lambda b, t, *_: (0, 0)),                  # kron(Rh,Rw)^T
            pl.BlockSpec((Ci, 1), lambda b, t, *_: (0, 0)),                     # wp
        ],
        out_specs=pl.BlockSpec((None, Cx, td * HW), lambda b, t, *_: (b, 0, t)),
        scratch_shapes=[
            pltpu.VMEM((Dg, Ci, HW), jnp.float32),       # coarse-depth g1 planes
            pltpu.VMEM((Ci, td * HW), jnp.float32),      # depth-blended g1 tile
        ],
    )

    # explicit scoped-VMEM budget: double-buffered blocks + persistent scratch
    blk_bytes = 4 * (
        2 * (Cx * td * HW)               # x + out tiles
        + Dg * Cg * HgWg                 # resident coarse g
        + Ci * Cx + Ci * Cg + 2 * Ci     # weights / merged bias / psi weight
        + HgWg * HW                      # upsample operator
    )
    scratch_bytes = 4 * (Dg * Ci * HW + Ci * td * HW)
    vmem_limit = int(min(100 * 2**20,
                         max(32 * 2**20, 2 * blk_bytes + scratch_bytes + (8 << 20))))

    out3 = pl.pallas_call(
        _attention_block_kernel,
        out_shape=jax.ShapeDtypeStruct((B, Cx, D * HW), jnp.float32),
        grid_spec=grid_spec,
        compiler_params=pltpu.CompilerParams(
            dimension_semantics=("parallel", "arbitrary"),
            vmem_limit_bytes=vmem_limit,
        ),
    )(d_i0, d_i1, d_w1, bp1, x3, g4, wxT, wgT, bxg, rhwT, wp2)

    return out3.reshape(B, Cx, D, H, W)                  # NCDHW, free reshape


# ---------------------------------------------------------------------------
# Pure-JAX reference (same folded params / same resize definition)
# ---------------------------------------------------------------------------
def attention_block_reference(x, g, params):
    B, Cx, D, H, W = x.shape
    _, Cg, Dg, Hg, Wg = g.shape
    bx = params["bx"][None, :, None, None, None]
    bg = params["bg"][None, :, None, None, None]
    bp = params["bp"][None, :, None, None, None]
    x1 = jnp.einsum("ci,bcdhw->bidhw", params["wx"], x) + bx
    g1 = jnp.einsum("ci,bcdhw->bidhw", params["wg"], g) + bg
    g1 = jnp.einsum("Dd,bidhw->biDhw", _resize_matrix(D, Dg), g1)
    g1 = jnp.einsum("Hh,bidhw->bidHw", _resize_matrix(H, Hg), g1)
    g1 = jnp.einsum("Ww,bidhw->bidhW", _resize_matrix(W, Wg), g1)
    h = jnp.maximum(x1 + g1, 0.0)
    logit = jnp.einsum("io,bidhw->bodhw", params["wp"], h) + bp
    return jax.nn.sigmoid(logit) * x


if __name__ == "__main__":
    key = jax.random.PRNGKey(0)
    k_x, k_g, k_px, k_pg, k_pp = jax.random.split(key, 5)

    B, Cx, Cg, Ci = 2, 4, 6, 8
    D = H = W = 16           # skip-connection (x) spatial size
    Dg = Hg = Wg = 8         # gating signal (g) spatial size (2x coarser)

    x = jax.random.normal(k_x, (B, Cx, D, H, W), jnp.float32)
    g = jax.random.normal(k_g, (B, Cg, Dg, Hg, Wg), jnp.float32)

    wx, bx = init_conv_bn(k_px, Cx, Ci)
    wg, bg = init_conv_bn(k_pg, Cg, Ci)
    wp, bp = init_conv_bn(k_pp, Ci, 1)
    params = dict(wx=wx, bx=bx, wg=wg, bg=bg, wp=wp, bp=bp)

    out = attention_block(x, g, params)
    jax.block_until_ready(out)
    assert out.shape == x.shape and out.dtype == jnp.float32
    assert bool(jnp.all(jnp.isfinite(out)))

    ref = attention_block_reference(x, g, params)
    err = float(jnp.max(jnp.abs(out - ref)))
    assert err < 5e-2, f"max abs error vs reference: {err}"
    print("KERNEL_OK")
</pallas_src>

<mosaic_0001>
module attributes {stable_mosaic.version = 11 : i64} {
  func.func @_attention_block_kernel(%arg0: i32, %arg1: i32, %arg2: memref<16xi32, #tpu.memory_space<smem>>, %arg3: memref<16xi32, #tpu.memory_space<smem>>, %arg4: memref<16xf32, #tpu.memory_space<smem>>, %arg5: memref<1xf32, #tpu.memory_space<smem>>, %arg6: memref<1x4x4096xf32, #tpu.memory_space<vmem>>, %arg7: memref<1x8x6x64xf32, #tpu.memory_space<vmem>>, %arg8: memref<8x4xf32, #tpu.memory_space<vmem>>, %arg9: memref<8x6xf32, #tpu.memory_space<vmem>>, %arg10: memref<8x1xf32, #tpu.memory_space<vmem>>, %arg11: memref<64x256xf32, #tpu.memory_space<vmem>>, %arg12: memref<8x1xf32, #tpu.memory_space<vmem>>, %arg13: memref<1x4x4096xf32, #tpu.memory_space<vmem>>, %arg14: memref<8x8x256xf32, #tpu.memory_space<vmem>>, %arg15: memref<8x4096xf32, #tpu.memory_space<vmem>>) attributes {dimension_semantics = [#tpu.dimension_semantics<parallel>, #tpu.dimension_semantics<arbitrary>], iteration_bounds = array<i64: 2, 1>, scalar_prefetch = 4 : i64, scratch_operands = 2 : i64, tpu.core_type = #tpu.core_type<tc>, window_params = [{transform_indices = @transform_0, window_bounds = array<i64: 1, 4, 4096>}, {transform_indices = @transform_1, window_bounds = array<i64: 1, 8, 6, 64>}, {pipeline_mode = #tpu.pipeline_mode<synchronous>, transform_indices = @transform_2, window_bounds = array<i64: 8, 4>}, {pipeline_mode = #tpu.pipeline_mode<synchronous>, transform_indices = @transform_3, window_bounds = array<i64: 8, 6>}, {pipeline_mode = #tpu.pipeline_mode<synchronous>, transform_indices = @transform_4, window_bounds = array<i64: 8, 1>}, {pipeline_mode = #tpu.pipeline_mode<synchronous>, transform_indices = @transform_5, window_bounds = array<i64: 64, 256>}, {pipeline_mode = #tpu.pipeline_mode<synchronous>, transform_indices = @transform_6, window_bounds = array<i64: 8, 1>}, {transform_indices = @transform_7, window_bounds = array<i64: 1, 4, 4096>}]} {
    %c0_i32 = arith.constant 0 : i32
    %0 = arith.cmpi eq, %arg1, %c0_i32 : i32
    %1 = arith.extui %0 : i1 to i32
    %c0_i32_0 = arith.constant 0 : i32
    %2 = arith.cmpi ne, %1, %c0_i32_0 : i32
    scf.if %2 {
      %c0_129 = arith.constant 0 : index
      %c0_130 = arith.constant 0 : index
      %365 = vector.load %arg9[%c0_129, %c0_130] : memref<8x6xf32, #tpu.memory_space<vmem>>, vector<8x6xf32>
      %c0_131 = arith.constant 0 : index
      %c0_132 = arith.constant 0 : index
      %366 = vector.load %arg10[%c0_131, %c0_132] : memref<8x1xf32, #tpu.memory_space<vmem>>, vector<8x1xf32>
      %c0_133 = arith.constant 0 : index
      %c0_134 = arith.constant 0 : index
      %367 = vector.load %arg11[%c0_133, %c0_134] : memref<64x256xf32, #tpu.memory_space<vmem>>, vector<64x256xf32>
      %c0_135 = arith.constant 0 : index
      %c0_136 = arith.constant 0 : index
      %c0_137 = arith.constant 0 : index
      %c0_138 = arith.constant 0 : index
      %368 = vector.load %arg7[%c0_135, %c0_136, %c0_137, %c0_138] : memref<1x8x6x64xf32, #tpu.memory_space<vmem>>, vector<1x1x6x64xf32>
      %369 = vector.shape_cast %368 : vector<1x1x6x64xf32> to vector<6x64xf32>
      %cst_139 = arith.constant dense<0.000000e+00> : vector<8x64xf32>
      %370 = tpu.matmul %365, %369, %cst_139 {dimension_numbers = #tpu.dot_dimension_numbers<[1], [0], [0], [1], [0, 0, 1, 1], [], []>} : vector<8x6xf32>, vector<6x64xf32>, vector<8x64xf32> -> vector<8x64xf32>
      %371 = vector.broadcast %366 : vector<8x1xf32> to vector<8x64xf32>
      %372 = arith.addf %370, %371 : vector<8x64xf32>
      %cst_140 = arith.constant dense<0.000000e+00> : vector<8x256xf32>
      %373 = tpu.matmul %372, %367, %cst_140 {dimension_numbers = #tpu.dot_dimension_numbers<[1], [0], [0], [1], [0, 0, 1, 1], [], []>} : vector<8x64xf32>, vector<64x256xf32>, vector<8x256xf32> -> vector<8x256xf32>
      %c0_141 = arith.constant 0 : index
      %c0_142 = arith.constant 0 : index
      %c0_143 = arith.constant 0 : index
      %374 = vector.load %arg14[%c0_141, %c0_142, %c0_143] : memref<8x8x256xf32, #tpu.memory_space<vmem>>, vector<1x8x256xf32>
      %375 = vector.shape_cast %374 : vector<1x8x256xf32> to vector<8x256xf32>
      %376 = vector.shape_cast %373 : vector<8x256xf32> to vector<1x8x256xf32>
      tpu.vector_store %arg14[%c0_141, %c0_142, %c0_143], %376 {strides = array<i32>} : memref<8x8x256xf32, #tpu.memory_space<vmem>>, vector<1x8x256xf32>,
      %c0_144 = arith.constant 0 : index
      %c1 = arith.constant 1 : index
      %c0_145 = arith.constant 0 : index
      %c0_146 = arith.constant 0 : index
      %377 = vector.load %arg7[%c0_144, %c1, %c0_145, %c0_146] : memref<1x8x6x64xf32, #tpu.memory_space<vmem>>, vector<1x1x6x64xf32>
      %378 = vector.shape_cast %377 : vector<1x1x6x64xf32> to vector<6x64xf32>
      %cst_147 = arith.constant dense<0.000000e+00> : vector<8x64xf32>
      %379 = tpu.matmul %365, %378, %cst_147 {dimension_numbers = #tpu.dot_dimension_numbers<[1], [0], [0], [1], [0, 0, 1, 1], [], []>} : vector<8x6xf32>, vector<6x64xf32>, vector<8x64xf32> -> vector<8x64xf32>
      %380 = vector.broadcast %366 : vector<8x1xf32> to vector<8x64xf32>
      %381 = arith.addf %379, %380 : vector<8x64xf32>
      %cst_148 = arith.constant dense<0.000000e+00> : vector<8x256xf32>
      %382 = tpu.matmul %381, %367, %cst_148 {dimension_numbers = #tpu.dot_dimension_numbers<[1], [0], [0], [1], [0, 0, 1, 1], [], []>} : vector<8x64xf32>, vector<64x256xf32>, vector<8x256xf32> -> vector<8x256xf32>
      %c1_149 = arith.constant 1 : index
      %c0_150 = arith.constant 0 : index
      %c0_151 = arith.constant 0 : index
      %383 = vector.load %arg14[%c1_149, %c0_150, %c0_151] : memref<8x8x256xf32, #tpu.memory_space<vmem>>, vector<1x8x256xf32>
      %384 = vector.shape_cast %383 : vector<1x8x256xf32> to vector<8x256xf32>
      %385 = vector.shape_cast %382 : vector<8x256xf32> to vector<1x8x256xf32>
      tpu.vector_store %arg14[%c1_149, %c0_150, %c0_151], %385 {strides = array<i32>} : memref<8x8x256xf32, #tpu.memory_space<vmem>>, vector<1x8x256xf32>,
      %c0_152 = arith.constant 0 : index
      %c2 = arith.constant 2 : index
      %c0_153 = arith.constant 0 : index
      %c0_154 = arith.constant 0 : index
      %386 = vector.load %arg7[%c0_152, %c2, %c0_153, %c0_154] : memref<1x8x6x64xf32, #tpu.memory_space<vmem>>, vector<1x1x6x64xf32>
      %387 = vector.shape_cast %386 : vector<1x1x6x64xf32> to vector<6x64xf32>
      %cst_155 = arith.constant dense<0.000000e+00> : vector<8x64xf32>
      %388 = tpu.matmul %365, %387, %cst_155 {dimension_numbers = #tpu.dot_dimension_numbers<[1], [0], [0], [1], [0, 0, 1, 1], [], []>} : vector<8x6xf32>, vector<6x64xf32>, vector<8x64xf32> -> vector<8x64xf32>
      %389 = vector.broadcast %366 : vector<8x1xf32> to vector<8x64xf32>
      %390 = arith.addf %388, %389 : vector<8x64xf32>
      %cst_156 = arith.constant dense<0.000000e+00> : vector<8x256xf32>
      %391 = tpu.matmul %390, %367, %cst_156 {dimension_numbers = #tpu.dot_dimension_numbers<[1], [0], [0], [1], [0, 0, 1, 1], [], []>} : vector<8x64xf32>, vector<64x256xf32>, vector<8x256xf32> -> vector<8x256xf32>
      %c2_157 = arith.constant 2 : index
      %c0_158 = arith.constant 0 : index
      %c0_159 = arith.constant 0 : index
      %392 = vector.load %arg14[%c2_157, %c0_158, %c0_159] : memref<8x8x256xf32, #tpu.memory_space<vmem>>, vector<1x8x256xf32>
      %393 = vector.shape_cast %392 : vector<1x8x256xf32> to vector<8x256xf32>
      %394 = vector.shape_cast %391 : vector<8x256xf32> to vector<1x8x256xf32>
      tpu.vector_store %arg14[%c2_157, %c0_158, %c0_159], %394 {strides = array<i32>} : memref<8x8x256xf32, #tpu.memory_space<vmem>>, vector<1x8x256xf32>,
      %c0_160 = arith.constant 0 : index
      %c3 = arith.constant 3 : index
      %c0_161 = arith.constant 0 : index
      %c0_162 = arith.constant 0 : index
      %395 = vector.load %arg7[%c0_160, %c3, %c0_161, %c0_162] : memref<1x8x6x64xf32, #tpu.memory_space<vmem>>, vector<1x1x6x64xf32>
      %396 = vector.shape_cast %395 : vector<1x1x6x64xf32> to vector<6x64xf32>
      %cst_163 = arith.constant dense<0.000000e+00> : vector<8x64xf32>
      %397 = tpu.matmul %365, %396, %cst_163 {dimension_numbers = #tpu.dot_dimension_numbers<[1], [0], [0], [1], [0, 0, 1, 1], [], []>} : vector<8x6xf32>, vector<6x64xf32>, vector<8x64xf32> -> vector<8x64xf32>
      %398 = vector.broadcast %366 : vector<8x1xf32> to vector<8x64xf32>
      %399 = arith.addf %397, %398 : vector<8x64xf32>
      %cst_164 = arith.constant dense<0.000000e+00> : vector<8x256xf32>
      %400 = tpu.matmul %399, %367, %cst_164 {dimension_numbers = #tpu.dot_dimension_numbers<[1], [0], [0], [1], [0, 0, 1, 1], [], []>} : vector<8x64xf32>, vector<64x256xf32>, vector<8x256xf32> -> vector<8x256xf32>
      %c3_165 = arith.constant 3 : index
      %c0_166 = arith.constant 0 : index
      %c0_167 = arith.constant 0 : index
      %401 = vector.load %arg14[%c3_165, %c0_166, %c0_167] : memref<8x8x256xf32, #tpu.memory_space<vmem>>, vector<1x8x256xf32>
      %402 = vector.shape_cast %401 : vector<1x8x256xf32> to vector<8x256xf32>
      %403 = vector.shape_cast %400 : vector<8x256xf32> to vector<1x8x256xf32>
      tpu.vector_store %arg14[%c3_165, %c0_166, %c0_167], %403 {strides = array<i32>} : memref<8x8x256xf32, #tpu.memory_space<vmem>>, vector<1x8x256xf32>,
      %c0_168 = arith.constant 0 : index
      %c4 = arith.constant 4 : index
      %c0_169 = arith.constant 0 : index
      %c0_170 = arith.constant 0 : index
      %404 = vector.load %arg7[%c0_168, %c4, %c0_169, %c0_170] : memref<1x8x6x64xf32, #tpu.memory_space<vmem>>, vector<1x1x6x64xf32>
      %405 = vector.shape_cast %404 : vector<1x1x6x64xf32> to vector<6x64xf32>
      %cst_171 = arith.constant dense<0.000000e+00> : vector<8x64xf32>
      %406 = tpu.matmul %365, %405, %cst_171 {dimension_numbers = #tpu.dot_dimension_numbers<[1], [0], [0], [1], [0, 0, 1, 1], [], []>} : vector<8x6xf32>, vector<6x64xf32>, vector<8x64xf32> -> vector<8x64xf32>
      %407 = vector.broadcast %366 : vector<8x1xf32> to vector<8x64xf32>
      %408 = arith.addf %406, %407 : vector<8x64xf32>
      %cst_172 = arith.constant dense<0.000000e+00> : vector<8x256xf32>
      %409 = tpu.matmul %408, %367, %cst_172 {dimension_numbers = #tpu.dot_dimension_numbers<[1], [0], [0], [1], [0, 0, 1, 1], [], []>} : vector<8x64xf32>, vector<64x256xf32>, vector<8x256xf32> -> vector<8x256xf32>
      %c4_173 = arith.constant 4 : index
      %c0_174 = arith.constant 0 : index
      %c0_175 = arith.constant 0 : index
      %410 = vector.load %arg14[%c4_173, %c0_174, %c0_175] : memref<8x8x256xf32, #tpu.memory_space<vmem>>, vector<1x8x256xf32>
      %411 = vector.shape_cast %410 : vector<1x8x256xf32> to vector<8x256xf32>
      %412 = vector.shape_cast %409 : vector<8x256xf32> to vector<1x8x256xf32>
      tpu.vector_store %arg14[%c4_173, %c0_174, %c0_175], %412 {strides = array<i32>} : memref<8x8x256xf32, #tpu.memory_space<vmem>>, vector<1x8x256xf32>,
      %c0_176 = arith.constant 0 : index
      %c5 = arith.constant 5 : index
      %c0_177 = arith.constant 0 : index
      %c0_178 = arith.constant 0 : index
      %413 = vector.load %arg7[%c0_176, %c5, %c0_177, %c0_178] : memref<1x8x6x64xf32, #tpu.memory_space<vmem>>, vector<1x1x6x64xf32>
      %414 = vector.shape_cast %413 : vector<1x1x6x64xf32> to vector<6x64xf32>
      %cst_179 = arith.constant dense<0.000000e+00> : vector<8x64xf32>
      %415 = tpu.matmul %365, %414, %cst_179 {dimension_numbers = #tpu.dot_dimension_numbers<[1], [0], [0], [1], [0, 0, 1, 1], [], []>} : vector<8x6xf32>, vector<6x64xf32>, vector<8x64xf32> -> vector<8x64xf32>
      %416 = vector.broadcast %366 : vector<8x1xf32> to vector<8x64xf32>
      %417 = arith.addf %415, %416 : vector<8x64xf32>
      %cst_180 = arith.constant dense<0.000000e+00> : vector<8x256xf32>
      %418 = tpu.matmul %417, %367, %cst_180 {dimension_numbers = #tpu.dot_dimension_numbers<[1], [0], [0], [1], [0, 0, 1, 1], [], []>} : vector<8x64xf32>, vector<64x256xf32>, vector<8x256xf32> -> vector<8x256xf32>
      %c5_181 = arith.constant 5 : index
      %c0_182 = arith.constant 0 : index
      %c0_183 = arith.constant 0 : index
      %419 = vector.load %arg14[%c5_181, %c0_182, %c0_183] : memref<8x8x256xf32, #tpu.memory_space<vmem>>, vector<1x8x256xf32>
      %420 = vector.shape_cast %419 : vector<1x8x256xf32> to vector<8x256xf32>
      %421 = vector.shape_cast %418 : vector<8x256xf32> to vector<1x8x256xf32>
      tpu.vector_store %arg14[%c5_181, %c0_182, %c0_183], %421 {strides = array<i32>} : memref<8x8x256xf32, #tpu.memory_space<vmem>>, vector<1x8x256xf32>,
      %c0_184 = arith.constant 0 : index
      %c6 = arith.constant 6 : index
      %c0_185 = arith.constant 0 : index
      %c0_186 = arith.constant 0 : index
      %422 = vector.load %arg7[%c0_184, %c6, %c0_185, %c0_186] : memref<1x8x6x64xf32, #tpu.memory_space<vmem>>, vector<1x1x6x64xf32>
      %423 = vector.shape_cast %422 : vector<1x1x6x64xf32> to vector<6x64xf32>
      %cst_187 = arith.constant dense<0.000000e+00> : vector<8x64xf32>
      %424 = tpu.matmul %365, %423, %cst_187 {dimension_numbers = #tpu.dot_dimension_numbers<[1], [0], [0], [1], [0, 0, 1, 1], [], []>} : vector<8x6xf32>, vector<6x64xf32>, vector<8x64xf32> -> vector<8x64xf32>
      %425 = vector.broadcast %366 : vector<8x1xf32> to vector<8x64xf32>
      %426 = arith.addf %424, %425 : vector<8x64xf32>
      %cst_188 = arith.constant dense<0.000000e+00> : vector<8x256xf32>
      %427 = tpu.matmul %426, %367, %cst_188 {dimension_numbers = #tpu.dot_dimension_numbers<[1], [0], [0], [1], [0, 0, 1, 1], [], []>} : vector<8x64xf32>, vector<64x256xf32>, vector<8x256xf32> -> vector<8x256xf32>
      %c6_189 = arith.constant 6 : index
      %c0_190 = arith.constant 0 : index
      %c0_191 = arith.constant 0 : index
      %428 = vector.load %arg14[%c6_189, %c0_190, %c0_191] : memref<8x8x256xf32, #tpu.memory_space<vmem>>, vector<1x8x256xf32>
      %429 = vector.shape_cast %428 : vector<1x8x256xf32> to vector<8x256xf32>
      %430 = vector.shape_cast %427 : vector<8x256xf32> to vector<1x8x256xf32>
      tpu.vector_store %arg14[%c6_189, %c0_190, %c0_191], %430 {strides = array<i32>} : memref<8x8x256xf32, #tpu.memory_space<vmem>>, vector<1x8x256xf32>,
      %c0_192 = arith.constant 0 : index
      %c7 = arith.constant 7 : index
      %c0_193 = arith.constant 0 : index
      %c0_194 = arith.constant 0 : index
      %431 = vector.load %arg7[%c0_192, %c7, %c0_193, %c0_194] : memref<1x8x6x64xf32, #tpu.memory_space<vmem>>, vector<1x1x6x64xf32>
      %432 = vector.shape_cast %431 : vector<1x1x6x64xf32> to vector<6x64xf32>
      %cst_195 = arith.constant dense<0.000000e+00> : vector<8x64xf32>
      %433 = tpu.matmul %365, %432, %cst_195 {dimension_numbers = #tpu.dot_dimension_numbers<[1], [0], [0], [1], [0, 0, 1, 1], [], []>} : vector<8x6xf32>, vector<6x64xf32>, vector<8x64xf32> -> vector<8x64xf32>
      %434 = vector.broadcast %366 : vector<8x1xf32> to vector<8x64xf32>
      %435 = arith.addf %433, %434 : vector<8x64xf32>
      %cst_196 = arith.constant dense<0.000000e+00> : vector<8x256xf32>
      %436 = tpu.matmul %435, %367, %cst_196 {dimension_numbers = #tpu.dot_dimension_numbers<[1], [0], [0], [1], [0, 0, 1, 1], [], []>} : vector<8x64xf32>, vector<64x256xf32>, vector<8x256xf32> -> vector<8x256xf32>
      %c7_197 = arith.constant 7 : index
      %c0_198 = arith.constant 0 : index
      %c0_199 = arith.constant 0 : index
      %437 = vector.load %arg14[%c7_197, %c0_198, %c0_199] : memref<8x8x256xf32, #tpu.memory_space<vmem>>, vector<1x8x256xf32>
      %438 = vector.shape_cast %437 : vector<1x8x256xf32> to vector<8x256xf32>
      %439 = vector.shape_cast %436 : vector<8x256xf32> to vector<1x8x256xf32>
      tpu.vector_store %arg14[%c7_197, %c0_198, %c0_199], %439 {strides = array<i32>} : memref<8x8x256xf32, #tpu.memory_space<vmem>>, vector<1x8x256xf32>,
    } else {
    }
    %c16_i32 = arith.constant 16 : i32
    %3 = arith.muli %arg1, %c16_i32 : i32
    %c0_i32_1 = arith.constant 0 : i32
    %4 = arith.addi %3, %c0_i32_1 : i32
    %5 = arith.index_cast %4 : i32 to index
    %6 = memref.load %arg2[%5] : memref<16xi32, #tpu.memory_space<smem>>
    %7 = arith.index_cast %4 : i32 to index
    %8 = memref.load %arg3[%7] : memref<16xi32, #tpu.memory_space<smem>>
    %9 = arith.index_cast %4 : i32 to index
    %10 = memref.load %arg4[%9] : memref<16xf32, #tpu.memory_space<smem>>
    %cst = arith.constant 1.000000e+00 : f32
    %11 = arith.subf %cst, %10 : f32
    %12 = arith.index_cast %6 : i32 to index
    %c0 = arith.constant 0 : index
    %c0_2 = arith.constant 0 : index
    %13 = vector.load %arg14[%12, %c0, %c0_2] : memref<8x8x256xf32, #tpu.memory_space<vmem>>, vector<1x8x256xf32>
    %14 = vector.shape_cast %13 : vector<1x8x256xf32> to vector<8x256xf32>
    %15 = vector.broadcast %11 : f32 to vector<8x256xf32>
    %16 = arith.mulf %15, %14 : vector<8x256xf32>
    %17 = arith.index_cast %8 : i32 to index
    %c0_3 = arith.constant 0 : index
    %c0_4 = arith.constant 0 : index
    %18 = vector.load %arg14[%17, %c0_3, %c0_4] : memref<8x8x256xf32, #tpu.memory_space<vmem>>, vector<1x8x256xf32>
    %19 = vector.shape_cast %18 : vector<1x8x256xf32> to vector<8x256xf32>
    %20 = vector.broadcast %10 : f32 to vector<8x256xf32>
    %21 = arith.mulf %20, %19 : vector<8x256xf32>
    %22 = arith.addf %16, %21 : vector<8x256xf32>
    %c0_5 = arith.constant 0 : index
    %c0_6 = arith.constant 0 : index
    %23 = vector.load %arg15[%c0_5, %c0_6] : memref<8x4096xf32, #tpu.memory_space<vmem>>, vector<8x256xf32>
    tpu.vector_store %arg15[%c0_5, %c0_6], %22 {strides = array<i32>} : memref<8x4096xf32, #tpu.memory_space<vmem>>, vector<8x256xf32>,
    %c16_i32_7 = arith.constant 16 : i32
    %24 = arith.muli %arg1, %c16_i32_7 : i32
    %c1_i32 = arith.constant 1 : i32
    %25 = arith.addi %24, %c1_i32 : i32
    %26 = arith.index_cast %25 : i32 to index
    %27 = memref.load %arg2[%26] : memref<16xi32, #tpu.memory_space<smem>>
    %28 = arith.index_cast %25 : i32 to index
    %29 = memref.load %arg3[%28] : memref<16xi32, #tpu.memory_space<smem>>
    %30 = arith.index_cast %25 : i32 to index
    %31 = memref.load %arg4[%30] : memref<16xf32, #tpu.memory_space<smem>>
    %cst_8 = arith.constant 1.000000e+00 : f32
    %32 = arith.subf %cst_8, %31 : f32
    %33 = arith.index_cast %27 : i32 to index
    %c0_9 = arith.constant 0 : index
    %c0_10 = arith.constant 0 : index
    %34 = vector.load %arg14[%33, %c0_9, %c0_10] : memref<8x8x256xf32, #tpu.memory_space<vmem>>, vector<1x8x256xf32>
    %35 = vector.shape_cast %34 : vector<1x8x256xf32> to vector<8x256xf32>
    %36 = vector.broadcast %32 : f32 to vector<8x256xf32>
    %37 = arith.mulf %36, %35 : vector<8x256xf32>
    %38 = arith.index_cast %29 : i32 to index
    %c0_11 = arith.constant 0 : index
    %c0_12 = arith.constant 0 : index
    %39 = vector.load %arg14[%38, %c0_11, %c0_12] : memref<8x8x256xf32, #tpu.memory_space<vmem>>, vector<1x8x256xf32>
    %40 = vector.shape_cast %39 : vector<1x8x256xf32> to vector<8x256xf32>
    %41 = vector.broadcast %31 : f32 to vector<8x256xf32>
    %42 = arith.mulf %41, %40 : vector<8x256xf32>
    %43 = arith.addf %37, %42 : vector<8x256xf32>
    %c0_13 = arith.constant 0 : index
    %c256 = arith.constant 256 : index
    %44 = vector.load %arg15[%c0_13, %c256] : memref<8x4096xf32, #tpu.memory_space<vmem>>, vector<8x256xf32>
    tpu.vector_store %arg15[%c0_13, %c256], %43 {strides = array<i32>} : memref<8x4096xf32, #tpu.memory_space<vmem>>, vector<8x256xf32>,
    %c16_i32_14 = arith.constant 16 : i32
    %45 = arith.muli %arg1, %c16_i32_14 : i32
    %c2_i32 = arith.constant 2 : i32
    %46 = arith.addi %45, %c2_i32 : i32
    %47 = arith.index_cast %46 : i32 to index
    %48 = memref.load %arg2[%47] : memref<16xi32, #tpu.memory_space<smem>>
    %49 = arith.index_cast %46 : i32 to index
    %50 = memref.load %arg3[%49] : memref<16xi32, #tpu.memory_space<smem>>
    %51 = arith.index_cast %46 : i32 to index
    %52 = memref.load %arg4[%51] : memref<16xf32, #tpu.memory_space<smem>>
    %cst_15 = arith.constant 1.000000e+00 : f32
    %53 = arith.subf %cst_15, %52 : f32
    %54 = arith.index_cast %48 : i32 to index
    %c0_16 = arith.constant 0 : index
    %c0_17 = arith.constant 0 : index
    %55 = vector.load %arg14[%54, %c0_16, %c0_17] : memref<8x8x256xf32, #tpu.memory_space<vmem>>, vector<1x8x256xf32>
    %56 = vector.shape_cast %55 : vector<1x8x256xf32> to vector<8x256xf32>
    %57 = vector.broadcast %53 : f32 to vector<8x256xf32>
    %58 = arith.mulf %57, %56 : vector<8x256xf32>
    %59 = arith.index_cast %50 : i32 to index
    %c0_18 = arith.constant 0 : index
    %c0_19 = arith.constant 0 : index
    %60 = vector.load %arg14[%59, %c0_18, %c0_19] : memref<8x8x256xf32, #tpu.memory_space<vmem>>, vector<1x8x256xf32>
    %61 = vector.shape_cast %60 : vector<1x8x256xf32> to vector<8x256xf32>
    %62 = vector.broadcast %52 : f32 to vector<8x256xf32>
    %63 = arith.mulf %62, %61 : vector<8x256xf32>
    %64 = arith.addf %58, %63 : vector<8x256xf32>
    %c0_20 = arith.constant 0 : index
    %c512 = arith.constant 512 : index
    %65 = vector.load %arg15[%c0_20, %c512] : memref<8x4096xf32, #tpu.memory_space<vmem>>, vector<8x256xf32>
    tpu.vector_store %arg15[%c0_20, %c512], %64 {strides = array<i32>} : memref<8x4096xf32, #tpu.memory_space<vmem>>, vector<8x256xf32>,
    %c16_i32_21 = arith.constant 16 : i32
    %66 = arith.muli %arg1, %c16_i32_21 : i32
    %c3_i32 = arith.constant 3 : i32
    %67 = arith.addi %66, %c3_i32 : i32
    %68 = arith.index_cast %67 : i32 to index
    %69 = memref.load %arg2[%68] : memref<16xi32, #tpu.memory_space<smem>>
    %70 = arith.index_cast %67 : i32 to index
    %71 = memref.load %arg3[%70] : memref<16xi32, #tpu.memory_space<smem>>
    %72 = arith.index_cast %67 : i32 to index
    %73 = memref.load %arg4[%72] : memref<16xf32, #tpu.memory_space<smem>>
    %cst_22 = arith.constant 1.000000e+00 : f32
    %74 = arith.subf %cst_22, %73 : f32
    %75 = arith.index_cast %69 : i32 to index
    %c0_23 = arith.constant 0 : index
    %c0_24 = arith.constant 0 : index
    %76 = vector.load %arg14[%75, %c0_23, %c0_24] : memref<8x8x256xf32, #tpu.memory_space<vmem>>, vector<1x8x256xf32>
    %77 = vector.shape_cast %76 : vector<1x8x256xf32> to vector<8x256xf32>
    %78 = vector.broadcast %74 : f32 to vector<8x256xf32>
    %79 = arith.mulf %78, %77 : vector<8x256xf32>
    %80 = arith.index_cast %71 : i32 to index
    %c0_25 = arith.constant 0 : index
    %c0_26 = arith.constant 0 : index
    %81 = vector.load %arg14[%80, %c0_25, %c0_26] : memref<8x8x256xf32, #tpu.memory_space<vmem>>, vector<1x8x256xf32>
    %82 = vector.shape_cast %81 : vector<1x8x256xf32> to vector<8x256xf32>
    %83 = vector.broadcast %73 : f32 to vector<8x256xf32>
    %84 = arith.mulf %83, %82 : vector<8x256xf32>
    %85 = arith.addf %79, %84 : vector<8x256xf32>
    %c0_27 = arith.constant 0 : index
    %c768 = arith.constant 768 : index
    %86 = vector.load %arg15[%c0_27, %c768] : memref<8x4096xf32, #tpu.memory_space<vmem>>, vector<8x256xf32>
    tpu.vector_store %arg15[%c0_27, %c768], %85 {strides = array<i32>} : memref<8x4096xf32, #tpu.memory_space<vmem>>, vector<8x256xf32>,
    %c16_i32_28 = arith.constant 16 : i32
    %87 = arith.muli %arg1, %c16_i32_28 : i32
    %c4_i32 = arith.constant 4 : i32
    %88 = arith.addi %87, %c4_i32 : i32
    %89 = arith.index_cast %88 : i32 to index
    %90 = memref.load %arg2[%89] : memref<16xi32, #tpu.memory_space<smem>>
    %91 = arith.index_cast %88 : i32 to index
    %92 = memref.load %arg3[%91] : memref<16xi32, #tpu.memory_space<smem>>
    %93 = arith.index_cast %88 : i32 to index
    %94 = memref.load %arg4[%93] : memref<16xf32, #tpu.memory_space<smem>>
    %cst_29 = arith.constant 1.000000e+00 : f32
    %95 = arith.subf %cst_29, %94 : f32
    %96 = arith.index_cast %90 : i32 to index
    %c0_30 = arith.constant 0 : index
    %c0_31 = arith.constant 0 : index
    %97 = vector.load %arg14[%96, %c0_30, %c0_31] : memref<8x8x256xf32, #tpu.memory_space<vmem>>, vector<1x8x256xf32>
    %98 = vector.shape_cast %97 : vector<1x8x256xf32> to vector<8x256xf32>
    %99 = vector.broadcast %95 : f32 to vector<8x256xf32>
    %100 = arith.mulf %99, %98 : vector<8x256xf32>
    %101 = arith.index_cast %92 : i32 to index
    %c0_32 = arith.constant 0 : index
    %c0_33 = arith.constant 0 : index
    %102 = vector.load %arg14[%101, %c0_32, %c0_33] : memref<8x8x256xf32, #tpu.memory_space<vmem>>, vector<1x8x256xf32>
    %103 = vector.shape_cast %102 : vector<1x8x256xf32> to vector<8x256xf32>
    %104 = vector.broadcast %94 : f32 to vector<8x256xf32>
    %105 = arith.mulf %104, %103 : vector<8x256xf32>
    %106 = arith.addf %100, %105 : vector<8x256xf32>
    %c0_34 = arith.constant 0 : index
    %c1024 = arith.constant 1024 : index
    %107 = vector.load %arg15[%c0_34, %c1024] : memref<8x4096xf32, #tpu.memory_space<vmem>>, vector<8x256xf32>
    tpu.vector_store %arg15[%c0_34, %c1024], %106 {strides = array<i32>} : memref<8x4096xf32, #tpu.memory_space<vmem>>, vector<8x256xf32>,
    %c16_i32_35 = arith.constant 16 : i32
    %108 = arith.muli %arg1, %c16_i32_35 : i32
    %c5_i32 = arith.constant 5 : i32
    %109 = arith.addi %108, %c5_i32 : i32
    %110 = arith.index_cast %109 : i32 to index
    %111 = memref.load %arg2[%110] : memref<16xi32, #tpu.memory_space<smem>>
    %112 = arith.index_cast %109 : i32 to index
    %113 = memref.load %arg3[%112] : memref<16xi32, #tpu.memory_space<smem>>
    %114 = arith.index_cast %109 : i32 to index
    %115 = memref.load %arg4[%114] : memref<16xf32, #tpu.memory_space<smem>>
    %cst_36 = arith.constant 1.000000e+00 : f32
    %116 = arith.subf %cst_36, %115 : f32
    %117 = arith.index_cast %111 : i32 to index
    %c0_37 = arith.constant 0 : index
    %c0_38 = arith.constant 0 : index
    %118 = vector.load %arg14[%117, %c0_37, %c0_38] : memref<8x8x256xf32, #tpu.memory_space<vmem>>, vector<1x8x256xf32>
    %119 = vector.shape_cast %118 : vector<1x8x256xf32> to vector<8x256xf32>
    %120 = vector.broadcast %116 : f32 to vector<8x256xf32>
    %121 = arith.mulf %120, %119 : vector<8x256xf32>
    %122 = arith.index_cast %113 : i32 to index
    %c0_39 = arith.constant 0 : index
    %c0_40 = arith.constant 0 : index
    %123 = vector.load %arg14[%122, %c0_39, %c0_40] : memref<8x8x256xf32, #tpu.memory_space<vmem>>, vector<1x8x256xf32>
    %124 = vector.shape_cast %123 : vector<1x8x256xf32> to vector<8x256xf32>
    %125 = vector.broadcast %115 : f32 to vector<8x256xf32>
    %126 = arith.mulf %125, %124 : vector<8x256xf32>
    %127 = arith.addf %121, %126 : vector<8x256xf32>
    %c0_41 = arith.constant 0 : index
    %c1280 = arith.constant 1280 : index
    %128 = vector.load %arg15[%c0_41, %c1280] : memref<8x4096xf32, #tpu.memory_space<vmem>>, vector<8x256xf32>
    tpu.vector_store %arg15[%c0_41, %c1280], %127 {strides = array<i32>} : memref<8x4096xf32, #tpu.memory_space<vmem>>, vector<8x256xf32>,
    %c16_i32_42 = arith.constant 16 : i32
    %129 = arith.muli %arg1, %c16_i32_42 : i32
    %c6_i32 = arith.constant 6 : i32
    %130 = arith.addi %129, %c6_i32 : i32
    %131 = arith.index_cast %130 : i32 to index
    %132 = memref.load %arg2[%131] : memref<16xi32, #tpu.memory_space<smem>>
    %133 = arith.index_cast %130 : i32 to index
    %134 = memref.load %arg3[%133] : memref<16xi32, #tpu.memory_space<smem>>
    %135 = arith.index_cast %130 : i32 to index
    %136 = memref.load %arg4[%135] : memref<16xf32, #tpu.memory_space<smem>>
    %cst_43 = arith.constant 1.000000e+00 : f32
    %137 = arith.subf %cst_43, %136 : f32
    %138 = arith.index_cast %132 : i32 to index
    %c0_44 = arith.constant 0 : index
    %c0_45 = arith.constant 0 : index
    %139 = vector.load %arg14[%138, %c0_44, %c0_45] : memref<8x8x256xf32, #tpu.memory_space<vmem>>, vector<1x8x256xf32>
    %140 = vector.shape_cast %139 : vector<1x8x256xf32> to vector<8x256xf32>
    %141 = vector.broadcast %137 : f32 to vector<8x256xf32>
    %142 = arith.mulf %141, %140 : vector<8x256xf32>
    %143 = arith.index_cast %134 : i32 to index
    %c0_46 = arith.constant 0 : index
    %c0_47 = arith.constant 0 : index
    %144 = vector.load %arg14[%143, %c0_46, %c0_47] : memref<8x8x256xf32, #tpu.memory_space<vmem>>, vector<1x8x256xf32>
    %145 = vector.shape_cast %144 : vector<1x8x256xf32> to vector<8x256xf32>
    %146 = vector.broadcast %136 : f32 to vector<8x256xf32>
    %147 = arith.mulf %146, %145 : vector<8x256xf32>
    %148 = arith.addf %142, %147 : vector<8x256xf32>
    %c0_48 = arith.constant 0 : index
    %c1536 = arith.constant 1536 : index
    %149 = vector.load %arg15[%c0_48, %c1536] : memref<8x4096xf32, #tpu.memory_space<vmem>>, vector<8x256xf32>
    tpu.vector_store %arg15[%c0_48, %c1536], %148 {strides = array<i32>} : memref<8x4096xf32, #tpu.memory_space<vmem>>, vector<8x256xf32>,
    %c16_i32_49 = arith.constant 16 : i32
    %150 = arith.muli %arg1, %c16_i32_49 : i32
    %c7_i32 = arith.constant 7 : i32
    %151 = arith.addi %150, %c7_i32 : i32
    %152 = arith.index_cast %151 : i32 to index
    %153 = memref.load %arg2[%152] : memref<16xi32, #tpu.memory_space<smem>>
    %154 = arith.index_cast %151 : i32 to index
    %155 = memref.load %arg3[%154] : memref<16xi32, #tpu.memory_space<smem>>
    %156 = arith.index_cast %151 : i32 to index
    %157 = memref.load %arg4[%156] : memref<16xf32, #tpu.memory_space<smem>>
    %cst_50 = arith.constant 1.000000e+00 : f32
    %158 = arith.subf %cst_50, %157 : f32
    %159 = arith.index_cast %153 : i32 to index
    %c0_51 = arith.constant 0 : index
    %c0_52 = arith.constant 0 : index
    %160 = vector.load %arg14[%159, %c0_51, %c0_52] : memref<8x8x256xf32, #tpu.memory_space<vmem>>, vector<1x8x256xf32>
    %161 = vector.shape_cast %160 : vector<1x8x256xf32> to vector<8x256xf32>
    %162 = vector.broadcast %158 : f32 to vector<8x256xf32>
    %163 = arith.mulf %162, %161 : vector<8x256xf32>
    %164 = arith.index_cast %155 : i32 to index
    %c0_53 = arith.constant 0 : index
    %c0_54 = arith.constant 0 : index
    %165 = vector.load %arg14[%164, %c0_53, %c0_54] : memref<8x8x256xf32, #tpu.memory_space<vmem>>, vector<1x8x256xf32>
    %166 = vector.shape_cast %165 : vector<1x8x256xf32> to vector<8x256xf32>
    %167 = vector.broadcast %157 : f32 to vector<8x256xf32>
    %168 = arith.mulf %167, %166 : vector<8x256xf32>
    %169 = arith.addf %163, %168 : vector<8x256xf32>
    %c0_55 = arith.constant 0 : index
    %c1792 = arith.constant 1792 : index
    %170 = vector.load %arg15[%c0_55, %c1792] : memref<8x4096xf32, #tpu.memory_space<vmem>>, vector<8x256xf32>
    tpu.vector_store %arg15[%c0_55, %c1792], %169 {strides = array<i32>} : memref<8x4096xf32, #tpu.memory_space<vmem>>, vector<8x256xf32>,
    %c16_i32_56 = arith.constant 16 : i32
    %171 = arith.muli %arg1, %c16_i32_56 : i32
    %c8_i32 = arith.constant 8 : i32
    %172 = arith.addi %171, %c8_i32 : i32
    %173 = arith.index_cast %172 : i32 to index
    %174 = memref.load %arg2[%173] : memref<16xi32, #tpu.memory_space<smem>>
    %175 = arith.index_cast %172 : i32 to index
    %176 = memref.load %arg3[%175] : memref<16xi32, #tpu.memory_space<smem>>
    %177 = arith.index_cast %172 : i32 to index
    %178 = memref.load %arg4[%177] : memref<16xf32, #tpu.memory_space<smem>>
    %cst_57 = arith.constant 1.000000e+00 : f32
    %179 = arith.subf %cst_57, %178 : f32
    %180 = arith.index_cast %174 : i32 to index
    %c0_58 = arith.constant 0 : index
    %c0_59 = arith.constant 0 : index
    %181 = vector.load %arg14[%180, %c0_58, %c0_59] : memref<8x8x256xf32, #tpu.memory_space<vmem>>, vector<1x8x256xf32>
    %182 = vector.shape_cast %181 : vector<1x8x256xf32> to vector<8x256xf32>
    %183 = vector.broadcast %179 : f32 to vector<8x256xf32>
    %184 = arith.mulf %183, %182 : vector<8x256xf32>
    %185 = arith.index_cast %176 : i32 to index
    %c0_60 = arith.constant 0 : index
    %c0_61 = arith.constant 0 : index
    %186 = vector.load %arg14[%185, %c0_60, %c0_61] : memref<8x8x256xf32, #tpu.memory_space<vmem>>, vector<1x8x256xf32>
    %187 = vector.shape_cast %186 : vector<1x8x256xf32> to vector<8x256xf32>
    %188 = vector.broadcast %178 : f32 to vector<8x256xf32>
    %189 = arith.mulf %188, %187 : vector<8x256xf32>
    %190 = arith.addf %184, %189 : vector<8x256xf32>
    %c0_62 = arith.constant 0 : index
    %c2048 = arith.constant 2048 : index
    %191 = vector.load %arg15[%c0_62, %c2048] : memref<8x4096xf32, #tpu.memory_space<vmem>>, vector<8x256xf32>
    tpu.vector_store %arg15[%c0_62, %c2048], %190 {strides = array<i32>} : memref<8x4096xf32, #tpu.memory_space<vmem>>, vector<8x256xf32>,
    %c16_i32_63 = arith.constant 16 : i32
    %192 = arith.muli %arg1, %c16_i32_63 : i32
    %c9_i32 = arith.constant 9 : i32
    %193 = arith.addi %192, %c9_i32 : i32
    %194 = arith.index_cast %193 : i32 to index
    %195 = memref.load %arg2[%194] : memref<16xi32, #tpu.memory_space<smem>>
    %196 = arith.index_cast %193 : i32 to index
    %197 = memref.load %arg3[%196] : memref<16xi32, #tpu.memory_space<smem>>
    %198 = arith.index_cast %193 : i32 to index
    %199 = memref.load %arg4[%198] : memref<16xf32, #tpu.memory_space<smem>>
    %cst_64 = arith.constant 1.000000e+00 : f32
    %200 = arith.subf %cst_64, %199 : f32
    %201 = arith.index_cast %195 : i32 to index
    %c0_65 = arith.constant 0 : index
    %c0_66 = arith.constant 0 : index
    %202 = vector.load %arg14[%201, %c0_65, %c0_66] : memref<8x8x256xf32, #tpu.memory_space<vmem>>, vector<1x8x256xf32>
    %203 = vector.shape_cast %202 : vector<1x8x256xf32> to vector<8x256xf32>
    %204 = vector.broadcast %200 : f32 to vector<8x256xf32>
    %205 = arith.mulf %204, %203 : vector<8x256xf32>
    %206 = arith.index_cast %197 : i32 to index
    %c0_67 = arith.constant 0 : index
    %c0_68 = arith.constant 0 : index
    %207 = vector.load %arg14[%206, %c0_67, %c0_68] : memref<8x8x256xf32, #tpu.memory_space<vmem>>, vector<1x8x256xf32>
    %208 = vector.shape_cast %207 : vector<1x8x256xf32> to vector<8x256xf32>
    %209 = vector.broadcast %199 : f32 to vector<8x256xf32>
    %210 = arith.mulf %209, %208 : vector<8x256xf32>
    %211 = arith.addf %205, %210 : vector<8x256xf32>
    %c0_69 = arith.constant 0 : index
    %c2304 = arith.constant 2304 : index
    %212 = vector.load %arg15[%c0_69, %c2304] : memref<8x4096xf32, #tpu.memory_space<vmem>>, vector<8x256xf32>
    tpu.vector_store %arg15[%c0_69, %c2304], %211 {strides = array<i32>} : memref<8x4096xf32, #tpu.memory_space<vmem>>, vector<8x256xf32>,
    %c16_i32_70 = arith.constant 16 : i32
    %213 = arith.muli %arg1, %c16_i32_70 : i32
    %c10_i32 = arith.constant 10 : i32
    %214 = arith.addi %213, %c10_i32 : i32
    %215 = arith.index_cast %214 : i32 to index
    %216 = memref.load %arg2[%215] : memref<16xi32, #tpu.memory_space<smem>>
    %217 = arith.index_cast %214 : i32 to index
    %218 = memref.load %arg3[%217] : memref<16xi32, #tpu.memory_space<smem>>
    %219 = arith.index_cast %214 : i32 to index
    %220 = memref.load %arg4[%219] : memref<16xf32, #tpu.memory_space<smem>>
    %cst_71 = arith.constant 1.000000e+00 : f32
    %221 = arith.subf %cst_71, %220 : f32
    %222 = arith.index_cast %216 : i32 to index
    %c0_72 = arith.constant 0 : index
    %c0_73 = arith.constant 0 : index
    %223 = vector.load %arg14[%222, %c0_72, %c0_73] : memref<8x8x256xf32, #tpu.memory_space<vmem>>, vector<1x8x256xf32>
    %224 = vector.shape_cast %223 : vector<1x8x256xf32> to vector<8x256xf32>
    %225 = vector.broadcast %221 : f32 to vector<8x256xf32>
    %226 = arith.mulf %225, %224 : vector<8x256xf32>
    %227 = arith.index_cast %218 : i32 to index
    %c0_74 = arith.constant 0 : index
    %c0_75 = arith.constant 0 : index
    %228 = vector.load %arg14[%227, %c0_74, %c0_75] : memref<8x8x256xf32, #tpu.memory_space<vmem>>, vector<1x8x256xf32>
    %229 = vector.shape_cast %228 : vector<1x8x256xf32> to vector<8x256xf32>
    %230 = vector.broadcast %220 : f32 to vector<8x256xf32>
    %231 = arith.mulf %230, %229 : vector<8x256xf32>
    %232 = arith.addf %226, %231 : vector<8x256xf32>
    %c0_76 = arith.constant 0 : index
    %c2560 = arith.constant 2560 : index
    %233 = vector.load %arg15[%c0_76, %c2560] : memref<8x4096xf32, #tpu.memory_space<vmem>>, vector<8x256xf32>
    tpu.vector_store %arg15[%c0_76, %c2560], %232 {strides = array<i32>} : memref<8x4096xf32, #tpu.memory_space<vmem>>, vector<8x256xf32>,
    %c16_i32_77 = arith.constant 16 : i32
    %234 = arith.muli %arg1, %c16_i32_77 : i32
    %c11_i32 = arith.constant 11 : i32
    %235 = arith.addi %234, %c11_i32 : i32
    %236 = arith.index_cast %235 : i32 to index
    %237 = memref.load %arg2[%236] : memref<16xi32, #tpu.memory_space<smem>>
    %238 = arith.index_cast %235 : i32 to index
    %239 = memref.load %arg3[%238] : memref<16xi32, #tpu.memory_space<smem>>
    %240 = arith.index_cast %235 : i32 to index
    %241 = memref.load %arg4[%240] : memref<16xf32, #tpu.memory_space<smem>>
    %cst_78 = arith.constant 1.000000e+00 : f32
    %242 = arith.subf %cst_78, %241 : f32
    %243 = arith.index_cast %237 : i32 to index
    %c0_79 = arith.constant 0 : index
    %c0_80 = arith.constant 0 : index
    %244 = vector.load %arg14[%243, %c0_79, %c0_80] : memref<8x8x256xf32, #tpu.memory_space<vmem>>, vector<1x8x256xf32>
    %245 = vector.shape_cast %244 : vector<1x8x256xf32> to vector<8x256xf32>
    %246 = vector.broadcast %242 : f32 to vector<8x256xf32>
    %247 = arith.mulf %246, %245 : vector<8x256xf32>
    %248 = arith.index_cast %239 : i32 to index
    %c0_81 = arith.constant 0 : index
    %c0_82 = arith.constant 0 : index
    %249 = vector.load %arg14[%248, %c0_81, %c0_82] : memref<8x8x256xf32, #tpu.memory_space<vmem>>, vector<1x8x256xf32>
    %250 = vector.shape_cast %249 : vector<1x8x256xf32> to vector<8x256xf32>
    %251 = vector.broadcast %241 : f32 to vector<8x256xf32>
    %252 = arith.mulf %251, %250 : vector<8x256xf32>
    %253 = arith.addf %247, %252 : vector<8x256xf32>
    %c0_83 = arith.constant 0 : index
    %c2816 = arith.constant 2816 : index
    %254 = vector.load %arg15[%c0_83, %c2816] : memref<8x4096xf32, #tpu.memory_space<vmem>>, vector<8x256xf32>
    tpu.vector_store %arg15[%c0_83, %c2816], %253 {strides = array<i32>} : memref<8x4096xf32, #tpu.memory_space<vmem>>, vector<8x256xf32>,
    %c16_i32_84 = arith.constant 16 : i32
    %255 = arith.muli %arg1, %c16_i32_84 : i32
    %c12_i32 = arith.constant 12 : i32
    %256 = arith.addi %255, %c12_i32 : i32
    %257 = arith.index_cast %256 : i32 to index
    %258 = memref.load %arg2[%257] : memref<16xi32, #tpu.memory_space<smem>>
    %259 = arith.index_cast %256 : i32 to index
    %260 = memref.load %arg3[%259] : memref<16xi32, #tpu.memory_space<smem>>
    %261 = arith.index_cast %256 : i32 to index
    %262 = memref.load %arg4[%261] : memref<16xf32, #tpu.memory_space<smem>>
    %cst_85 = arith.constant 1.000000e+00 : f32
    %263 = arith.subf %cst_85, %262 : f32
    %264 = arith.index_cast %258 : i32 to index
    %c0_86 = arith.constant 0 : index
    %c0_87 = arith.constant 0 : index
    %265 = vector.load %arg14[%264, %c0_86, %c0_87] : memref<8x8x256xf32, #tpu.memory_space<vmem>>, vector<1x8x256xf32>
    %266 = vector.shape_cast %265 : vector<1x8x256xf32> to vector<8x256xf32>
    %267 = vector.broadcast %263 : f32 to vector<8x256xf32>
    %268 = arith.mulf %267, %266 : vector<8x256xf32>
    %269 = arith.index_cast %260 : i32 to index
    %c0_88 = arith.constant 0 : index
    %c0_89 = arith.constant 0 : index
    %270 = vector.load %arg14[%269, %c0_88, %c0_89] : memref<8x8x256xf32, #tpu.memory_space<vmem>>, vector<1x8x256xf32>
    %271 = vector.shape_cast %270 : vector<1x8x256xf32> to vector<8x256xf32>
    %272 = vector.broadcast %262 : f32 to vector<8x256xf32>
    %273 = arith.mulf %272, %271 : vector<8x256xf32>
    %274 = arith.addf %268, %273 : vector<8x256xf32>
    %c0_90 = arith.constant 0 : index
    %c3072 = arith.constant 3072 : index
    %275 = vector.load %arg15[%c0_90, %c3072] : memref<8x4096xf32, #tpu.memory_space<vmem>>, vector<8x256xf32>
    tpu.vector_store %arg15[%c0_90, %c3072], %274 {strides = array<i32>} : memref<8x4096xf32, #tpu.memory_space<vmem>>, vector<8x256xf32>,
    %c16_i32_91 = arith.constant 16 : i32
    %276 = arith.muli %arg1, %c16_i32_91 : i32
    %c13_i32 = arith.constant 13 : i32
    %277 = arith.addi %276, %c13_i32 : i32
    %278 = arith.index_cast %277 : i32 to index
    %279 = memref.load %arg2[%278] : memref<16xi32, #tpu.memory_space<smem>>
    %280 = arith.index_cast %277 : i32 to index
    %281 = memref.load %arg3[%280] : memref<16xi32, #tpu.memory_space<smem>>
    %282 = arith.index_cast %277 : i32 to index
    %283 = memref.load %arg4[%282] : memref<16xf32, #tpu.memory_space<smem>>
    %cst_92 = arith.constant 1.000000e+00 : f32
    %284 = arith.subf %cst_92, %283 : f32
    %285 = arith.index_cast %279 : i32 to index
    %c0_93 = arith.constant 0 : index
    %c0_94 = arith.constant 0 : index
    %286 = vector.load %arg14[%285, %c0_93, %c0_94] : memref<8x8x256xf32, #tpu.memory_space<vmem>>, vector<1x8x256xf32>
    %287 = vector.shape_cast %286 : vector<1x8x256xf32> to vector<8x256xf32>
    %288 = vector.broadcast %284 : f32 to vector<8x256xf32>
    %289 = arith.mulf %288, %287 : vector<8x256xf32>
    %290 = arith.index_cast %281 : i32 to index
    %c0_95 = arith.constant 0 : index
    %c0_96 = arith.constant 0 : index
    %291 = vector.load %arg14[%290, %c0_95, %c0_96] : memref<8x8x256xf32, #tpu.memory_space<vmem>>, vector<1x8x256xf32>
    %292 = vector.shape_cast %291 : vector<1x8x256xf32> to vector<8x256xf32>
    %293 = vector.broadcast %283 : f32 to vector<8x256xf32>
    %294 = arith.mulf %293, %292 : vector<8x256xf32>
    %295 = arith.addf %289, %294 : vector<8x256xf32>
    %c0_97 = arith.constant 0 : index
    %c3328 = arith.constant 3328 : index
    %296 = vector.load %arg15[%c0_97, %c3328] : memref<8x4096xf32, #tpu.memory_space<vmem>>, vector<8x256xf32>
    tpu.vector_store %arg15[%c0_97, %c3328], %295 {strides = array<i32>} : memref<8x4096xf32, #tpu.memory_space<vmem>>, vector<8x256xf32>,
    %c16_i32_98 = arith.constant 16 : i32
    %297 = arith.muli %arg1, %c16_i32_98 : i32
    %c14_i32 = arith.constant 14 : i32
    %298 = arith.addi %297, %c14_i32 : i32
    %299 = arith.index_cast %298 : i32 to index
    %300 = memref.load %arg2[%299] : memref<16xi32, #tpu.memory_space<smem>>
    %301 = arith.index_cast %298 : i32 to index
    %302 = memref.load %arg3[%301] : memref<16xi32, #tpu.memory_space<smem>>
    %303 = arith.index_cast %298 : i32 to index
    %304 = memref.load %arg4[%303] : memref<16xf32, #tpu.memory_space<smem>>
    %cst_99 = arith.constant 1.000000e+00 : f32
    %305 = arith.subf %cst_99, %304 : f32
    %306 = arith.index_cast %300 : i32 to index
    %c0_100 = arith.constant 0 : index
    %c0_101 = arith.constant 0 : index
    %307 = vector.load %arg14[%306, %c0_100, %c0_101] : memref<8x8x256xf32, #tpu.memory_space<vmem>>, vector<1x8x256xf32>
    %308 = vector.shape_cast %307 : vector<1x8x256xf32> to vector<8x256xf32>
    %309 = vector.broadcast %305 : f32 to vector<8x256xf32>
    %310 = arith.mulf %309, %308 : vector<8x256xf32>
    %311 = arith.index_cast %302 : i32 to index
    %c0_102 = arith.constant 0 : index
    %c0_103 = arith.constant 0 : index
    %312 = vector.load %arg14[%311, %c0_102, %c0_103] : memref<8x8x256xf32, #tpu.memory_space<vmem>>, vector<1x8x256xf32>
    %313 = vector.shape_cast %312 : vector<1x8x256xf32> to vector<8x256xf32>
    %314 = vector.broadcast %304 : f32 to vector<8x256xf32>
    %315 = arith.mulf %314, %313 : vector<8x256xf32>
    %316 = arith.addf %310, %315 : vector<8x256xf32>
    %c0_104 = arith.constant 0 : index
    %c3584 = arith.constant 3584 : index
    %317 = vector.load %arg15[%c0_104, %c3584] : memref<8x4096xf32, #tpu.memory_space<vmem>>, vector<8x256xf32>
    tpu.vector_store %arg15[%c0_104, %c3584], %316 {strides = array<i32>} : memref<8x4096xf32, #tpu.memory_space<vmem>>, vector<8x256xf32>,
    %c16_i32_105 = arith.constant 16 : i32
    %318 = arith.muli %arg1, %c16_i32_105 : i32
    %c15_i32 = arith.constant 15 : i32
    %319 = arith.addi %318, %c15_i32 : i32
    %320 = arith.index_cast %319 : i32 to index
    %321 = memref.load %arg2[%320] : memref<16xi32, #tpu.memory_space<smem>>
    %322 = arith.index_cast %319 : i32 to index
    %323 = memref.load %arg3[%322] : memref<16xi32, #tpu.memory_space<smem>>
    %324 = arith.index_cast %319 : i32 to index
    %325 = memref.load %arg4[%324] : memref<16xf32, #tpu.memory_space<smem>>
    %cst_106 = arith.constant 1.000000e+00 : f32
    %326 = arith.subf %cst_106, %325 : f32
    %327 = arith.index_cast %321 : i32 to index
    %c0_107 = arith.constant 0 : index
    %c0_108 = arith.constant 0 : index
    %328 = vector.load %arg14[%327, %c0_107, %c0_108] : memref<8x8x256xf32, #tpu.memory_space<vmem>>, vector<1x8x256xf32>
    %329 = vector.shape_cast %328 : vector<1x8x256xf32> to vector<8x256xf32>
    %330 = vector.broadcast %326 : f32 to vector<8x256xf32>
    %331 = arith.mulf %330, %329 : vector<8x256xf32>
    %332 = arith.index_cast %323 : i32 to index
    %c0_109 = arith.constant 0 : index
    %c0_110 = arith.constant 0 : index
    %333 = vector.load %arg14[%332, %c0_109, %c0_110] : memref<8x8x256xf32, #tpu.memory_space<vmem>>, vector<1x8x256xf32>
    %334 = vector.shape_cast %333 : vector<1x8x256xf32> to vector<8x256xf32>
    %335 = vector.broadcast %325 : f32 to vector<8x256xf32>
    %336 = arith.mulf %335, %334 : vector<8x256xf32>
    %337 = arith.addf %331, %336 : vector<8x256xf32>
    %c0_111 = arith.constant 0 : index
    %c3840 = arith.constant 3840 : index
    %338 = vector.load %arg15[%c0_111, %c3840] : memref<8x4096xf32, #tpu.memory_space<vmem>>, vector<8x256xf32>
    tpu.vector_store %arg15[%c0_111, %c3840], %337 {strides = array<i32>} : memref<8x4096xf32, #tpu.memory_space<vmem>>, vector<8x256xf32>,
    %c0_112 = arith.constant 0 : index
    %c0_113 = arith.constant 0 : index
    %c0_114 = arith.constant 0 : index
    %339 = vector.load %arg6[%c0_112, %c0_113, %c0_114] : memref<1x4x4096xf32, #tpu.memory_space<vmem>>, vector<1x4x4096xf32>
    %340 = vector.shape_cast %339 : vector<1x4x4096xf32> to vector<4x4096xf32>
    %c0_115 = arith.constant 0 : index
    %c0_116 = arith.constant 0 : index
    %341 = vector.load %arg8[%c0_115, %c0_116] : memref<8x4xf32, #tpu.memory_space<vmem>>, vector<8x4xf32>
    %cst_117 = arith.constant dense<0.000000e+00> : vector<8x4096xf32>
    %342 = tpu.matmul %341, %340, %cst_117 {dimension_numbers = #tpu.dot_dimension_numbers<[1], [0], [0], [1], [0, 0, 1, 1], [], []>} : vector<8x4xf32>, vector<4x4096xf32>, vector<8x4096xf32> -> vector<8x4096xf32>
    %c0_118 = arith.constant 0 : index
    %c0_119 = arith.constant 0 : index
    %343 = vector.load %arg15[%c0_118, %c0_119] : memref<8x4096xf32, #tpu.memory_space<vmem>>, vector<8x4096xf32>
    %344 = arith.addf %342, %343 : vector<8x4096xf32>
    %cst_120 = arith.constant 0.000000e+00 : f32
    %345 = vector.broadcast %cst_120 : f32 to vector<8x4096xf32>
    %346 = arith.maximumf %344, %345 : vector<8x4096xf32>
    %c0_121 = arith.constant 0 : index
    %c0_122 = arith.constant 0 : index
    %347 = vector.load %arg12[%c0_121, %c0_122] : memref<8x1xf32, #tpu.memory_space<vmem>>, vector<8x1xf32>
    %348 = vector.broadcast %347 : vector<8x1xf32> to vector<8x4096xf32>
    %349 = arith.mulf %346, %348 : vector<8x4096xf32>
    %cst_123 = arith.constant dense<0.000000e+00> : vector<4096xf32>
    %350 = vector.multi_reduction <add>, %349, %cst_123 [0] : vector<8x4096xf32> to vector<4096xf32>
    %351 = vector.shape_cast %350 : vector<4096xf32> to vector<1x4096xf32>
    %c0_124 = arith.constant 0 : index
    %352 = memref.load %arg5[%c0_124] : memref<1xf32, #tpu.memory_space<smem>>
    %353 = vector.broadcast %352 : f32 to vector<1x4096xf32>
    %354 = arith.addf %351, %353 : vector<1x4096xf32>
    %355 = arith.negf %354 : vector<1x4096xf32>
    %356 = math.exp %355 : vector<1x4096xf32>
    %cst_125 = arith.constant 1.000000e+00 : f32
    %357 = vector.broadcast %cst_125 : f32 to vector<1x4096xf32>
    %358 = arith.addf %357, %356 : vector<1x4096xf32>
    %359 = arith.divf %357, %358 : vector<1x4096xf32>
    %360 = vector.broadcast %359 : vector<1x4096xf32> to vector<4x4096xf32>
    %361 = arith.mulf %360, %340 : vector<4x4096xf32>
    %c0_126 = arith.constant 0 : index
    %c0_127 = arith.constant 0 : index
    %c0_128 = arith.constant 0 : index
    %362 = vector.load %arg13[%c0_126, %c0_127, %c0_128] : memref<1x4x4096xf32, #tpu.memory_space<vmem>>, vector<1x4x4096xf32>
    %363 = vector.shape_cast %362 : vector<1x4x4096xf32> to vector<4x4096xf32>
    %364 = vector.shape_cast %361 : vector<4x4096xf32> to vector<1x4x4096xf32>
    tpu.vector_store %arg13[%c0_126, %c0_127, %c0_128], %364 {strides = array<i32>} : memref<1x4x4096xf32, #tpu.memory_space<vmem>>, vector<1x4x4096xf32>,
    return
  }
  func.func @transform_0(%arg0: i32, %arg1: i32, %arg2: memref<16xi32, #tpu.memory_space<smem>>, %arg3: memref<16xi32, #tpu.memory_space<smem>>, %arg4: memref<16xf32, #tpu.memory_space<smem>>, %arg5: memref<1xf32, #tpu.memory_space<smem>>) -> (i32, i32, i32) {
    %c0_i32 = arith.constant 0 : i32
    %c0_i32_0 = arith.constant 0 : i32
    return %arg0, %c0_i32, %arg1 : i32, i32, i32
  }
  func.func @transform_1(%arg0: i32, %arg1: i32, %arg2: memref<16xi32, #tpu.memory_space<smem>>, %arg3: memref<16xi32, #tpu.memory_space<smem>>, %arg4: memref<16xf32, #tpu.memory_space<smem>>, %arg5: memref<1xf32, #tpu.memory_space<smem>>) -> (i32, i32, i32, i32) {
    %c0_i32 = arith.constant 0 : i32
    %c0_i32_0 = arith.constant 0 : i32
    %c0_i32_1 = arith.constant 0 : i32
    %c0_i32_2 = arith.constant 0 : i32
    return %arg0, %c0_i32, %c0_i32_0, %c0_i32_1 : i32, i32, i32, i32
  }
  func.func @transform_2(%arg0: i32, %arg1: i32, %arg2: memref<16xi32, #tpu.memory_space<smem>>, %arg3: memref<16xi32, #tpu.memory_space<smem>>, %arg4: memref<16xf32, #tpu.memory_space<smem>>, %arg5: memref<1xf32, #tpu.memory_space<smem>>) -> (i32, i32) {
    %c0_i32 = arith.constant 0 : i32
    %c0_i32_0 = arith.constant 0 : i32
    %c0_i32_1 = arith.constant 0 : i32
    return %c0_i32, %c0_i32_0 : i32, i32
  }
  func.func @transform_3(%arg0: i32, %arg1: i32, %arg2: memref<16xi32, #tpu.memory_space<smem>>, %arg3: memref<16xi32, #tpu.memory_space<smem>>, %arg4: memref<16xf32, #tpu.memory_space<smem>>, %arg5: memref<1xf32, #tpu.memory_space<smem>>) -> (i32, i32) {
    %c0_i32 = arith.constant 0 : i32
    %c0_i32_0 = arith.constant 0 : i32
    %c0_i32_1 = arith.constant 0 : i32
    return %c0_i32, %c0_i32_0 : i32, i32
  }
  func.func @transform_4(%arg0: i32, %arg1: i32, %arg2: memref<16xi32, #tpu.memory_space<smem>>, %arg3: memref<16xi32, #tpu.memory_space<smem>>, %arg4: memref<16xf32, #tpu.memory_space<smem>>, %arg5: memref<1xf32, #tpu.memory_space<smem>>) -> (i32, i32) {
    %c0_i32 = arith.constant 0 : i32
    %c0_i32_0 = arith.constant 0 : i32
    %c0_i32_1 = arith.constant 0 : i32
    return %c0_i32, %c0_i32_0 : i32, i32
  }
  func.func @transform_5(%arg0: i32, %arg1: i32, %arg2: memref<16xi32, #tpu.memory_space<smem>>, %arg3: memref<16xi32, #tpu.memory_space<smem>>, %arg4: memref<16xf32, #tpu.memory_space<smem>>, %arg5: memref<1xf32, #tpu.memory_space<smem>>) -> (i32, i32) {
    %c0_i32 = arith.constant 0 : i32
    %c0_i32_0 = arith.constant 0 : i32
    %c0_i32_1 = arith.constant 0 : i32
    return %c0_i32, %c0_i32_0 : i32, i32
  }
  func.func @transform_6(%arg0: i32, %arg1: i32, %arg2: memref<16xi32, #tpu.memory_space<smem>>, %arg3: memref<16xi32, #tpu.memory_space<smem>>, %arg4: memref<16xf32, #tpu.memory_space<smem>>, %arg5: memref<1xf32, #tpu.memory_space<smem>>) -> (i32, i32) {
    %c0_i32 = arith.constant 0 : i32
    %c0_i32_0 = arith.constant 0 : i32
    %c0_i32_1 = arith.constant 0 : i32
    return %c0_i32, %c0_i32_0 : i32, i32
  }
  func.func @transform_7(%arg0: i32, %arg1: i32, %arg2: memref<16xi32, #tpu.memory_space<smem>>, %arg3: memref<16xi32, #tpu.memory_space<smem>>, %arg4: memref<16xf32, #tpu.memory_space<smem>>, %arg5: memref<1xf32, #tpu.memory_space<smem>>) -> (i32, i32, i32) {
    %c0_i32 = arith.constant 0 : i32
    %c0_i32_0 = arith.constant 0 : i32
    return %arg0, %c0_i32, %arg1 : i32, i32, i32
  }
}

</mosaic_0001>

<llo_original>
// kernel: tpu_custom_call.1
$region0: #{tpu_custom_call.1}
  #allocation0 [shape = 'u32[]', space=smem, size = 0x4, offset = 0x4, fixed_abs, tag = 'smem constant byte address 0x4 - core index']
  #allocation1 [shape = 'u32[72,128]{1,0:T(1,128)}', space=vmem, size = 0x9000, scoped, tag = 'internal scratch']
  #allocation2 [shape = 'f32[8,8,256]{2,1,0:T(8,128)}', space=vmem, size = 0x10000, scoped, tag = 'scratch operand']
  #allocation3 [shape = 'f32[8,4096]{1,0:T(8,128)}', space=vmem, size = 0x20000, scoped, tag = 'scratch operand']
  #allocation4 [shape = 's32[1]{0}', space=sflag, size = 0x4, scoped, tag = 'scoped memory for tpu_custom_call.1']
  #allocation5 [shape = 'u8[512]{0}', space=smem, size = 0x200, scoped, tag = 'prefetched SMEM operand 0']
  #allocation6 [shape = 'u8[512]{0}', space=smem, size = 0x200, scoped, tag = 'prefetched SMEM operand 1']
  #allocation7 [shape = 'u8[512]{0}', space=smem, size = 0x200, scoped, tag = 'prefetched SMEM operand 2']
  #allocation8 [shape = 'f32[1]{0:T(128)S(6)}', space=smem, size = 0x200, scoped, tag = 'prefetched SMEM operand 3']
  %s0 = inlined_call_operand.vmem [shape: s32[16], index: 0, kind: input, shape index: {}]
  %s1 = inlined_call_operand.vmem [shape: s32[16], index: 1, kind: input, shape index: {}]
  %s2 = inlined_call_operand.vmem [shape: f32[16], index: 2, kind: input, shape index: {}]
  %s3 = inlined_call_operand.<no memory space> [shape: f32[1], index: 3, kind: input, shape index: {}]
  %s4 = inlined_call_operand.hbm [shape: f32[2,4,4096], index: 4, kind: input, shape index: {}]
  %s5 = inlined_call_operand.vmem [shape: f32[2,8,6,64], index: 5, kind: input, shape index: {}]
  %s6 = inlined_call_operand.vmem [shape: f32[8,4], index: 6, kind: input, shape index: {}]
  %s7 = inlined_call_operand.vmem [shape: f32[8,6], index: 7, kind: input, shape index: {}]
  %s8 = inlined_call_operand.vmem [shape: f32[8,1], index: 8, kind: input, shape index: {}]
  %s9 = inlined_call_operand.vmem [shape: f32[64,256], index: 9, kind: input, shape index: {}]
  %s10 = inlined_call_operand.vmem [shape: f32[8,1], index: 10, kind: input, shape index: {}]
  %s11 = inlined_call_operand.hbm [shape: f32[2,4,4096], index: 11, kind: output, shape index: {}]
  %s12 = sld [smem:[#allocation0]]
  $region69: #{tpu_custom_call.1} parent=0
    _
  %s14 = ssub.s32 1, %s12
  %s15 = scalar_select 0, %s14, %s12
  %s17 = sshll.u32 %s0, 4
  %s18 = int_to_ptr.vmem [resolvable:$true] %s17
  %20 = dma.vmem_to_smem %s18, 16, [#allocation5], [#allocation4]
  %s22 = sshll.u32 %s1, 4
  %s23 = int_to_ptr.vmem [resolvable:$true] %s22
  %25 = dma.vmem_to_smem %s23, 16, [#allocation6], [#allocation4]
  %s27 = sshll.u32 %s2, 4
  %s28 = int_to_ptr.vmem [resolvable:$true] %s27
  %30 = dma.vmem_to_smem %s28, 16, [#allocation7], [#allocation4]
  %31 = sst [smem:[#allocation8]] %s3
  %33 = dma.done [#allocation4], 48
  %34 = sfence
  $region1: #{tpu_custom_call.1} parent=0
    #allocation9 [shape = 'u8[131072]{0}', space=vmem, size = 0x20000, scoped, tag = 'input window, operand 4']
    #allocation10 [shape = 's32[2]{0}', space=sflag, size = 0x8, scoped, tag = 'scoped memory for tpu_custom_call.1']
    #allocation11 [shape = 's32[2]{0}', space=sflag, size = 0x8, scoped, tag = 'scoped memory for tpu_custom_call.1']
    #allocation12 [shape = 'u8[131072]{0}', space=vmem, size = 0x20000, scoped, tag = 'output window, operand 0']
    %35 = vsyncpa [#allocation10], 0
    %s36 = scalar_lea.sflag [#allocation10], 1
    %37 = vsyncpa %s36, 0
    %38 = vsyncpa [#allocation11], 0
    %s39 = scalar_lea.sflag [#allocation11], 1
    %40 = vsyncpa %s39, 0
    loop: start=0, step=1, limit=4
    $region2: #{tpu_custom_call.1} parent=1 // loop_pre_header
      _
    $region3: #{tpu_custom_call.1} parent=1 // loop_header
      %s42 = sphi 0, %s46
      %p43 = scmp.ge.s32.totalorder %s42, 4
      %s49 = sphi 0, %s61
      %s50 = sphi 0, %s57
      %s51 = sphi 0, %s49
      %s52 = sphi 0, %s50
      %s53 = sphi 0, %s51
      %s54 = sphi 0, %s52
      %s66 = sphi 0, %s68
      %s69 = sphi 0, %s66
      %s70 = sphi 0, %s69
      %s86 = sphi 0, %s70
      %s92 = sphi 0, %s94
      %s95 = sphi 0, %s92
      %s96 = sphi 0, %s95
      %s112 = sphi 0, %s96
      %s116 = sphi 0, %s116
      %s118 = sphi 0, %s116
      %s119 = sphi 0, %s118
      %s133 = sphi 0, %s119
      %s137 = sphi 0, %s137
      %s139 = sphi 0, %s137
      %s140 = sphi 0, %s139
      %s154 = sphi 0, %s140
      %s158 = sphi 0, %s158
      %s160 = sphi 0, %s158
      %s161 = sphi 0, %s160
      %s175 = sphi 0, %s161
      %s179 = sphi 0, %s179
      %s181 = sphi 0, %s179
      %s182 = sphi 0, %s181
      %s196 = sphi 0, %s182
      %s200 = sphi 0, %s200
      %s202 = sphi 0, %s200
      %s203 = sphi 0, %s202
      %s217 = sphi 0, %s203
      %s225 = sphi 0, %s227
      %s228 = sphi 0, %s225
      %s229 = sphi 0, %s228
      %s245 = sphi 0, %s229
    $region4: #{tpu_custom_call.1} parent=1 // loop_header_branch
      %45 = sbr.rel (%p43) target = $region8
    $region5: #{tpu_custom_call.1} parent=1 // loop_body
      %s47 = ssub.s32 %s42, 1
      %s48 = ssub.s32 %s42, 2
      %s55 = sadd.s32 1, %s50
      %p56 = scmp.ge.s32.totalorder %s55, 1
      %s57 = scalar_select %p56, 0, %s55
      %s58 = sadd.s32 1, %s49
      %s59 = scalar_select %p56, %s58, %s49
      %p60 = scmp.ge.s32.totalorder %s59, 2
      %s61 = scalar_select %p60, 0, %s59
      %s62 = ssub.s32 %s49, %s61
      %s63 = ssub.s32 %s50, %s57
      %s64 = sor.u32 %s62, %s63
      %p65 = scmp.eq.s32.totalorder %s64, 0
      %s67 = sadd.s32 %s66, 1
      %s68 = scalar_select %p65, %s66, %s67
      %p71 = pneg %p65
      %p72 = scmp.eq.s32.totalorder %s42, 1
      %p73 = por %p71, %p72
      %p74 = scmp.ne.s32.totalorder %s66, %s69
      %p75 = scmp.eq.s32.totalorder %s42, 0
      %p76 = por %p74, %p75
      %p77 = scmp.ne.s32.totalorder %s66, %s69
      %p78 = scmp.eq.s32.totalorder %s47, 1
      %p79 = por %p77, %p78
      %p80 = scmp.ne.s32.totalorder %s69, %s70
      %p81 = scmp.eq.s32.totalorder %s47, 0
      %p82 = por %p80, %p81
      %p83 = scmp.ne.s32.totalorder %s69, %s70
      %p84 = scmp.eq.s32.totalorder %s48, 1
      %p85 = por %p83, %p84
      %p87 = scmp.ne.s32.totalorder %s70, %s86
      %p88 = scmp.eq.s32.totalorder %s48, 0
      %p89 = por %p87, %p88
      %s90 = ssub.s32 %s49, %s61
      %p91 = scmp.eq.s32.totalorder %s90, 0
      %s93 = sadd.s32 %s92, 1
      %s94 = scalar_select %p91, %s92, %s93
      %p97 = pneg %p91
      %p98 = scmp.eq.s32.totalorder %s42, 1
      %p99 = por %p97, %p98
      %p100 = scmp.ne.s32.totalorder %s92, %s95
      %p101 = scmp.eq.s32.totalorder %s42, 0
      %p102 = por %p100, %p101
      %p103 = scmp.ne.s32.totalorder %s92, %s95
      %p104 = scmp.eq.s32.totalorder %s47, 1
      %p105 = por %p103, %p104
      %p106 = scmp.ne.s32.totalorder %s95, %s96
      %p107 = scmp.eq.s32.totalorder %s47, 0
      %p108 = por %p106, %p107
      %p109 = scmp.ne.s32.totalorder %s95, %s96
      %p110 = scmp.eq.s32.totalorder %s48, 1
      %p111 = por %p109, %p110
      %p113 = scmp.ne.s32.totalorder %s96, %s112
      %p114 = scmp.eq.s32.totalorder %s48, 0
      %p115 = por %p113, %p114
      %s117 = sadd.s32 %s116, 1
      %p120 = scmp.eq.s32.totalorder %s42, 1
      %p121 = scmp.ne.s32.totalorder %s116, %s118
      %p122 = scmp.eq.s32.totalorder %s42, 0
      %p123 = por %p121, %p122
      %p124 = scmp.ne.s32.totalorder %s116, %s118
      %p125 = scmp.eq.s32.totalorder %s47, 1
      %p126 = por %p124, %p125
      %p127 = scmp.ne.s32.totalorder %s118, %s119
      %p128 = scmp.eq.s32.totalorder %s47, 0
      %p129 = por %p127, %p128
      %p130 = scmp.ne.s32.totalorder %s118, %s119
      %p131 = scmp.eq.s32.totalorder %s48, 1
      %p132 = por %p130, %p131
      %p134 = scmp.ne.s32.totalorder %s119, %s133
      %p135 = scmp.eq.s32.totalorder %s48, 0
      %p136 = por %p134, %p135
      %s138 = sadd.s32 %s137, 1
      %p141 = scmp.eq.s32.totalorder %s42, 1
      %p142 = scmp.ne.s32.totalorder %s137, %s139
      %p143 = scmp.eq.s32.totalorder %s42, 0
      %p144 = por %p142, %p143
      %p145 = scmp.ne.s32.totalorder %s137, %s139
      %p146 = scmp.eq.s32.totalorder %s47, 1
      %p147 = por %p145, %p146
      %p148 = scmp.ne.s32.totalorder %s139, %s140
      %p149 = scmp.eq.s32.totalorder %s47, 0
      %p150 = por %p148, %p149
      %p151 = scmp.ne.s32.totalorder %s139, %s140
      %p152 = scmp.eq.s32.totalorder %s48, 1
      %p153 = por %p151, %p152
      %p155 = scmp.ne.s32.totalorder %s140, %s154
      %p156 = scmp.eq.s32.totalorder %s48, 0
      %p157 = por %p155, %p156
      %s159 = sadd.s32 %s158, 1
      %p162 = scmp.eq.s32.totalorder %s42, 1
      %p163 = scmp.ne.s32.totalorder %s158, %s160
      %p164 = scmp.eq.s32.totalorder %s42, 0
      %p165 = por %p163, %p164
      %p166 = scmp.ne.s32.totalorder %s158, %s160
      %p167 = scmp.eq.s32.totalorder %s47, 1
      %p168 = por %p166, %p167
      %p169 = scmp.ne.s32.totalorder %s160, %s161
      %p170 = scmp.eq.s32.totalorder %s47, 0
      %p171 = por %p169, %p170
      %p172 = scmp.ne.s32.totalorder %s160, %s161
      %p173 = scmp.eq.s32.totalorder %s48, 1
      %p174 = por %p172, %p173
      %p176 = scmp.ne.s32.totalorder %s161, %s175
      %p177 = scmp.eq.s32.totalorder %s48, 0
      %p178 = por %p176, %p177
      %s180 = sadd.s32 %s179, 1
      %p183 = scmp.eq.s32.totalorder %s42, 1
      %p184 = scmp.ne.s32.totalorder %s179, %s181
      %p185 = scmp.eq.s32.totalorder %s42, 0
      %p186 = por %p184, %p185
      %p187 = scmp.ne.s32.totalorder %s179, %s181
      %p188 = scmp.eq.s32.totalorder %s47, 1
      %p189 = por %p187, %p188
      %p190 = scmp.ne.s32.totalorder %s181, %s182
      %p191 = scmp.eq.s32.totalorder %s47, 0
      %p192 = por %p190, %p191
      %p193 = scmp.ne.s32.totalorder %s181, %s182
      %p194 = scmp.eq.s32.totalorder %s48, 1
      %p195 = por %p193, %p194
      %p197 = scmp.ne.s32.totalorder %s182, %s196
      %p198 = scmp.eq.s32.totalorder %s48, 0
      %p199 = por %p197, %p198
      %s201 = sadd.s32 %s200, 1
      %p204 = scmp.eq.s32.totalorder %s42, 1
      %p205 = scmp.ne.s32.totalorder %s200, %s202
      %p206 = scmp.eq.s32.totalorder %s42, 0
      %p207 = por %p205, %p206
      %p208 = scmp.ne.s32.totalorder %s200, %s202
      %p209 = scmp.eq.s32.totalorder %s47, 1
      %p210 = por %p208, %p209
      %p211 = scmp.ne.s32.totalorder %s202, %s203
      %p212 = scmp.eq.s32.totalorder %s47, 0
      %p213 = por %p211, %p212
      %p214 = scmp.ne.s32.totalorder %s202, %s203
      %p215 = scmp.eq.s32.totalorder %s48, 1
      %p216 = por %p214, %p215
      %p218 = scmp.ne.s32.totalorder %s203, %s217
      %p219 = scmp.eq.s32.totalorder %s48, 0
      %p220 = por %p218, %p219
      %s221 = ssub.s32 %s49, %s61
      %s222 = ssub.s32 %s50, %s57
      %s223 = sor.u32 %s221, %s222
      %p224 = scmp.eq.s32.totalorder %s223, 0
      %s226 = sadd.s32 %s225, 1
      %s227 = scalar_select %p224, %s225, %s226
      %p230 = pneg %p224
      %p231 = scmp.eq.s32.totalorder %s42, 1
      %p232 = por %p230, %p231
      %p233 = scmp.ne.s32.totalorder %s225, %s228
      %p234 = scmp.eq.s32.totalorder %s42, 0
      %p235 = por %p233, %p234
      %p236 = scmp.ne.s32.totalorder %s225, %s228
      %p237 = scmp.eq.s32.totalorder %s47, 1
      %p238 = por %p236, %p237
      %p239 = scmp.ne.s32.totalorder %s228, %s229
      %p240 = scmp.eq.s32.totalorder %s47, 0
      %p241 = por %p239, %p240
      %p242 = scmp.ne.s32.totalorder %s228, %s229
      %p243 = scmp.eq.s32.totalorder %s48, 1
      %p244 = por %p242, %p243
      %p246 = scmp.ne.s32.totalorder %s229, %s245
      %p247 = scmp.eq.s32.totalorder %s48, 0
      %p248 = por %p246, %p247
      %p249 = scmp.le.s32.totalorder 1, %s42
      %p250 = scmp.lt.s32.totalorder %s42, 3
      %p251 = pnand %p249, %p250
      %p252 = pneg %p251
      // Predicated region
      $region9: #{tpu_custom_call.1} parent=5 // pred_check
        _
      $region10: #{tpu_custom_call.1} parent=5 // pred_check_branch
        %254 = sbr.rel (%p251) target = $region12
      $region11: #{tpu_custom_call.1} parent=5 // pred_region
        %s255 = ssub.s32 %s42, 1
        // Predicated region
        $region13: #{tpu_custom_call.1} parent=11 // pred_check
          %p256 = pneg %p129
        $region14: #{tpu_custom_call.1} parent=11 // pred_check_branch
          %258 = sbr.rel (%p256) target = $region16
        $region15: #{tpu_custom_call.1} parent=11 // pred_region
          _
        $region16: #{tpu_custom_call.1} parent=11 // pred_fallthru
          _
        // Predicated region
        $region17: #{tpu_custom_call.1} parent=11 // pred_check
          %p259 = pneg %p150
        $region18: #{tpu_custom_call.1} parent=11 // pred_check_branch
          %261 = sbr.rel (%p259) target = $region20
        $region19: #{tpu_custom_call.1} parent=11 // pred_region
          _
        $region20: #{tpu_custom_call.1} parent=11 // pred_fallthru
          _
        // Predicated region
        $region21: #{tpu_custom_call.1} parent=11 // pred_check
          %p262 = pneg %p171
        $region22: #{tpu_custom_call.1} parent=11 // pred_check_branch
          %264 = sbr.rel (%p262) target = $region24
        $region23: #{tpu_custom_call.1} parent=11 // pred_region
          _
        $region24: #{tpu_custom_call.1} parent=11 // pred_fallthru
          _
        // Predicated region
        $region25: #{tpu_custom_call.1} parent=11 // pred_check
          %p265 = pneg %p192
        $region26: #{tpu_custom_call.1} parent=11 // pred_check_branch
          %267 = sbr.rel (%p265) target = $region28
        $region27: #{tpu_custom_call.1} parent=11 // pred_region
          _
        $region28: #{tpu_custom_call.1} parent=11 // pred_fallthru
          _
        // Predicated region
        $region29: #{tpu_custom_call.1} parent=11 // pred_check
          %p268 = pneg %p213
        $region30: #{tpu_custom_call.1} parent=11 // pred_check_branch
          %270 = sbr.rel (%p268) target = $region32
        $region31: #{tpu_custom_call.1} parent=11 // pred_region
          _
        $region32: #{tpu_custom_call.1} parent=11 // pred_fallthru
          _
      $region12: #{tpu_custom_call.1} parent=5 // pred_fallthru
        _
      %p271 = scmp.lt.s32.totalorder %s42, 2
      // Predicated region
      $region33: #{tpu_custom_call.1} parent=5 // pred_check
        %p272 = pneg %p271
      $region34: #{tpu_custom_call.1} parent=5 // pred_check_branch
        %274 = sbr.rel (%p272) target = $region36
      $region35: #{tpu_custom_call.1} parent=5 // pred_region
        // Predicated region
        $region37: #{tpu_custom_call.1} parent=35 // pred_check
          %p275 = pneg %p76
        $region38: #{tpu_custom_call.1} parent=35 // pred_check_branch
          %277 = sbr.rel (%p275) target = $region40
        $region39: #{tpu_custom_call.1} parent=35 // pred_region
          %s278 = sand.u32 %s66, 1
          %s279 = scalar_lea.sflag [#allocation10], %s278
          %s280 = sand.u32 %s66, 1
          %s281 = smul.addr %s280, 128
          %s282 = scalar_lea.vmem [#allocation9], %s281
          %s283 = smul.u32 32, %s50
          %285 = vsyncadd %s279, 0
          %s286 = smul.addr %s49, 32
          %s287 = sadd.s32 %s283, %s286
          %s288 = smul.addr %s287, 4
          %s289 = scalar_lea.hbm %s4, %s288
          %s291 = sshll.u32 %s289, 4
          %s292 = int_to_ptr.hbm [resolvable:$true] %s291
          %s293 = sshll.u32 %s282, 4
          %s294 = int_to_ptr.vmem [resolvable:$true] %s293
          %296 = dma.hbm_to_vmem [thread:$0]  %s292, 2048, %s294, %s279
        $region40: #{tpu_custom_call.1} parent=35 // pred_fallthru
          _
        // Predicated region
        $region41: #{tpu_custom_call.1} parent=35 // pred_check
          %p297 = pneg %p102
        $region42: #{tpu_custom_call.1} parent=35 // pred_check_branch
          %299 = sbr.rel (%p297) target = $region44
        $region43: #{tpu_custom_call.1} parent=35 // pred_region
          %p300 = scmp.lt.s32.totalorder %s49, 1
          %s301 = scalar_select %p300, %s49, 1
          %s302 = smul.addr %s301, 8
          %s303 = smul.addr %s302, 8
          %s304 = scalar_lea.vmem %s5, %s303
        $region44: #{tpu_custom_call.1} parent=35 // pred_fallthru
          _
      $region36: #{tpu_custom_call.1} parent=5 // pred_fallthru
        _
      %p305 = scmp.le.s32.totalorder 1, %s42
      %p306 = scmp.lt.s32.totalorder %s42, 3
      %p307 = pnand %p305, %p306
      %p308 = pneg %p307
      // Predicated region
      $region45: #{tpu_custom_call.1} parent=5 // pred_check
        _
      $region46: #{tpu_custom_call.1} parent=5 // pred_check_branch
        %310 = sbr.rel (%p307) target = $region48
      $region47: #{tpu_custom_call.1} parent=5 // pred_region
        %s311 = ssub.s32 %s42, 1
        %s312 = sand.u32 %s69, 1
        %s313 = scalar_lea.sflag [#allocation10], %s312
        %s314 = sand.u32 %s69, 1
        %s315 = smul.addr %s314, 128
        %s316 = scalar_lea.vmem [#allocation9], %s315
        // Predicated region
        $region49: #{tpu_custom_call.1} parent=47 // pred_check
          %p317 = pneg %p82
        $region50: #{tpu_custom_call.1} parent=47 // pred_check_branch
          %319 = sbr.rel (%p317) target = $region52
        $region51: #{tpu_custom_call.1} parent=47 // pred_region
          %321 = dma.done %s313, 2048
        $region52: #{tpu_custom_call.1} parent=47 // pred_fallthru
          _
        %s322 = sand.u32 %s69, 1
        %s323 = scalar_lea.sflag [#allocation10], %s322
        %s324 = sand.u32 %s69, 1
        %s325 = smul.addr %s324, 128
        %s326 = scalar_lea.vmem [#allocation9], %s325
        %p327 = pneg %p82
        %p328 = pneg %p79
        %p329 = scmp.lt.s32.totalorder %s51, 1
        %s330 = scalar_select %p329, %s51, 1
        %s331 = smul.addr %s330, 8
        %s332 = smul.addr %s331, 8
        %s333 = scalar_lea.vmem %s5, %s332
        %p334 = pneg %p108
        %p335 = pneg %p105
        %p336 = pneg %p129
        %p337 = pneg %p126
        %p338 = pneg %p150
        %p339 = pneg %p147
        %p340 = pneg %p171
        %p341 = pneg %p168
        %p342 = pneg %p192
        %p343 = pneg %p189
        %p344 = pneg %p213
        %p345 = pneg %p210
        %p346 = pneg %p241
        %p347 = pneg %p238
        %s348 = sand.u32 %s228, 1
        %s349 = scalar_lea.sflag [#allocation11], %s348
        %s350 = sand.u32 %s228, 1
        %s351 = smul.addr %s350, 128
        %s352 = scalar_lea.vmem [#allocation12], %s351
        %s353 = smul.u32 32, %s52
        %p354 = scmp.lt.s32.totalorder %s51, 1
        %s355 = scalar_select %p354, %s51, 1
        %s356 = smul.addr %s355, 8
        %s357 = smul.addr %s356, 8
        %s358 = scalar_lea.vmem %s5, %s357
        %s359 = smul.u32 32, %s52
        %p360 = scmp.eq.s32.totalorder %s52, 0
        // Predicated region
        $region53: #{tpu_custom_call.1} parent=47 // pred_check
          %p361 = pneg %p360
        $region54: #{tpu_custom_call.1} parent=47 // pred_check_branch
          %363 = sbr.rel (%p361) target = $region56
        $region55: #{tpu_custom_call.1} parent=47 // pred_region
          %v364 = vld [vmem:[%s7] sm:$0xff]
          %v365 = vld [vmem:[%s8] sm:$0xff]
          %v366 = vld [vmem:[%s9] sm:$0xff]
          %v367 = vld [vmem:[%s9 + $0x8] sm:$0xff]
          %v368 = vld [vmem:[%s9 + $0x10] sm:$0xff]
          %v369 = vld [vmem:[%s9 + $0x18] sm:$0xff]
          %v370 = vld [vmem:[%s9 + $0x20] sm:$0xff]
          %v371 = vld [vmem:[%s9 + $0x28] sm:$0xff]
          %v372 = vld [vmem:[%s9 + $0x30] sm:$0xff]
          %v373 = vld [vmem:[%s9 + $0x38] sm:$0xff]
          %v374 = vld [vmem:[%s9 + $0x40] sm:$0xff]
          %v375 = vld [vmem:[%s9 + $0x48] sm:$0xff]
          %v376 = vld [vmem:[%s9 + $0x50] sm:$0xff]
          %v377 = vld [vmem:[%s9 + $0x58] sm:$0xff]
          %v378 = vld [vmem:[%s9 + $0x60] sm:$0xff]
          %v379 = vld [vmem:[%s9 + $0x68] sm:$0xff]
          %v380 = vld [vmem:[%s9 + $0x70] sm:$0xff]
          %v381 = vld [vmem:[%s9 + $0x78] sm:$0xff]
          %v382 = vld [vmem:[%s358] sm:$0x3f]
          %384 = vset.pattern.permute.xlu0 0
          %385 = vperm.xlu0 %384, %v365
          %v386 = vpop.permute.xlu0 %385
          %vm388 = vcmask 48128
          %v390 = vsel %vm388, %v364, 0
          %vm392 = vcmask 1045504
          %v394 = vsel %vm392, %v382, 0
          %396 = vmatpush.msra.mxu0 0.0
          %397 = vmatpush.msra.mxu0 0.0
          %398 = vmatpush.msra.mxu0 0.0
          %399 = vmatpush.msra.mxu0 0.0
          %400 = vmatpush.msra.mxu0 0.0
          %401 = vmatpush.msra.mxu0 0.0
          %402 = vmatpush.msra.mxu0 0.0
          %403 = vmatpush.msra.mxu0 0.0
          %404 = vmatpush.msra.mxu0 0.0
          %405 = vmatpush.msra.mxu0 0.0
          %406 = vmatpush.msra.mxu0 0.0
          %407 = vmatpush.msra.mxu0 0.0
          %408 = vmatpush.msra.mxu0 0.0
          %409 = vmatpush.msra.mxu0 0.0
          %410 = vmatpush.msra.mxu0 0.0
          %411 = vmatpush.msra.mxu0 %v394
          %412 = vmatmul.f32.gmra.mxu0 %v390
          %v413 = vpop.f32.mrf.mxu0
          %v414 = vadd.f32 %v386, %v413
          %415 = vdwg.mxu0
          %vm416 = vcmask 523264
          %v418 = vsel %vm416, %v414, 0
          %420 = vmatpush.msra.mxu0 0.0
          %421 = vmatpush.msra.mxu0 0.0
          %422 = vmatpush.msra.mxu0 0.0
          %423 = vmatpush.msra.mxu0 0.0
          %424 = vmatpush.msra.mxu0 0.0
          %425 = vmatpush.msra.mxu0 0.0
          %426 = vmatpush.msra.mxu0 0.0
          %427 = vmatpush.msra.mxu0 0.0
          %428 = vmatpush.msra.mxu0 %v380
          %429 = vmatpush.msra.mxu0 %v378
          %430 = vmatpush.msra.mxu0 %v376
          %431 = vmatpush.msra.mxu0 %v374
          %432 = vmatpush.msra.mxu0 %v372
          %433 = vmatpush.msra.mxu0 %v370
          %434 = vmatpush.msra.mxu0 %v368
          %435 = vmatpush.msra.mxu0 %v366
          %436 = vmatmul.f32.gmra.mxu0 %v418
          %v437 = vpop.f32.mrf.mxu0
          %v438 = vadd.f32 0.0, %v437
          %439 = vdwg.mxu0
          %440 = vmatpush.msra.mxu0 0.0
          %441 = vmatpush.msra.mxu0 0.0
          %442 = vmatpush.msra.mxu0 0.0
          %443 = vmatpush.msra.mxu0 0.0
          %444 = vmatpush.msra.mxu0 0.0
          %445 = vmatpush.msra.mxu0 0.0
          %446 = vmatpush.msra.mxu0 0.0
          %447 = vmatpush.msra.mxu0 0.0
          %448 = vmatpush.msra.mxu0 %v381
          %449 = vmatpush.msra.mxu0 %v379
          %450 = vmatpush.msra.mxu0 %v377
          %451 = vmatpush.msra.mxu0 %v375
          %452 = vmatpush.msra.mxu0 %v373
          %453 = vmatpush.msra.mxu0 %v371
          %454 = vmatpush.msra.mxu0 %v369
          %455 = vmatpush.msra.mxu0 %v367
          %456 = vmatmul.f32.gmra.mxu0 %v418
          %v457 = vpop.f32.mrf.mxu0
          %v458 = vadd.f32 0.0, %v457
          %459 = vdwg.mxu0
          %460 = vst [vmem:[#allocation2] sm:$0xff] %v438
          %461 = vst [vmem:[#allocation2 + $0x8] sm:$0xff] %v458
          %s462 = scalar_lea.vmem %s358, 8
          %v463 = vld [vmem:[%s462] sm:$0x3f]
          %v465 = vsel %vm392, %v463, 0
          %467 = vmatpush.msra.mxu0 0.0
          %468 = vmatpush.msra.mxu0 0.0
          %469 = vmatpush.msra.mxu0 0.0
          %470 = vmatpush.msra.mxu0 0.0
          %471 = vmatpush.msra.mxu0 0.0
          %472 = vmatpush.msra.mxu0 0.0
          %473 = vmatpush.msra.mxu0 0.0
          %474 = vmatpush.msra.mxu0 0.0
          %475 = vmatpush.msra.mxu0 0.0
          %476 = vmatpush.msra.mxu0 0.0
          %477 = vmatpush.msra.mxu0 0.0
          %478 = vmatpush.msra.mxu0 0.0
          %479 = vmatpush.msra.mxu0 0.0
          %480 = vmatpush.msra.mxu0 0.0
          %481 = vmatpush.msra.mxu0 0.0
          %482 = vmatpush.msra.mxu0 %v465
          %483 = vmatmul.f32.gmra.mxu0 %v390
          %v484 = vpop.f32.mrf.mxu0
          %v485 = vadd.f32 %v386, %v484
          %486 = vdwg.mxu0
          %v488 = vsel %vm416, %v485, 0
          %490 = vmatpush.msra.mxu0 0.0
          %491 = vmatpush.msra.mxu0 0.0
          %492 = vmatpush.msra.mxu0 0.0
          %493 = vmatpush.msra.mxu0 0.0
          %494 = vmatpush.msra.mxu0 0.0
          %495 = vmatpush.msra.mxu0 0.0
          %496 = vmatpush.msra.mxu0 0.0
          %497 = vmatpush.msra.mxu0 0.0
          %498 = vmatpush.msra.mxu0 %v380
          %499 = vmatpush.msra.mxu0 %v378
          %500 = vmatpush.msra.mxu0 %v376
          %501 = vmatpush.msra.mxu0 %v374
          %502 = vmatpush.msra.mxu0 %v372
          %503 = vmatpush.msra.mxu0 %v370
          %504 = vmatpush.msra.mxu0 %v368
          %505 = vmatpush.msra.mxu0 %v366
          %506 = vmatmul.f32.gmra.mxu0 %v488
          %v507 = vpop.f32.mrf.mxu0
          %v508 = vadd.f32 0.0, %v507
          %509 = vdwg.mxu0
          %510 = vmatpush.msra.mxu0 0.0
          %511 = vmatpush.msra.mxu0 0.0
          %512 = vmatpush.msra.mxu0 0.0
          %513 = vmatpush.msra.mxu0 0.0
          %514 = vmatpush.msra.mxu0 0.0
          %515 = vmatpush.msra.mxu0 0.0
          %516 = vmatpush.msra.mxu0 0.0
          %517 = vmatpush.msra.mxu0 0.0
          %518 = vmatpush.msra.mxu0 %v381
          %519 = vmatpush.msra.mxu0 %v379
          %520 = vmatpush.msra.mxu0 %v377
          %521 = vmatpush.msra.mxu0 %v375
          %522 = vmatpush.msra.mxu0 %v373
          %523 = vmatpush.msra.mxu0 %v371
          %524 = vmatpush.msra.mxu0 %v369
          %525 = vmatpush.msra.mxu0 %v367
          %526 = vmatmul.f32.gmra.mxu0 %v488
          %v527 = vpop.f32.mrf.mxu0
          %v528 = vadd.f32 0.0, %v527
          %529 = vdwg.mxu0
          %s530 = scalar_lea.vmem [#allocation2], 16
          %531 = vst [vmem:[%s530] sm:$0xff] %v508
          %532 = vst [vmem:[%s530 + $0x8] sm:$0xff] %v528
          %s533 = scalar_lea.vmem %s358, 16
          %v534 = vld [vmem:[%s533] sm:$0x3f]
          %v536 = vsel %vm392, %v534, 0
          %538 = vmatpush.msra.mxu0 0.0
          %539 = vmatpush.msra.mxu0 0.0
          %540 = vmatpush.msra.mxu0 0.0
          %541 = vmatpush.msra.mxu0 0.0
          %542 = vmatpush.msra.mxu0 0.0
          %543 = vmatpush.msra.mxu0 0.0
          %544 = vmatpush.msra.mxu0 0.0
          %545 = vmatpush.msra.mxu0 0.0
          %546 = vmatpush.msra.mxu0 0.0
          %547 = vmatpush.msra.mxu0 0.0
          %548 = vmatpush.msra.mxu0 0.0
          %549 = vmatpush.msra.mxu0 0.0
          %550 = vmatpush.msra.mxu0 0.0
          %551 = vmatpush.msra.mxu0 0.0
          %552 = vmatpush.msra.mxu0 0.0
          %553 = vmatpush.msra.mxu0 %v536
          %554 = vmatmul.f32.gmra.mxu0 %v390
          %v555 = vpop.f32.mrf.mxu0
          %v556 = vadd.f32 %v386, %v555
          %557 = vdwg.mxu0
          %v559 = vsel %vm416, %v556, 0
          %561 = vmatpush.msra.mxu0 0.0
          %562 = vmatpush.msra.mxu0 0.0
          %563 = vmatpush.msra.mxu0 0.0
          %564 = vmatpush.msra.mxu0 0.0
          %565 = vmatpush.msra.mxu0 0.0
          %566 = vmatpush.msra.mxu0 0.0
          %567 = vmatpush.msra.mxu0 0.0
          %568 = vmatpush.msra.mxu0 0.0
          %569 = vmatpush.msra.mxu0 %v380
          %570 = vmatpush.msra.mxu0 %v378
          %571 = vmatpush.msra.mxu0 %v376
          %572 = vmatpush.msra.mxu0 %v374
          %573 = vmatpush.msra.mxu0 %v372
          %574 = vmatpush.msra.mxu0 %v370
          %575 = vmatpush.msra.mxu0 %v368
          %576 = vmatpush.msra.mxu0 %v366
          %577 = vmatmul.f32.gmra.mxu0 %v559
          %v578 = vpop.f32.mrf.mxu0
          %v579 = vadd.f32 0.0, %v578
          %580 = vdwg.mxu0
          %581 = vmatpush.msra.mxu0 0.0
          %582 = vmatpush.msra.mxu0 0.0
          %583 = vmatpush.msra.mxu0 0.0
          %584 = vmatpush.msra.mxu0 0.0
          %585 = vmatpush.msra.mxu0 0.0
          %586 = vmatpush.msra.mxu0 0.0
          %587 = vmatpush.msra.mxu0 0.0
          %588 = vmatpush.msra.mxu0 0.0
          %589 = vmatpush.msra.mxu0 %v381
          %590 = vmatpush.msra.mxu0 %v379
          %591 = vmatpush.msra.mxu0 %v377
          %592 = vmatpush.msra.mxu0 %v375
          %593 = vmatpush.msra.mxu0 %v373
          %594 = vmatpush.msra.mxu0 %v371
          %595 = vmatpush.msra.mxu0 %v369
          %596 = vmatpush.msra.mxu0 %v367
          %597 = vmatmul.f32.gmra.mxu0 %v559
          %v598 = vpop.f32.mrf.mxu0
          %v599 = vadd.f32 0.0, %v598
          %600 = vdwg.mxu0
          %s601 = scalar_lea.vmem [#allocation2], 32
          %602 = vst [vmem:[%s601] sm:$0xff] %v579
          %603 = vst [vmem:[%s601 + $0x8] sm:$0xff] %v599
          %s604 = scalar_lea.vmem %s358, 24
          %v605 = vld [vmem:[%s604] sm:$0x3f]
          %v607 = vsel %vm392, %v605, 0
          %609 = vmatpush.msra.mxu0 0.0
          %610 = vmatpush.msra.mxu0 0.0
          %611 = vmatpush.msra.mxu0 0.0
          %612 = vmatpush.msra.mxu0 0.0
          %613 = vmatpush.msra.mxu0 0.0
          %614 = vmatpush.msra.mxu0 0.0
          %615 = vmatpush.msra.mxu0 0.0
          %616 = vmatpush.msra.mxu0 0.0
          %617 = vmatpush.msra.mxu0 0.0
          %618 = vmatpush.msra.mxu0 0.0
          %619 = vmatpush.msra.mxu0 0.0
          %620 = vmatpush.msra.mxu0 0.0
          %621 = vmatpush.msra.mxu0 0.0
          %622 = vmatpush.msra.mxu0 0.0
          %623 = vmatpush.msra.mxu0 0.0
          %624 = vmatpush.msra.mxu0 %v607
          %625 = vmatmul.f32.gmra.mxu0 %v390
          %v626 = vpop.f32.mrf.mxu0
          %v627 = vadd.f32 %v386, %v626
          %628 = vdwg.mxu0
          %v630 = vsel %vm416, %v627, 0
          %632 = vmatpush.msra.mxu0 0.0
          %633 = vmatpush.msra.mxu0 0.0
          %634 = vmatpush.msra.mxu0 0.0
          %635 = vmatpush.msra.mxu0 0.0
          %636 = vmatpush.msra.mxu0 0.0
          %637 = vmatpush.msra.mxu0 0.0
          %638 = vmatpush.msra.mxu0 0.0
          %639 = vmatpush.msra.mxu0 0.0
          %640 = vmatpush.msra.mxu0 %v380
          %641 = vmatpush.msra.mxu0 %v378
          %642 = vmatpush.msra.mxu0 %v376
          %643 = vmatpush.msra.mxu0 %v374
          %644 = vmatpush.msra.mxu0 %v372
          %645 = vmatpush.msra.mxu0 %v370
          %646 = vmatpush.msra.mxu0 %v368
          %647 = vmatpush.msra.mxu0 %v366
          %648 = vmatmul.f32.gmra.mxu0 %v630
          %v649 = vpop.f32.mrf.mxu0
          %v650 = vadd.f32 0.0, %v649
          %651 = vdwg.mxu0
          %652 = vmatpush.msra.mxu0 0.0
          %653 = vmatpush.msra.mxu0 0.0
          %654 = vmatpush.msra.mxu0 0.0
          %655 = vmatpush.msra.mxu0 0.0
          %656 = vmatpush.msra.mxu0 0.0
          %657 = vmatpush.msra.mxu0 0.0
          %658 = vmatpush.msra.mxu0 0.0
          %659 = vmatpush.msra.mxu0 0.0
          %660 = vmatpush.msra.mxu0 %v381
          %661 = vmatpush.msra.mxu0 %v379
          %662 = vmatpush.msra.mxu0 %v377
          %663 = vmatpush.msra.mxu0 %v375
          %664 = vmatpush.msra.mxu0 %v373
          %665 = vmatpush.msra.mxu0 %v371
          %666 = vmatpush.msra.mxu0 %v369
          %667 = vmatpush.msra.mxu0 %v367
          %668 = vmatmul.f32.gmra.mxu0 %v630
          %v669 = vpop.f32.mrf.mxu0
          %v670 = vadd.f32 0.0, %v669
          %671 = vdwg.mxu0
          %s672 = scalar_lea.vmem [#allocation2], 48
          %673 = vst [vmem:[%s672] sm:$0xff] %v650
          %674 = vst [vmem:[%s672 + $0x8] sm:$0xff] %v670
          %s675 = scalar_lea.vmem %s358, 32
          %v676 = vld [vmem:[%s675] sm:$0x3f]
          %v678 = vsel %vm392, %v676, 0
          %680 = vmatpush.msra.mxu0 0.0
          %681 = vmatpush.msra.mxu0 0.0
          %682 = vmatpush.msra.mxu0 0.0
          %683 = vmatpush.msra.mxu0 0.0
          %684 = vmatpush.msra.mxu0 0.0
          %685 = vmatpush.msra.mxu0 0.0
          %686 = vmatpush.msra.mxu0 0.0
          %687 = vmatpush.msra.mxu0 0.0
          %688 = vmatpush.msra.mxu0 0.0
          %689 = vmatpush.msra.mxu0 0.0
          %690 = vmatpush.msra.mxu0 0.0
          %691 = vmatpush.msra.mxu0 0.0
          %692 = vmatpush.msra.mxu0 0.0
          %693 = vmatpush.msra.mxu0 0.0
          %694 = vmatpush.msra.mxu0 0.0
          %695 = vmatpush.msra.mxu0 %v678
          %696 = vmatmul.f32.gmra.mxu0 %v390
          %v697 = vpop.f32.mrf.mxu0
          %v698 = vadd.f32 %v386, %v697
          %699 = vdwg.mxu0
          %v701 = vsel %vm416, %v698, 0
          %703 = vmatpush.msra.mxu0 0.0
          %704 = vmatpush.msra.mxu0 0.0
          %705 = vmatpush.msra.mxu0 0.0
          %706 = vmatpush.msra.mxu0 0.0
          %707 = vmatpush.msra.mxu0 0.0
          %708 = vmatpush.msra.mxu0 0.0
          %709 = vmatpush.msra.mxu0 0.0
          %710 = vmatpush.msra.mxu0 0.0
          %711 = vmatpush.msra.mxu0 %v380
          %712 = vmatpush.msra.mxu0 %v378
          %713 = vmatpush.msra.mxu0 %v376
          %714 = vmatpush.msra.mxu0 %v374
          %715 = vmatpush.msra.mxu0 %v372
          %716 = vmatpush.msra.mxu0 %v370
          %717 = vmatpush.msra.mxu0 %v368
          %718 = vmatpush.msra.mxu0 %v366
          %719 = vmatmul.f32.gmra.mxu0 %v701
          %v720 = vpop.f32.mrf.mxu0
          %v721 = vadd.f32 0.0, %v720
          %722 = vdwg.mxu0
          %723 = vmatpush.msra.mxu0 0.0
          %724 = vmatpush.msra.mxu0 0.0
          %725 = vmatpush.msra.mxu0 0.0
          %726 = vmatpush.msra.mxu0 0.0
          %727 = vmatpush.msra.mxu0 0.0
          %728 = vmatpush.msra.mxu0 0.0
          %729 = vmatpush.msra.mxu0 0.0
          %730 = vmatpush.msra.mxu0 0.0
          %731 = vmatpush.msra.mxu0 %v381
          %732 = vmatpush.msra.mxu0 %v379
          %733 = vmatpush.msra.mxu0 %v377
          %734 = vmatpush.msra.mxu0 %v375
          %735 = vmatpush.msra.mxu0 %v373
          %736 = vmatpush.msra.mxu0 %v371
          %737 = vmatpush.msra.mxu0 %v369
          %738 = vmatpush.msra.mxu0 %v367
          %739 = vmatmul.f32.gmra.mxu0 %v701
          %v740 = vpop.f32.mrf.mxu0
          %v741 = vadd.f32 0.0, %v740
          %742 = vdwg.mxu0
          %s743 = scalar_lea.vmem [#allocation2], 64
          %744 = vst [vmem:[%s743] sm:$0xff] %v721
          %745 = vst [vmem:[%s743 + $0x8] sm:$0xff] %v741
          %s746 = scalar_lea.vmem %s358, 40
          %v747 = vld [vmem:[%s746] sm:$0x3f]
          %v749 = vsel %vm392, %v747, 0
          %751 = vmatpush.msra.mxu0 0.0
          %752 = vmatpush.msra.mxu0 0.0
          %753 = vmatpush.msra.mxu0 0.0
          %754 = vmatpush.msra.mxu0 0.0
          %755 = vmatpush.msra.mxu0 0.0
          %756 = vmatpush.msra.mxu0 0.0
          %757 = vmatpush.msra.mxu0 0.0
          %758 = vmatpush.msra.mxu0 0.0
          %759 = vmatpush.msra.mxu0 0.0
          %760 = vmatpush.msra.mxu0 0.0
          %761 = vmatpush.msra.mxu0 0.0
          %762 = vmatpush.msra.mxu0 0.0
          %763 = vmatpush.msra.mxu0 0.0
          %764 = vmatpush.msra.mxu0 0.0
          %765 = vmatpush.msra.mxu0 0.0
          %766 = vmatpush.msra.mxu0 %v749
          %767 = vmatmul.f32.gmra.mxu0 %v390
          %v768 = vpop.f32.mrf.mxu0
          %v769 = vadd.f32 %v386, %v768
          %770 = vdwg.mxu0
          %v772 = vsel %vm416, %v769, 0
          %774 = vmatpush.msra.mxu0 0.0
          %775 = vmatpush.msra.mxu0 0.0
          %776 = vmatpush.msra.mxu0 0.0
          %777 = vmatpush.msra.mxu0 0.0
          %778 = vmatpush.msra.mxu0 0.0
          %779 = vmatpush.msra.mxu0 0.0
          %780 = vmatpush.msra.mxu0 0.0
          %781 = vmatpush.msra.mxu0 0.0
          %782 = vmatpush.msra.mxu0 %v380
          %783 = vmatpush.msra.mxu0 %v378
          %784 = vmatpush.msra.mxu0 %v376
          %785 = vmatpush.msra.mxu0 %v374
          %786 = vmatpush.msra.mxu0 %v372
          %787 = vmatpush.msra.mxu0 %v370
          %788 = vmatpush.msra.mxu0 %v368
          %789 = vmatpush.msra.mxu0 %v366
          %790 = vmatmul.f32.gmra.mxu0 %v772
          %v791 = vpop.f32.mrf.mxu0
          %v792 = vadd.f32 0.0, %v791
          %793 = vdwg.mxu0
          %794 = vmatpush.msra.mxu0 0.0
          %795 = vmatpush.msra.mxu0 0.0
          %796 = vmatpush.msra.mxu0 0.0
          %797 = vmatpush.msra.mxu0 0.0
          %798 = vmatpush.msra.mxu0 0.0
          %799 = vmatpush.msra.mxu0 0.0
          %800 = vmatpush.msra.mxu0 0.0
          %801 = vmatpush.msra.mxu0 0.0
          %802 = vmatpush.msra.mxu0 %v381
          %803 = vmatpush.msra.mxu0 %v379
          %804 = vmatpush.msra.mxu0 %v377
          %805 = vmatpush.msra.mxu0 %v375
          %806 = vmatpush.msra.mxu0 %v373
          %807 = vmatpush.msra.mxu0 %v371
          %808 = vmatpush.msra.mxu0 %v369
          %809 = vmatpush.msra.mxu0 %v367
          %810 = vmatmul.f32.gmra.mxu0 %v772
          %v811 = vpop.f32.mrf.mxu0
          %v812 = vadd.f32 0.0, %v811
          %813 = vdwg.mxu0
          %s814 = scalar_lea.vmem [#allocation2], 80
          %815 = vst [vmem:[%s814] sm:$0xff] %v792
          %816 = vst [vmem:[%s814 + $0x8] sm:$0xff] %v812
          %s817 = scalar_lea.vmem %s358, 48
          %v818 = vld [vmem:[%s817] sm:$0x3f]
          %v820 = vsel %vm392, %v818, 0
          %822 = vmatpush.msra.mxu0 0.0
          %823 = vmatpush.msra.mxu0 0.0
          %824 = vmatpush.msra.mxu0 0.0
          %825 = vmatpush.msra.mxu0 0.0
          %826 = vmatpush.msra.mxu0 0.0
          %827 = vmatpush.msra.mxu0 0.0
          %828 = vmatpush.msra.mxu0 0.0
          %829 = vmatpush.msra.mxu0 0.0
          %830 = vmatpush.msra.mxu0 0.0
          %831 = vmatpush.msra.mxu0 0.0
          %832 = vmatpush.msra.mxu0 0.0
          %833 = vmatpush.msra.mxu0 0.0
          %834 = vmatpush.msra.mxu0 0.0
          %835 = vmatpush.msra.mxu0 0.0
          %836 = vmatpush.msra.mxu0 0.0
          %837 = vmatpush.msra.mxu0 %v820
          %838 = vmatmul.f32.gmra.mxu0 %v390
          %v839 = vpop.f32.mrf.mxu0
          %v840 = vadd.f32 %v386, %v839
          %841 = vdwg.mxu0
          %v843 = vsel %vm416, %v840, 0
          %845 = vmatpush.msra.mxu0 0.0
          %846 = vmatpush.msra.mxu0 0.0
          %847 = vmatpush.msra.mxu0 0.0
          %848 = vmatpush.msra.mxu0 0.0
          %849 = vmatpush.msra.mxu0 0.0
          %850 = vmatpush.msra.mxu0 0.0
          %851 = vmatpush.msra.mxu0 0.0
          %852 = vmatpush.msra.mxu0 0.0
          %853 = vmatpush.msra.mxu0 %v380
          %854 = vmatpush.msra.mxu0 %v378
          %855 = vmatpush.msra.mxu0 %v376
          %856 = vmatpush.msra.mxu0 %v374
          %857 = vmatpush.msra.mxu0 %v372
          %858 = vmatpush.msra.mxu0 %v370
          %859 = vmatpush.msra.mxu0 %v368
          %860 = vmatpush.msra.mxu0 %v366
          %861 = vmatmul.f32.gmra.mxu0 %v843
          %v862 = vpop.f32.mrf.mxu0
          %v863 = vadd.f32 0.0, %v862
          %864 = vdwg.mxu0
          %865 = vmatpush.msra.mxu0 0.0
          %866 = vmatpush.msra.mxu0 0.0
          %867 = vmatpush.msra.mxu0 0.0
          %868 = vmatpush.msra.mxu0 0.0
          %869 = vmatpush.msra.mxu0 0.0
          %870 = vmatpush.msra.mxu0 0.0
          %871 = vmatpush.msra.mxu0 0.0
          %872 = vmatpush.msra.mxu0 0.0
          %873 = vmatpush.msra.mxu0 %v381
          %874 = vmatpush.msra.mxu0 %v379
          %875 = vmatpush.msra.mxu0 %v377
          %876 = vmatpush.msra.mxu0 %v375
          %877 = vmatpush.msra.mxu0 %v373
          %878 = vmatpush.msra.mxu0 %v371
          %879 = vmatpush.msra.mxu0 %v369
          %880 = vmatpush.msra.mxu0 %v367
          %881 = vmatmul.f32.gmra.mxu0 %v843
          %v882 = vpop.f32.mrf.mxu0
          %v883 = vadd.f32 0.0, %v882
          %884 = vdwg.mxu0
          %s885 = scalar_lea.vmem [#allocation2], 96
          %886 = vst [vmem:[%s885] sm:$0xff] %v863
          %887 = vst [vmem:[%s885 + $0x8] sm:$0xff] %v883
          %s888 = scalar_lea.vmem %s358, 56
          %v889 = vld [vmem:[%s888] sm:$0x3f]
          %v891 = vsel %vm392, %v889, 0
          %893 = vmatpush.msra.mxu0 0.0
          %894 = vmatpush.msra.mxu0 0.0
          %895 = vmatpush.msra.mxu0 0.0
          %896 = vmatpush.msra.mxu0 0.0
          %897 = vmatpush.msra.mxu0 0.0
          %898 = vmatpush.msra.mxu0 0.0
          %899 = vmatpush.msra.mxu0 0.0
          %900 = vmatpush.msra.mxu0 0.0
          %901 = vmatpush.msra.mxu0 0.0
          %902 = vmatpush.msra.mxu0 0.0
          %903 = vmatpush.msra.mxu0 0.0
          %904 = vmatpush.msra.mxu0 0.0
          %905 = vmatpush.msra.mxu0 0.0
          %906 = vmatpush.msra.mxu0 0.0
          %907 = vmatpush.msra.mxu0 0.0
          %908 = vmatpush.msra.mxu0 %v891
          %909 = vmatmul.f32.gmra.mxu0 %v390
          %v910 = vpop.f32.mrf.mxu0
          %v911 = vadd.f32 %v386, %v910
          %912 = vdwg.mxu0
          %v914 = vsel %vm416, %v911, 0
          %916 = vmatpush.msra.mxu0 0.0
          %917 = vmatpush.msra.mxu0 0.0
          %918 = vmatpush.msra.mxu0 0.0
          %919 = vmatpush.msra.mxu0 0.0
          %920 = vmatpush.msra.mxu0 0.0
          %921 = vmatpush.msra.mxu0 0.0
          %922 = vmatpush.msra.mxu0 0.0
          %923 = vmatpush.msra.mxu0 0.0
          %924 = vmatpush.msra.mxu0 %v380
          %925 = vmatpush.msra.mxu0 %v378
          %926 = vmatpush.msra.mxu0 %v376
          %927 = vmatpush.msra.mxu0 %v374
          %928 = vmatpush.msra.mxu0 %v372
          %929 = vmatpush.msra.mxu0 %v370
          %930 = vmatpush.msra.mxu0 %v368
          %931 = vmatpush.msra.mxu0 %v366
          %932 = vmatmul.f32.gmra.mxu0 %v914
          %v933 = vpop.f32.mrf.mxu0
          %v934 = vadd.f32 0.0, %v933
          %935 = vdwg.mxu0
          %936 = vmatpush.msra.mxu0 0.0
          %937 = vmatpush.msra.mxu0 0.0
          %938 = vmatpush.msra.mxu0 0.0
          %939 = vmatpush.msra.mxu0 0.0
          %940 = vmatpush.msra.mxu0 0.0
          %941 = vmatpush.msra.mxu0 0.0
          %942 = vmatpush.msra.mxu0 0.0
          %943 = vmatpush.msra.mxu0 0.0
          %944 = vmatpush.msra.mxu0 %v381
          %945 = vmatpush.msra.mxu0 %v379
          %946 = vmatpush.msra.mxu0 %v377
          %947 = vmatpush.msra.mxu0 %v375
          %948 = vmatpush.msra.mxu0 %v373
          %949 = vmatpush.msra.mxu0 %v371
          %950 = vmatpush.msra.mxu0 %v369
          %951 = vmatpush.msra.mxu0 %v367
          %952 = vmatmul.f32.gmra.mxu0 %v914
          %v953 = vpop.f32.mrf.mxu0
          %v954 = vadd.f32 0.0, %v953
          %955 = vdwg.mxu0
          %s956 = scalar_lea.vmem [#allocation2], 112
          %957 = vst [vmem:[%s956] sm:$0xff] %v934
          %958 = vst [vmem:[%s956 + $0x8] sm:$0xff] %v954
        $region56: #{tpu_custom_call.1} parent=47 // pred_fallthru
          _
        %s959 = smul.u32 %s52, 16
        %s960 = sld [smem:[#allocation5 + %s959]]
        %s961 = sld [smem:[#allocation6 + %s959]]
        %s962 = sld [smem:[#allocation7 + %s959]]
        %s963 = ssub.f32 1.0, %s962
        %s964 = smul.u32 %s960, 2
        %s965 = smul.addr %s964, 8
        %s966 = scalar_lea.vmem [#allocation2], %s965
        %v967 = vld [vmem:[%s966] sm:$0xff]
        %v968 = vld [vmem:[%s966 + $0x8] sm:$0xff]
        %v969 = vstv %s963
        %v970 = vmul.f32 %v969, %v967
        %v971 = vmul.f32 %v969, %v968
        %s972 = smul.u32 %s961, 2
        %s973 = smul.addr %s972, 8
        %s974 = scalar_lea.vmem [#allocation2], %s973
        %v975 = vld [vmem:[%s974] sm:$0xff]
        %v976 = vld [vmem:[%s974 + $0x8] sm:$0xff]
        %v977 = vstv %s962
        %v978 = vmul.f32 %v977, %v975
        %v979 = vmul.f32 %v977, %v976
        %v980 = vadd.f32 %v970, %v978
        %v981 = vadd.f32 %v971, %v979
        %982 = vst [vmem:[#allocation3] sm:$0xff] %v980
        %983 = vst [vmem:[#allocation3 + $0x8] sm:$0xff] %v981
        %s984 = sadd.s32 %s959, 1
        %s985 = sld [smem:[#allocation5 + %s984]]
        %s986 = sld [smem:[#allocation6 + %s984]]
        %s987 = sld [smem:[#allocation7 + %s984]]
        %s988 = ssub.f32 1.0, %s987
        %s989 = smul.u32 %s985, 2
        %s990 = smul.addr %s989, 8
        %s991 = scalar_lea.vmem [#allocation2], %s990
        %v992 = vld [vmem:[%s991] sm:$0xff]
        %v993 = vld [vmem:[%s991 + $0x8] sm:$0xff]
        %v994 = vstv %s988
        %v995 = vmul.f32 %v994, %v992
        %v996 = vmul.f32 %v994, %v993
        %s997 = smul.u32 %s986, 2
        %s998 = smul.addr %s997, 8
        %s999 = scalar_lea.vmem [#allocation2], %s998
        %v1000 = vld [vmem:[%s999] sm:$0xff]
        %v1001 = vld [vmem:[%s999 + $0x8] sm:$0xff]
        %v1002 = vstv %s987
        %v1003 = vmul.f32 %v1002, %v1000
        %v1004 = vmul.f32 %v1002, %v1001
        %v1005 = vadd.f32 %v995, %v1003
        %v1006 = vadd.f32 %v996, %v1004
        %1007 = vst [vmem:[#allocation3 + $0x10] sm:$0xff] %v1005
        %1008 = vst [vmem:[#allocation3 + $0x18] sm:$0xff] %v1006
        %s1009 = sadd.s32 %s959, 2
        %s1010 = sld [smem:[#allocation5 + %s1009]]
        %s1011 = sld [smem:[#allocation6 + %s1009]]
        %s1012 = sld [smem:[#allocation7 + %s1009]]
        %s1013 = ssub.f32 1.0, %s1012
        %s1014 = smul.u32 %s1010, 2
        %s1015 = smul.addr %s1014, 8
        %s1016 = scalar_lea.vmem [#allocation2], %s1015
        %v1017 = vld [vmem:[%s1016] sm:$0xff]
        %v1018 = vld [vmem:[%s1016 + $0x8] sm:$0xff]
        %v1019 = vstv %s1013
        %v1020 = vmul.f32 %v1019, %v1017
        %v1021 = vmul.f32 %v1019, %v1018
        %s1022 = smul.u32 %s1011, 2
        %s1023 = smul.addr %s1022, 8
        %s1024 = scalar_lea.vmem [#allocation2], %s1023
        %v1025 = vld [vmem:[%s1024] sm:$0xff]
        %v1026 = vld [vmem:[%s1024 + $0x8] sm:$0xff]
        %v1027 = vstv %s1012
        %v1028 = vmul.f32 %v1027, %v1025
        %v1029 = vmul.f32 %v1027, %v1026
        %v1030 = vadd.f32 %v1020, %v1028
        %v1031 = vadd.f32 %v1021, %v1029
        %1032 = vst [vmem:[#allocation3 + $0x20] sm:$0xff] %v1030
        %1033 = vst [vmem:[#allocation3 + $0x28] sm:$0xff] %v1031
        %s1034 = sadd.s32 %s959, 3
        %s1035 = sld [smem:[#allocation5 + %s1034]]
        %s1036 = sld [smem:[#allocation6 + %s1034]]
        %s1037 = sld [smem:[#allocation7 + %s1034]]
        %s1038 = ssub.f32 1.0, %s1037
        %s1039 = smul.u32 %s1035, 2
        %s1040 = smul.addr %s1039, 8
        %s1041 = scalar_lea.vmem [#allocation2], %s1040
        %v1042 = vld [vmem:[%s1041] sm:$0xff]
        %v1043 = vld [vmem:[%s1041 + $0x8] sm:$0xff]
        %v1044 = vstv %s1038
        %v1045 = vmul.f32 %v1044, %v1042
        %v1046 = vmul.f32 %v1044, %v1043
        %s1047 = smul.u32 %s1036, 2
        %s1048 = smul.addr %s1047, 8
        %s1049 = scalar_lea.vmem [#allocation2], %s1048
        %v1050 = vld [vmem:[%s1049] sm:$0xff]
        %v1051 = vld [vmem:[%s1049 + $0x8] sm:$0xff]
        %v1052 = vstv %s1037
        %v1053 = vmul.f32 %v1052, %v1050
        %v1054 = vmul.f32 %v1052, %v1051
        %v1055 = vadd.f32 %v1045, %v1053
        %v1056 = vadd.f32 %v1046, %v1054
        %1057 = vst [vmem:[#allocation3 + $0x30] sm:$0xff] %v1055
        %1058 = vst [vmem:[#allocation3 + $0x38] sm:$0xff] %v1056
        %s1059 = sadd.s32 %s959, 4
        %s1060 = sld [smem:[#allocation5 + %s1059]]
        %s1061 = sld [smem:[#allocation6 + %s1059]]
        %s1062 = sld [smem:[#allocation7 + %s1059]]
        %s1063 = ssub.f32 1.0, %s1062
        %s1064 = smul.u32 %s1060, 2
        %s1065 = smul.addr %s1064, 8
        %s1066 = scalar_lea.vmem [#allocation2], %s1065
        %v1067 = vld [vmem:[%s1066] sm:$0xff]
        %v1068 = vld [vmem:[%s1066 + $0x8] sm:$0xff]
        %v1069 = vstv %s1063
        %v1070 = vmul.f32 %v1069, %v1067
        %v1071 = vmul.f32 %v1069, %v1068
        %s1072 = smul.u32 %s1061, 2
        %s1073 = smul.addr %s1072, 8
        %s1074 = scalar_lea.vmem [#allocation2], %s1073
        %v1075 = vld [vmem:[%s1074] sm:$0xff]
        %v1076 = vld [vmem:[%s1074 + $0x8] sm:$0xff]
        %v1077 = vstv %s1062
        %v1078 = vmul.f32 %v1077, %v1075
        %v1079 = vmul.f32 %v1077, %v1076
        %v1080 = vadd.f32 %v1070, %v1078
        %v1081 = vadd.f32 %v1071, %v1079
        %1082 = vst [vmem:[#allocation3 + $0x40] sm:$0xff] %v1080
        %1083 = vst [vmem:[#allocation3 + $0x48] sm:$0xff] %v1081
        %s1084 = sadd.s32 %s959, 5
        %s1085 = sld [smem:[#allocation5 + %s1084]]
        %s1086 = sld [smem:[#allocation6 + %s1084]]
        %s1087 = sld [smem:[#allocation7 + %s1084]]
        %s1088 = ssub.f32 1.0, %s1087
        %s1089 = smul.u32 %s1085, 2
        %s1090 = smul.addr %s1089, 8
        %s1091 = scalar_lea.vmem [#allocation2], %s1090
        %v1092 = vld [vmem:[%s1091] sm:$0xff]
        %v1093 = vld [vmem:[%s1091 + $0x8] sm:$0xff]
        %v1094 = vstv %s1088
        %v1095 = vmul.f32 %v1094, %v1092
        %v1096 = vmul.f32 %v1094, %v1093
        %s1097 = smul.u32 %s1086, 2
        %s1098 = smul.addr %s1097, 8
        %s1099 = scalar_lea.vmem [#allocation2], %s1098
        %v1100 = vld [vmem:[%s1099] sm:$0xff]
        %v1101 = vld [vmem:[%s1099 + $0x8] sm:$0xff]
        %v1102 = vstv %s1087
        %v1103 = vmul.f32 %v1102, %v1100
        %v1104 = vmul.f32 %v1102, %v1101
        %v1105 = vadd.f32 %v1095, %v1103
        %v1106 = vadd.f32 %v1096, %v1104
        %1107 = vst [vmem:[#allocation3 + $0x50] sm:$0xff] %v1105
        %1108 = vst [vmem:[#allocation3 + $0x58] sm:$0xff] %v1106
        %s1109 = sadd.s32 %s959, 6
        %s1110 = sld [smem:[#allocation5 + %s1109]]
        %s1111 = sld [smem:[#allocation6 + %s1109]]
        %s1112 = sld [smem:[#allocation7 + %s1109]]
        %s1113 = ssub.f32 1.0, %s1112
        %s1114 = smul.u32 %s1110, 2
        %s1115 = smul.addr %s1114, 8
        %s1116 = scalar_lea.vmem [#allocation2], %s1115
        %v1117 = vld [vmem:[%s1116] sm:$0xff]
        %v1118 = vld [vmem:[%s1116 + $0x8] sm:$0xff]
        %v1119 = vstv %s1113
        %v1120 = vmul.f32 %v1119, %v1117
        %v1121 = vmul.f32 %v1119, %v1118
        %s1122 = smul.u32 %s1111, 2
        %s1123 = smul.addr %s1122, 8
        %s1124 = scalar_lea.vmem [#allocation2], %s1123
        %v1125 = vld [vmem:[%s1124] sm:$0xff]
        %v1126 = vld [vmem:[%s1124 + $0x8] sm:$0xff]
        %v1127 = vstv %s1112
        %v1128 = vmul.f32 %v1127, %v1125
        %v1129 = vmul.f32 %v1127, %v1126
        %v1130 = vadd.f32 %v1120, %v1128
        %v1131 = vadd.f32 %v1121, %v1129
        %1132 = vst [vmem:[#allocation3 + $0x60] sm:$0xff] %v1130
        %1133 = vst [vmem:[#allocation3 + $0x68] sm:$0xff] %v1131
        %s1134 = sadd.s32 %s959, 7
        %s1135 = sld [smem:[#allocation5 + %s1134]]
        %s1136 = sld [smem:[#allocation6 + %s1134]]
        %s1137 = sld [smem:[#allocation7 + %s1134]]
        %s1138 = ssub.f32 1.0, %s1137
        %s1139 = smul.u32 %s1135, 2
        %s1140 = smul.addr %s1139, 8
        %s1141 = scalar_lea.vmem [#allocation2], %s1140
        %v1142 = vld [vmem:[%s1141] sm:$0xff]
        %v1143 = vld [vmem:[%s1141 + $0x8] sm:$0xff]
        %v1144 = vstv %s1138
        %v1145 = vmul.f32 %v1144, %v1142
        %v1146 = vmul.f32 %v1144, %v1143
        %s1147 = smul.u32 %s1136, 2
        %s1148 = smul.addr %s1147, 8
        %s1149 = scalar_lea.vmem [#allocation2], %s1148
        %v1150 = vld [vmem:[%s1149] sm:$0xff]
        %v1151 = vld [vmem:[%s1149 + $0x8] sm:$0xff]
        %v1152 = vstv %s1137
        %v1153 = vmul.f32 %v1152, %v1150
        %v1154 = vmul.f32 %v1152, %v1151
        %v1155 = vadd.f32 %v1145, %v1153
        %v1156 = vadd.f32 %v1146, %v1154
        %1157 = vst [vmem:[#allocation3 + $0x70] sm:$0xff] %v1155
        %1158 = vst [vmem:[#allocation3 + $0x78] sm:$0xff] %v1156
        %s1159 = sadd.s32 %s959, 8
        %s1160 = sld [smem:[#allocation5 + %s1159]]
        %s1161 = sld [smem:[#allocation6 + %s1159]]
        %s1162 = sld [smem:[#allocation7 + %s1159]]
        %s1163 = ssub.f32 1.0, %s1162
        %s1164 = smul.u32 %s1160, 2
        %s1165 = smul.addr %s1164, 8
        %s1166 = scalar_lea.vmem [#allocation2], %s1165
        %v1167 = vld [vmem:[%s1166] sm:$0xff]
        %v1168 = vld [vmem:[%s1166 + $0x8] sm:$0xff]
        %v1169 = vstv %s1163
        %v1170 = vmul.f32 %v1169, %v1167
        %v1171 = vmul.f32 %v1169, %v1168
        %s1172 = smul.u32 %s1161, 2
        %s1173 = smul.addr %s1172, 8
        %s1174 = scalar_lea.vmem [#allocation2], %s1173
        %v1175 = vld [vmem:[%s1174] sm:$0xff]
        %v1176 = vld [vmem:[%s1174 + $0x8] sm:$0xff]
        %v1177 = vstv %s1162
        %v1178 = vmul.f32 %v1177, %v1175
        %v1179 = vmul.f32 %v1177, %v1176
        %v1180 = vadd.f32 %v1170, %v1178
        %v1181 = vadd.f32 %v1171, %v1179
        %1182 = vst [vmem:[#allocation3 + $0x80] sm:$0xff] %v1180
        %1183 = vst [vmem:[#allocation3 + $0x88] sm:$0xff] %v1181
        %s1184 = sadd.s32 %s959, 9
        %s1185 = sld [smem:[#allocation5 + %s1184]]
        %s1186 = sld [smem:[#allocation6 + %s1184]]
        %s1187 = sld [smem:[#allocation7 + %s1184]]
        %s1188 = ssub.f32 1.0, %s1187
        %s1189 = smul.u32 %s1185, 2
        %s1190 = smul.addr %s1189, 8
        %s1191 = scalar_lea.vmem [#allocation2], %s1190
        %v1192 = vld [vmem:[%s1191] sm:$0xff]
        %v1193 = vld [vmem:[%s1191 + $0x8] sm:$0xff]
        %v1194 = vstv %s1188
        %v1195 = vmul.f32 %v1194, %v1192
        %v1196 = vmul.f32 %v1194, %v1193
        %s1197 = smul.u32 %s1186, 2
        %s1198 = smul.addr %s1197, 8
        %s1199 = scalar_lea.vmem [#allocation2], %s1198
        %v1200 = vld [vmem:[%s1199] sm:$0xff]
        %v1201 = vld [vmem:[%s1199 + $0x8] sm:$0xff]
        %v1202 = vstv %s1187
        %v1203 = vmul.f32 %v1202, %v1200
        %v1204 = vmul.f32 %v1202, %v1201
        %v1205 = vadd.f32 %v1195, %v1203
        %v1206 = vadd.f32 %v1196, %v1204
        %1207 = vst [vmem:[#allocation3 + $0x90] sm:$0xff] %v1205
        %1208 = vst [vmem:[#allocation3 + $0x98] sm:$0xff] %v1206
        %s1209 = sadd.s32 %s959, 10
        %s1210 = sld [smem:[#allocation5 + %s1209]]
        %s1211 = sld [smem:[#allocation6 + %s1209]]
        %s1212 = sld [smem:[#allocation7 + %s1209]]
        %s1213 = ssub.f32 1.0, %s1212
        %s1214 = smul.u32 %s1210, 2
        %s1215 = smul.addr %s1214, 8
        %s1216 = scalar_lea.vmem [#allocation2], %s1215
        %v1217 = vld [vmem:[%s1216] sm:$0xff]
        %v1218 = vld [vmem:[%s1216 + $0x8] sm:$0xff]
        %v1219 = vstv %s1213
        %v1220 = vmul.f32 %v1219, %v1217
        %v1221 = vmul.f32 %v1219, %v1218
        %s1222 = smul.u32 %s1211, 2
        %s1223 = smul.addr %s1222, 8
        %s1224 = scalar_lea.vmem [#allocation2], %s1223
        %v1225 = vld [vmem:[%s1224] sm:$0xff]
        %v1226 = vld [vmem:[%s1224 + $0x8] sm:$0xff]
        %v1227 = vstv %s1212
        %v1228 = vmul.f32 %v1227, %v1225
        %v1229 = vmul.f32 %v1227, %v1226
        %v1230 = vadd.f32 %v1220, %v1228
        %v1231 = vadd.f32 %v1221, %v1229
        %1232 = vst [vmem:[#allocation3 + $0xa0] sm:$0xff] %v1230
        %1233 = vst [vmem:[#allocation3 + $0xa8] sm:$0xff] %v1231
        %s1234 = sadd.s32 %s959, 11
        %s1235 = sld [smem:[#allocation5 + %s1234]]
        %s1236 = sld [smem:[#allocation6 + %s1234]]
        %s1237 = sld [smem:[#allocation7 + %s1234]]
        %s1238 = ssub.f32 1.0, %s1237
        %s1239 = smul.u32 %s1235, 2
        %s1240 = smul.addr %s1239, 8
        %s1241 = scalar_lea.vmem [#allocation2], %s1240
        %v1242 = vld [vmem:[%s1241] sm:$0xff]
        %v1243 = vld [vmem:[%s1241 + $0x8] sm:$0xff]
        %v1244 = vstv %s1238
        %v1245 = vmul.f32 %v1244, %v1242
        %v1246 = vmul.f32 %v1244, %v1243
        %s1247 = smul.u32 %s1236, 2
        %s1248 = smul.addr %s1247, 8
        %s1249 = scalar_lea.vmem [#allocation2], %s1248
        %v1250 = vld [vmem:[%s1249] sm:$0xff]
        %v1251 = vld [vmem:[%s1249 + $0x8] sm:$0xff]
        %v1252 = vstv %s1237
        %v1253 = vmul.f32 %v1252, %v1250
        %v1254 = vmul.f32 %v1252, %v1251
        %v1255 = vadd.f32 %v1245, %v1253
        %v1256 = vadd.f32 %v1246, %v1254
        %1257 = vst [vmem:[#allocation3 + $0xb0] sm:$0xff] %v1255
        %1258 = vst [vmem:[#allocation3 + $0xb8] sm:$0xff] %v1256
        %s1259 = sadd.s32 %s959, 12
        %s1260 = sld [smem:[#allocation5 + %s1259]]
        %s1261 = sld [smem:[#allocation6 + %s1259]]
        %s1262 = sld [smem:[#allocation7 + %s1259]]
        %s1263 = ssub.f32 1.0, %s1262
        %s1264 = smul.u32 %s1260, 2
        %s1265 = smul.addr %s1264, 8
        %s1266 = scalar_lea.vmem [#allocation2], %s1265
        %v1267 = vld [vmem:[%s1266] sm:$0xff]
        %v1268 = vld [vmem:[%s1266 + $0x8] sm:$0xff]
        %v1269 = vstv %s1263
        %v1270 = vmul.f32 %v1269, %v1267
        %v1271 = vmul.f32 %v1269, %v1268
        %s1272 = smul.u32 %s1261, 2
        %s1273 = smul.addr %s1272, 8
        %s1274 = scalar_lea.vmem [#allocation2], %s1273
        %v1275 = vld [vmem:[%s1274] sm:$0xff]
        %v1276 = vld [vmem:[%s1274 + $0x8] sm:$0xff]
        %v1277 = vstv %s1262
        %v1278 = vmul.f32 %v1277, %v1275
        %v1279 = vmul.f32 %v1277, %v1276
        %v1280 = vadd.f32 %v1270, %v1278
        %v1281 = vadd.f32 %v1271, %v1279
        %1282 = vst [vmem:[#allocation3 + $0xc0] sm:$0xff] %v1280
        %1283 = vst [vmem:[#allocation3 + $0xc8] sm:$0xff] %v1281
        %s1284 = sadd.s32 %s959, 13
        %s1285 = sld [smem:[#allocation5 + %s1284]]
        %s1286 = sld [smem:[#allocation6 + %s1284]]
        %s1287 = sld [smem:[#allocation7 + %s1284]]
        %s1288 = ssub.f32 1.0, %s1287
        %s1289 = smul.u32 %s1285, 2
        %s1290 = smul.addr %s1289, 8
        %s1291 = scalar_lea.vmem [#allocation2], %s1290
        %v1292 = vld [vmem:[%s1291] sm:$0xff]
        %v1293 = vld [vmem:[%s1291 + $0x8] sm:$0xff]
        %v1294 = vstv %s1288
        %v1295 = vmul.f32 %v1294, %v1292
        %v1296 = vmul.f32 %v1294, %v1293
        %s1297 = smul.u32 %s1286, 2
        %s1298 = smul.addr %s1297, 8
        %s1299 = scalar_lea.vmem [#allocation2], %s1298
        %v1300 = vld [vmem:[%s1299] sm:$0xff]
        %v1301 = vld [vmem:[%s1299 + $0x8] sm:$0xff]
        %v1302 = vstv %s1287
        %v1303 = vmul.f32 %v1302, %v1300
        %v1304 = vmul.f32 %v1302, %v1301
        %v1305 = vadd.f32 %v1295, %v1303
        %v1306 = vadd.f32 %v1296, %v1304
        %1307 = vst [vmem:[#allocation3 + $0xd0] sm:$0xff] %v1305
        %1308 = vst [vmem:[#allocation3 + $0xd8] sm:$0xff] %v1306
        %s1309 = sadd.s32 %s959, 14
        %s1310 = sld [smem:[#allocation5 + %s1309]]
        %s1311 = sld [smem:[#allocation6 + %s1309]]
        %s1312 = sld [smem:[#allocation7 + %s1309]]
        %s1313 = ssub.f32 1.0, %s1312
        %s1314 = smul.u32 %s1310, 2
        %s1315 = smul.addr %s1314, 8
        %s1316 = scalar_lea.vmem [#allocation2], %s1315
        %v1317 = vld [vmem:[%s1316] sm:$0xff]
        %v1318 = vld [vmem:[%s1316 + $0x8] sm:$0xff]
        %v1319 = vstv %s1313
        %v1320 = vmul.f32 %v1319, %v1317
        %v1321 = vmul.f32 %v1319, %v1318
        %s1322 = smul.u32 %s1311, 2
        %s1323 = smul.addr %s1322, 8
        %s1324 = scalar_lea.vmem [#allocation2], %s1323
        %v1325 = vld [vmem:[%s1324] sm:$0xff]
        %v1326 = vld [vmem:[%s1324 + $0x8] sm:$0xff]
        %v1327 = vstv %s1312
        %v1328 = vmul.f32 %v1327, %v1325
        %v1329 = vmul.f32 %v1327, %v1326
        %v1330 = vadd.f32 %v1320, %v1328
        %v1331 = vadd.f32 %v1321, %v1329
        %1332 = vst [vmem:[#allocation3 + $0xe0] sm:$0xff] %v1330
        %1333 = vst [vmem:[#allocation3 + $0xe8] sm:$0xff] %v1331
        %s1334 = sadd.s32 %s959, 15
        %s1335 = sld [smem:[#allocation5 + %s1334]]
        %s1336 = sld [smem:[#allocation6 + %s1334]]
        %s1337 = sld [smem:[#allocation7 + %s1334]]
        %s1338 = ssub.f32 1.0, %s1337
        %s1339 = smul.u32 %s1335, 2
        %s1340 = smul.addr %s1339, 8
        %s1341 = scalar_lea.vmem [#allocation2], %s1340
        %v1342 = vld [vmem:[%s1341] sm:$0xff]
        %v1343 = vld [vmem:[%s1341 + $0x8] sm:$0xff]
        %v1344 = vstv %s1338
        %v1345 = vmul.f32 %v1344, %v1342
        %v1346 = vmul.f32 %v1344, %v1343
        %s1347 = smul.u32 %s1336, 2
        %s1348 = smul.addr %s1347, 8
        %s1349 = scalar_lea.vmem [#allocation2], %s1348
        %v1350 = vld [vmem:[%s1349] sm:$0xff]
        %v1351 = vld [vmem:[%s1349 + $0x8] sm:$0xff]
        %v1352 = vstv %s1337
        %v1353 = vmul.f32 %v1352, %v1350
        %v1354 = vmul.f32 %v1352, %v1351
        %v1355 = vadd.f32 %v1345, %v1353
        %v1356 = vadd.f32 %v1346, %v1354
        %1357 = vst [vmem:[#allocation3 + $0xf0] sm:$0xff] %v1355
        %1358 = vst [vmem:[#allocation3 + $0xf8] sm:$0xff] %v1356
        %v1359 = vld [vmem:[%s316] sm:$0xff]
        %v1360 = vld [vmem:[%s316 + $0x8] sm:$0xff]
        %v1361 = vld [vmem:[%s316 + $0x10] sm:$0xff]
        %v1362 = vld [vmem:[%s316 + $0x18] sm:$0xff]
        %v1363 = vld [vmem:[%s316 + $0x20] sm:$0xff]
        %v1364 = vld [vmem:[%s316 + $0x28] sm:$0xff]
        %v1365 = vld [vmem:[%s316 + $0x30] sm:$0xff]
        %v1366 = vld [vmem:[%s316 + $0x38] sm:$0xff]
        %v1367 = vld [vmem:[%s316 + $0x40] sm:$0xff]
        %v1368 = vld [vmem:[%s316 + $0x48] sm:$0xff]
        %v1369 = vld [vmem:[%s316 + $0x50] sm:$0xff]
        %v1370 = vld [vmem:[%s316 + $0x58] sm:$0xff]
        %v1371 = vld [vmem:[%s316 + $0x60] sm:$0xff]
        %v1372 = vld [vmem:[%s316 + $0x68] sm:$0xff]
        %v1373 = vld [vmem:[%s316 + $0x70] sm:$0xff]
        %v1374 = vld [vmem:[%s316 + $0x78] sm:$0xff]
        %v1375 = vld [vmem:[%s6] sm:$0xff]
        %v1376 = vld [vmem:[#allocation3] sm:$0xff]
        %v1377 = vld [vmem:[#allocation3 + $0x8] sm:$0xff]
        %v1378 = vld [vmem:[#allocation3 + $0x10] sm:$0xff]
        %v1379 = vld [vmem:[#allocation3 + $0x18] sm:$0xff]
        %v1380 = vld [vmem:[#allocation3 + $0x20] sm:$0xff]
        %v1381 = vld [vmem:[#allocation3 + $0x28] sm:$0xff]
        %v1382 = vld [vmem:[#allocation3 + $0x30] sm:$0xff]
        %v1383 = vld [vmem:[#allocation3 + $0x38] sm:$0xff]
        %v1384 = vld [vmem:[#allocation3 + $0x40] sm:$0xff]
        %v1385 = vld [vmem:[#allocation3 + $0x48] sm:$0xff]
        %v1386 = vld [vmem:[#allocation3 + $0x50] sm:$0xff]
        %v1387 = vld [vmem:[#allocation3 + $0x58] sm:$0xff]
        %v1388 = vld [vmem:[#allocation3 + $0x60] sm:$0xff]
        %v1389 = vld [vmem:[#allocation3 + $0x68] sm:$0xff]
        %v1390 = vld [vmem:[#allocation3 + $0x70] sm:$0xff]
        %v1391 = vld [vmem:[#allocation3 + $0x78] sm:$0xff]
        %v1392 = vld [vmem:[#allocation3 + $0x80] sm:$0xff]
        %v1393 = vld [vmem:[#allocation3 + $0x88] sm:$0xff]
        %v1394 = vld [vmem:[#allocation3 + $0x90] sm:$0xff]
        %v1395 = vld [vmem:[#allocation3 + $0x98] sm:$0xff]
        %v1396 = vld [vmem:[#allocation3 + $0xa0] sm:$0xff]
        %v1397 = vld [vmem:[#allocation3 + $0xa8] sm:$0xff]
        %v1398 = vld [vmem:[#allocation3 + $0xb0] sm:$0xff]
        %v1399 = vld [vmem:[#allocation3 + $0xb8] sm:$0xff]
        %v1400 = vld [vmem:[#allocation3 + $0xc0] sm:$0xff]
        %v1401 = vld [vmem:[#allocation3 + $0xc8] sm:$0xff]
        %v1402 = vld [vmem:[#allocation3 + $0xd0] sm:$0xff]
        %v1403 = vld [vmem:[#allocation3 + $0xd8] sm:$0xff]
        %v1404 = vld [vmem:[#allocation3 + $0xe0] sm:$0xff]
        %v1405 = vld [vmem:[#allocation3 + $0xe8] sm:$0xff]
        %v1406 = vld [vmem:[#allocation3 + $0xf0] sm:$0xff]
        %v1407 = vld [vmem:[#allocation3 + $0xf8] sm:$0xff]
        %1424 = vst [vmem:[#allocation1] ss:$2 sm:$0xff] %v1359
        %s1425 = scalar_lea.vmem [#allocation1], 16
        %1426 = vst [vmem:[%s1425] ss:$2 sm:$0xff] %v1360
        %s1427 = scalar_lea.vmem [#allocation1], 32
        %1428 = vst [vmem:[%s1427] ss:$2 sm:$0xff] %v1361
        %s1429 = scalar_lea.vmem [#allocation1], 48
        %1430 = vst [vmem:[%s1429] ss:$2 sm:$0xff] %v1362
        %v1431 = vld.sshfl [vmem:[#allocation1] sm:$0xff pattern:$0x75316420]
        %v1432 = vld.sshfl [vmem:[#allocation1 + $0x8] sm:$0xff pattern:$0x75316420]
        %v1433 = vld.sshfl [vmem:[#allocation1 + $0x10] sm:$0xff pattern:$0x75316420]
        %v1434 = vld.sshfl [vmem:[#allocation1 + $0x18] sm:$0xff pattern:$0x75316420]
        %v1435 = vld.sshfl [vmem:[#allocation1 + $0x20] sm:$0xff pattern:$0x75316420]
        %v1436 = vld.sshfl [vmem:[#allocation1 + $0x28] sm:$0xff pattern:$0x75316420]
        %v1437 = vld.sshfl [vmem:[#allocation1 + $0x30] sm:$0xff pattern:$0x75316420]
        %v1438 = vld.sshfl [vmem:[#allocation1 + $0x38] sm:$0xff pattern:$0x75316420]
        %1439 = vst [vmem:[#allocation1] ss:$2 sm:$0xff] %v1363
        %1440 = vst [vmem:[%s1425] ss:$2 sm:$0xff] %v1364
        %1441 = vst [vmem:[%s1427] ss:$2 sm:$0xff] %v1365
        %1442 = vst [vmem:[%s1429] ss:$2 sm:$0xff] %v1366
        %v1443 = vld.sshfl [vmem:[#allocation1] sm:$0xff pattern:$0x75316420]
        %v1444 = vld.sshfl [vmem:[#allocation1 + $0x8] sm:$0xff pattern:$0x75316420]
        %v1445 = vld.sshfl [vmem:[#allocation1 + $0x10] sm:$0xff pattern:$0x75316420]
        %v1446 = vld.sshfl [vmem:[#allocation1 + $0x18] sm:$0xff pattern:$0x75316420]
        %v1447 = vld.sshfl [vmem:[#allocation1 + $0x20] sm:$0xff pattern:$0x75316420]
        %v1448 = vld.sshfl [vmem:[#allocation1 + $0x28] sm:$0xff pattern:$0x75316420]
        %v1449 = vld.sshfl [vmem:[#allocation1 + $0x30] sm:$0xff pattern:$0x75316420]
        %v1450 = vld.sshfl [vmem:[#allocation1 + $0x38] sm:$0xff pattern:$0x75316420]
        %1451 = vst [vmem:[#allocation1] ss:$2 sm:$0xff] %v1367
        %1452 = vst [vmem:[%s1425] ss:$2 sm:$0xff] %v1368
        %1453 = vst [vmem:[%s1427] ss:$2 sm:$0xff] %v1369
        %1454 = vst [vmem:[%s1429] ss:$2 sm:$0xff] %v1370
        %v1455 = vld.sshfl [vmem:[#allocation1] sm:$0xff pattern:$0x75316420]
        %v1456 = vld.sshfl [vmem:[#allocation1 + $0x8] sm:$0xff pattern:$0x75316420]
        %v1457 = vld.sshfl [vmem:[#allocation1 + $0x10] sm:$0xff pattern:$0x75316420]
        %v1458 = vld.sshfl [vmem:[#allocation1 + $0x18] sm:$0xff pattern:$0x75316420]
        %v1459 = vld.sshfl [vmem:[#allocation1 + $0x20] sm:$0xff pattern:$0x75316420]
        %v1460 = vld.sshfl [vmem:[#allocation1 + $0x28] sm:$0xff pattern:$0x75316420]
        %v1461 = vld.sshfl [vmem:[#allocation1 + $0x30] sm:$0xff pattern:$0x75316420]
        %v1462 = vld.sshfl [vmem:[#allocation1 + $0x38] sm:$0xff pattern:$0x75316420]
        %1463 = vst [vmem:[#allocation1] ss:$2 sm:$0xff] %v1371
        %1464 = vst [vmem:[%s1425] ss:$2 sm:$0xff] %v1372
        %1465 = vst [vmem:[%s1427] ss:$2 sm:$0xff] %v1373
        %1466 = vst [vmem:[%s1429] ss:$2 sm:$0xff] %v1374
        %v1467 = vld.sshfl [vmem:[#allocation1] sm:$0xff pattern:$0x75316420]
        %v1468 = vld.sshfl [vmem:[#allocation1 + $0x8] sm:$0xff pattern:$0x75316420]
        %v1469 = vld.sshfl [vmem:[#allocation1 + $0x10] sm:$0xff pattern:$0x75316420]
        %v1470 = vld.sshfl [vmem:[#allocation1 + $0x18] sm:$0xff pattern:$0x75316420]
        %v1471 = vld.sshfl [vmem:[#allocation1 + $0x20] sm:$0xff pattern:$0x75316420]
        %v1472 = vld.sshfl [vmem:[#allocation1 + $0x28] sm:$0xff pattern:$0x75316420]
        %v1473 = vld.sshfl [vmem:[#allocation1 + $0x30] sm:$0xff pattern:$0x75316420]
        %v1474 = vld.sshfl [vmem:[#allocation1 + $0x38] sm:$0xff pattern:$0x75316420]
        %vm1475 = vcmask 31744
        %v1477 = vsel %vm1475, %v1375, 0
        %vm1479 = vcmask 1043456
        %v1480 = vsel %vm1479, %v1431, 0
        %v1482 = vsel %vm1479, %v1432, 0
        %v1484 = vsel %vm1479, %v1433, 0
        %v1486 = vsel %vm1479, %v1434, 0
        %v1488 = vsel %vm1479, %v1435, 0
        %v1490 = vsel %vm1479, %v1436, 0
        %v1492 = vsel %vm1479, %v1437, 0
        %v1494 = vsel %vm1479, %v1438, 0
        %v1496 = vsel %vm1479, %v1443, 0
        %v1498 = vsel %vm1479, %v1444, 0
        %v1500 = vsel %vm1479, %v1445, 0
        %v1502 = vsel %vm1479, %v1446, 0
        %v1504 = vsel %vm1479, %v1447, 0
        %v1506 = vsel %vm1479, %v1448, 0
        %v1508 = vsel %vm1479, %v1449, 0
        %v1510 = vsel %vm1479, %v1450, 0
        %v1512 = vsel %vm1479, %v1455, 0
        %v1514 = vsel %vm1479, %v1456, 0
        %v1516 = vsel %vm1479, %v1457, 0
        %v1518 = vsel %vm1479, %v1458, 0
        %v1520 = vsel %vm1479, %v1459, 0
        %v1522 = vsel %vm1479, %v1460, 0
        %v1524 = vsel %vm1479, %v1461, 0
        %v1526 = vsel %vm1479, %v1462, 0
        %v1528 = vsel %vm1479, %v1467, 0
        %v1530 = vsel %vm1479, %v1468, 0
        %v1532 = vsel %vm1479, %v1469, 0
        %v1534 = vsel %vm1479, %v1470, 0
        %v1536 = vsel %vm1479, %v1471, 0
        %v1538 = vsel %vm1479, %v1472, 0
        %v1540 = vsel %vm1479, %v1473, 0
        %v1542 = vsel %vm1479, %v1474, 0
        %1544 = vmatpush.msra.mxu0 0.0
        %1545 = vmatpush.msra.mxu0 0.0
        %1546 = vmatpush.msra.mxu0 0.0
        %1547 = vmatpush.msra.mxu0 0.0
        %1548 = vmatpush.msra.mxu0 0.0
        %1549 = vmatpush.msra.mxu0 0.0
        %1550 = vmatpush.msra.mxu0 0.0
        %1551 = vmatpush.msra.mxu0 0.0
        %1552 = vmatpush.msra.mxu0 0.0
        %1553 = vmatpush.msra.mxu0 0.0
        %1554 = vmatpush.msra.mxu0 0.0
        %1555 = vmatpush.msra.mxu0 0.0
        %1556 = vmatpush.msra.mxu0 0.0
        %1557 = vmatpush.msra.mxu0 0.0
        %1558 = vmatpush.msra.mxu0 0.0
        %1559 = vmatpush.msra.mxu0 %v1480
        %1560 = vmatmul.f32.gmra.mxu0 %v1477
        %v1561 = vpop.f32.mrf.mxu0
        %v1562 = vadd.f32 %v1376, %v1561
        %1563 = vdwg.mxu0
        %1564 = vmatpush.msra.mxu0 0.0
        %1565 = vmatpush.msra.mxu0 0.0
        %1566 = vmatpush.msra.mxu0 0.0
        %1567 = vmatpush.msra.mxu0 0.0
        %1568 = vmatpush.msra.mxu0 0.0
        %1569 = vmatpush.msra.mxu0 0.0
        %1570 = vmatpush.msra.mxu0 0.0
        %1571 = vmatpush.msra.mxu0 0.0
        %1572 = vmatpush.msra.mxu0 0.0
        %1573 = vmatpush.msra.mxu0 0.0
        %1574 = vmatpush.msra.mxu0 0.0
        %1575 = vmatpush.msra.mxu0 0.0
        %1576 = vmatpush.msra.mxu0 0.0
        %1577 = vmatpush.msra.mxu0 0.0
        %1578 = vmatpush.msra.mxu0 0.0
        %1579 = vmatpush.msra.mxu0 %v1482
        %1580 = vmatmul.f32.gmra.mxu0 %v1477
        %v1581 = vpop.f32.mrf.mxu0
        %v1582 = vadd.f32 %v1377, %v1581
        %1583 = vdwg.mxu0
        %1584 = vmatpush.msra.mxu0 0.0
        %1585 = vmatpush.msra.mxu0 0.0
        %1586 = vmatpush.msra.mxu0 0.0
        %1587 = vmatpush.msra.mxu0 0.0
        %1588 = vmatpush.msra.mxu0 0.0
        %1589 = vmatpush.msra.mxu0 0.0
        %1590 = vmatpush.msra.mxu0 0.0
        %1591 = vmatpush.msra.mxu0 0.0
        %1592 = vmatpush.msra.mxu0 0.0
        %1593 = vmatpush.msra.mxu0 0.0
        %1594 = vmatpush.msra.mxu0 0.0
        %1595 = vmatpush.msra.mxu0 0.0
        %1596 = vmatpush.msra.mxu0 0.0
        %1597 = vmatpush.msra.mxu0 0.0
        %1598 = vmatpush.msra.mxu0 0.0
        %1599 = vmatpush.msra.mxu0 %v1484
        %1600 = vmatmul.f32.gmra.mxu0 %v1477
        %v1601 = vpop.f32.mrf.mxu0
        %v1602 = vadd.f32 %v1378, %v1601
        %1603 = vdwg.mxu0
        %1604 = vmatpush.msra.mxu0 0.0
        %1605 = vmatpush.msra.mxu0 0.0
        %1606 = vmatpush.msra.mxu0 0.0
        %1607 = vmatpush.msra.mxu0 0.0
        %1608 = vmatpush.msra.mxu0 0.0
        %1609 = vmatpush.msra.mxu0 0.0
        %1610 = vmatpush.msra.mxu0 0.0
        %1611 = vmatpush.msra.mxu0 0.0
        %1612 = vmatpush.msra.mxu0 0.0
        %1613 = vmatpush.msra.mxu0 0.0
        %1614 = vmatpush.msra.mxu0 0.0
        %1615 = vmatpush.msra.mxu0 0.0
        %1616 = vmatpush.msra.mxu0 0.0
        %1617 = vmatpush.msra.mxu0 0.0
        %1618 = vmatpush.msra.mxu0 0.0
        %1619 = vmatpush.msra.mxu0 %v1486
        %1620 = vmatmul.f32.gmra.mxu0 %v1477
        %v1621 = vpop.f32.mrf.mxu0
        %v1622 = vadd.f32 %v1379, %v1621
        %1623 = vdwg.mxu0
        %1624 = vmatpush.msra.mxu0 0.0
        %1625 = vmatpush.msra.mxu0 0.0
        %1626 = vmatpush.msra.mxu0 0.0
        %1627 = vmatpush.msra.mxu0 0.0
        %1628 = vmatpush.msra.mxu0 0.0
        %1629 = vmatpush.msra.mxu0 0.0
        %1630 = vmatpush.msra.mxu0 0.0
        %1631 = vmatpush.msra.mxu0 0.0
        %1632 = vmatpush.msra.mxu0 0.0
        %1633 = vmatpush.msra.mxu0 0.0
        %1634 = vmatpush.msra.mxu0 0.0
        %1635 = vmatpush.msra.mxu0 0.0
        %1636 = vmatpush.msra.mxu0 0.0
        %1637 = vmatpush.msra.mxu0 0.0
        %1638 = vmatpush.msra.mxu0 0.0
        %1639 = vmatpush.msra.mxu0 %v1488
        %1640 = vmatmul.f32.gmra.mxu0 %v1477
        %v1641 = vpop.f32.mrf.mxu0
        %v1642 = vadd.f32 %v1380, %v1641
        %1643 = vdwg.mxu0
        %1644 = vmatpush.msra.mxu0 0.0
        %1645 = vmatpush.msra.mxu0 0.0
        %1646 = vmatpush.msra.mxu0 0.0
        %1647 = vmatpush.msra.mxu0 0.0
        %1648 = vmatpush.msra.mxu0 0.0
        %1649 = vmatpush.msra.mxu0 0.0
        %1650 = vmatpush.msra.mxu0 0.0
        %1651 = vmatpush.msra.mxu0 0.0
        %1652 = vmatpush.msra.mxu0 0.0
        %1653 = vmatpush.msra.mxu0 0.0
        %1654 = vmatpush.msra.mxu0 0.0
        %1655 = vmatpush.msra.mxu0 0.0
        %1656 = vmatpush.msra.mxu0 0.0
        %1657 = vmatpush.msra.mxu0 0.0
        %1658 = vmatpush.msra.mxu0 0.0
        %1659 = vmatpush.msra.mxu0 %v1490
        %1660 = vmatmul.f32.gmra.mxu0 %v1477
        %v1661 = vpop.f32.mrf.mxu0
        %v1662 = vadd.f32 %v1381, %v1661
        %1663 = vdwg.mxu0
        %1664 = vmatpush.msra.mxu0 0.0
        %1665 = vmatpush.msra.mxu0 0.0
        %1666 = vmatpush.msra.mxu0 0.0
        %1667 = vmatpush.msra.mxu0 0.0
        %1668 = vmatpush.msra.mxu0 0.0
        %1669 = vmatpush.msra.mxu0 0.0
        %1670 = vmatpush.msra.mxu0 0.0
        %1671 = vmatpush.msra.mxu0 0.0
        %1672 = vmatpush.msra.mxu0 0.0
        %1673 = vmatpush.msra.mxu0 0.0
        %1674 = vmatpush.msra.mxu0 0.0
        %1675 = vmatpush.msra.mxu0 0.0
        %1676 = vmatpush.msra.mxu0 0.0
        %1677 = vmatpush.msra.mxu0 0.0
        %1678 = vmatpush.msra.mxu0 0.0
        %1679 = vmatpush.msra.mxu0 %v1492
        %1680 = vmatmul.f32.gmra.mxu0 %v1477
        %v1681 = vpop.f32.mrf.mxu0
        %v1682 = vadd.f32 %v1382, %v1681
        %1683 = vdwg.mxu0
        %1684 = vmatpush.msra.mxu0 0.0
        %1685 = vmatpush.msra.mxu0 0.0
        %1686 = vmatpush.msra.mxu0 0.0
        %1687 = vmatpush.msra.mxu0 0.0
        %1688 = vmatpush.msra.mxu0 0.0
        %1689 = vmatpush.msra.mxu0 0.0
        %1690 = vmatpush.msra.mxu0 0.0
        %1691 = vmatpush.msra.mxu0 0.0
        %1692 = vmatpush.msra.mxu0 0.0
        %1693 = vmatpush.msra.mxu0 0.0
        %1694 = vmatpush.msra.mxu0 0.0
        %1695 = vmatpush.msra.mxu0 0.0
        %1696 = vmatpush.msra.mxu0 0.0
        %1697 = vmatpush.msra.mxu0 0.0
        %1698 = vmatpush.msra.mxu0 0.0
        %1699 = vmatpush.msra.mxu0 %v1494
        %1700 = vmatmul.f32.gmra.mxu0 %v1477
        %v1701 = vpop.f32.mrf.mxu0
        %v1702 = vadd.f32 %v1383, %v1701
        %1703 = vdwg.mxu0
        %1704 = vmatpush.msra.mxu0 0.0
        %1705 = vmatpush.msra.mxu0 0.0
        %1706 = vmatpush.msra.mxu0 0.0
        %1707 = vmatpush.msra.mxu0 0.0
        %1708 = vmatpush.msra.mxu0 0.0
        %1709 = vmatpush.msra.mxu0 0.0
        %1710 = vmatpush.msra.mxu0 0.0
        %1711 = vmatpush.msra.mxu0 0.0
        %1712 = vmatpush.msra.mxu0 0.0
        %1713 = vmatpush.msra.mxu0 0.0
        %1714 = vmatpush.msra.mxu0 0.0
        %1715 = vmatpush.msra.mxu0 0.0
        %1716 = vmatpush.msra.mxu0 0.0
        %1717 = vmatpush.msra.mxu0 0.0
        %1718 = vmatpush.msra.mxu0 0.0
        %1719 = vmatpush.msra.mxu0 %v1496
        %1720 = vmatmul.f32.gmra.mxu0 %v1477
        %v1721 = vpop.f32.mrf.mxu0
        %v1722 = vadd.f32 %v1384, %v1721
        %1723 = vdwg.mxu0
        %1724 = vmatpush.msra.mxu0 0.0
        %1725 = vmatpush.msra.mxu0 0.0
        %1726 = vmatpush.msra.mxu0 0.0
        %1727 = vmatpush.msra.mxu0 0.0
        %1728 = vmatpush.msra.mxu0 0.0
        %1729 = vmatpush.msra.mxu0 0.0
        %1730 = vmatpush.msra.mxu0 0.0
        %1731 = vmatpush.msra.mxu0 0.0
        %1732 = vmatpush.msra.mxu0 0.0
        %1733 = vmatpush.msra.mxu0 0.0
        %1734 = vmatpush.msra.mxu0 0.0
        %1735 = vmatpush.msra.mxu0 0.0
        %1736 = vmatpush.msra.mxu0 0.0
        %1737 = vmatpush.msra.mxu0 0.0
        %1738 = vmatpush.msra.mxu0 0.0
        %1739 = vmatpush.msra.mxu0 %v1498
        %1740 = vmatmul.f32.gmra.mxu0 %v1477
        %v1741 = vpop.f32.mrf.mxu0
        %v1742 = vadd.f32 %v1385, %v1741
        %1743 = vdwg.mxu0
        %1744 = vmatpush.msra.mxu0 0.0
        %1745 = vmatpush.msra.mxu0 0.0
        %1746 = vmatpush.msra.mxu0 0.0
        %1747 = vmatpush.msra.mxu0 0.0
        %1748 = vmatpush.msra.mxu0 0.0
        %1749 = vmatpush.msra.mxu0 0.0
        %1750 = vmatpush.msra.mxu0 0.0
        %1751 = vmatpush.msra.mxu0 0.0
        %1752 = vmatpush.msra.mxu0 0.0
        %1753 = vmatpush.msra.mxu0 0.0
        %1754 = vmatpush.msra.mxu0 0.0
        %1755 = vmatpush.msra.mxu0 0.0
        %1756 = vmatpush.msra.mxu0 0.0
        %1757 = vmatpush.msra.mxu0 0.0
        %1758 = vmatpush.msra.mxu0 0.0
        %1759 = vmatpush.msra.mxu0 %v1500
        %1760 = vmatmul.f32.gmra.mxu0 %v1477
        %v1761 = vpop.f32.mrf.mxu0
        %v1762 = vadd.f32 %v1386, %v1761
        %1763 = vdwg.mxu0
        %1764 = vmatpush.msra.mxu0 0.0
        %1765 = vmatpush.msra.mxu0 0.0
        %1766 = vmatpush.msra.mxu0 0.0
        %1767 = vmatpush.msra.mxu0 0.0
        %1768 = vmatpush.msra.mxu0 0.0
        %1769 = vmatpush.msra.mxu0 0.0
        %1770 = vmatpush.msra.mxu0 0.0
        %1771 = vmatpush.msra.mxu0 0.0
        %1772 = vmatpush.msra.mxu0 0.0
        %1773 = vmatpush.msra.mxu0 0.0
        %1774 = vmatpush.msra.mxu0 0.0
        %1775 = vmatpush.msra.mxu0 0.0
        %1776 = vmatpush.msra.mxu0 0.0
        %1777 = vmatpush.msra.mxu0 0.0
        %1778 = vmatpush.msra.mxu0 0.0
        %1779 = vmatpush.msra.mxu0 %v1502
        %1780 = vmatmul.f32.gmra.mxu0 %v1477
        %v1781 = vpop.f32.mrf.mxu0
        %v1782 = vadd.f32 %v1387, %v1781
        %1783 = vdwg.mxu0
        %1784 = vmatpush.msra.mxu0 0.0
        %1785 = vmatpush.msra.mxu0 0.0
        %1786 = vmatpush.msra.mxu0 0.0
        %1787 = vmatpush.msra.mxu0 0.0
        %1788 = vmatpush.msra.mxu0 0.0
        %1789 = vmatpush.msra.mxu0 0.0
        %1790 = vmatpush.msra.mxu0 0.0
        %1791 = vmatpush.msra.mxu0 0.0
        %1792 = vmatpush.msra.mxu0 0.0
        %1793 = vmatpush.msra.mxu0 0.0
        %1794 = vmatpush.msra.mxu0 0.0
        %1795 = vmatpush.msra.mxu0 0.0
        %1796 = vmatpush.msra.mxu0 0.0
        %1797 = vmatpush.msra.mxu0 0.0
        %1798 = vmatpush.msra.mxu0 0.0
        %1799 = vmatpush.msra.mxu0 %v1504
        %1800 = vmatmul.f32.gmra.mxu0 %v1477
        %v1801 = vpop.f32.mrf.mxu0
        %v1802 = vadd.f32 %v1388, %v1801
        %1803 = vdwg.mxu0
        %1804 = vmatpush.msra.mxu0 0.0
        %1805 = vmatpush.msra.mxu0 0.0
        %1806 = vmatpush.msra.mxu0 0.0
        %1807 = vmatpush.msra.mxu0 0.0
        %1808 = vmatpush.msra.mxu0 0.0
        %1809 = vmatpush.msra.mxu0 0.0
        %1810 = vmatpush.msra.mxu0 0.0
        %1811 = vmatpush.msra.mxu0 0.0
        %1812 = vmatpush.msra.mxu0 0.0
        %1813 = vmatpush.msra.mxu0 0.0
        %1814 = vmatpush.msra.mxu0 0.0
        %1815 = vmatpush.msra.mxu0 0.0
        %1816 = vmatpush.msra.mxu0 0.0
        %1817 = vmatpush.msra.mxu0 0.0
        %1818 = vmatpush.msra.mxu0 0.0
        %1819 = vmatpush.msra.mxu0 %v1506
        %1820 = vmatmul.f32.gmra.mxu0 %v1477
        %v1821 = vpop.f32.mrf.mxu0
        %v1822 = vadd.f32 %v1389, %v1821
        %1823 = vdwg.mxu0
        %1824 = vmatpush.msra.mxu0 0.0
        %1825 = vmatpush.msra.mxu0 0.0
        %1826 = vmatpush.msra.mxu0 0.0
        %1827 = vmatpush.msra.mxu0 0.0
        %1828 = vmatpush.msra.mxu0 0.0
        %1829 = vmatpush.msra.mxu0 0.0
        %1830 = vmatpush.msra.mxu0 0.0
        %1831 = vmatpush.msra.mxu0 0.0
        %1832 = vmatpush.msra.mxu0 0.0
        %1833 = vmatpush.msra.mxu0 0.0
        %1834 = vmatpush.msra.mxu0 0.0
        %1835 = vmatpush.msra.mxu0 0.0
        %1836 = vmatpush.msra.mxu0 0.0
        %1837 = vmatpush.msra.mxu0 0.0
        %1838 = vmatpush.msra.mxu0 0.0
        %1839 = vmatpush.msra.mxu0 %v1508
        %1840 = vmatmul.f32.gmra.mxu0 %v1477
        %v1841 = vpop.f32.mrf.mxu0
        %v1842 = vadd.f32 %v1390, %v1841
        %1843 = vdwg.mxu0
        %1844 = vmatpush.msra.mxu0 0.0
        %1845 = vmatpush.msra.mxu0 0.0
        %1846 = vmatpush.msra.mxu0 0.0
        %1847 = vmatpush.msra.mxu0 0.0
        %1848 = vmatpush.msra.mxu0 0.0
        %1849 = vmatpush.msra.mxu0 0.0
        %1850 = vmatpush.msra.mxu0 0.0
        %1851 = vmatpush.msra.mxu0 0.0
        %1852 = vmatpush.msra.mxu0 0.0
        %1853 = vmatpush.msra.mxu0 0.0
        %1854 = vmatpush.msra.mxu0 0.0
        %1855 = vmatpush.msra.mxu0 0.0
        %1856 = vmatpush.msra.mxu0 0.0
        %1857 = vmatpush.msra.mxu0 0.0
        %1858 = vmatpush.msra.mxu0 0.0
        %1859 = vmatpush.msra.mxu0 %v1510
        %1860 = vmatmul.f32.gmra.mxu0 %v1477
        %v1861 = vpop.f32.mrf.mxu0
        %v1862 = vadd.f32 %v1391, %v1861
        %1863 = vdwg.mxu0
        %1864 = vmatpush.msra.mxu0 0.0
        %1865 = vmatpush.msra.mxu0 0.0
        %1866 = vmatpush.msra.mxu0 0.0
        %1867 = vmatpush.msra.mxu0 0.0
        %1868 = vmatpush.msra.mxu0 0.0
        %1869 = vmatpush.msra.mxu0 0.0
        %1870 = vmatpush.msra.mxu0 0.0
        %1871 = vmatpush.msra.mxu0 0.0
        %1872 = vmatpush.msra.mxu0 0.0
        %1873 = vmatpush.msra.mxu0 0.0
        %1874 = vmatpush.msra.mxu0 0.0
        %1875 = vmatpush.msra.mxu0 0.0
        %1876 = vmatpush.msra.mxu0 0.0
        %1877 = vmatpush.msra.mxu0 0.0
        %1878 = vmatpush.msra.mxu0 0.0
        %1879 = vmatpush.msra.mxu0 %v1512
        %1880 = vmatmul.f32.gmra.mxu0 %v1477
        %v1881 = vpop.f32.mrf.mxu0
        %v1882 = vadd.f32 %v1392, %v1881
        %1883 = vdwg.mxu0
        %1884 = vmatpush.msra.mxu0 0.0
        %1885 = vmatpush.msra.mxu0 0.0
        %1886 = vmatpush.msra.mxu0 0.0
        %1887 = vmatpush.msra.mxu0 0.0
        %1888 = vmatpush.msra.mxu0 0.0
        %1889 = vmatpush.msra.mxu0 0.0
        %1890 = vmatpush.msra.mxu0 0.0
        %1891 = vmatpush.msra.mxu0 0.0
        %1892 = vmatpush.msra.mxu0 0.0
        %1893 = vmatpush.msra.mxu0 0.0
        %1894 = vmatpush.msra.mxu0 0.0
        %1895 = vmatpush.msra.mxu0 0.0
        %1896 = vmatpush.msra.mxu0 0.0
        %1897 = vmatpush.msra.mxu0 0.0
        %1898 = vmatpush.msra.mxu0 0.0
        %1899 = vmatpush.msra.mxu0 %v1514
        %1900 = vmatmul.f32.gmra.mxu0 %v1477
        %v1901 = vpop.f32.mrf.mxu0
        %v1902 = vadd.f32 %v1393, %v1901
        %1903 = vdwg.mxu0
        %1904 = vmatpush.msra.mxu0 0.0
        %1905 = vmatpush.msra.mxu0 0.0
        %1906 = vmatpush.msra.mxu0 0.0
        %1907 = vmatpush.msra.mxu0 0.0
        %1908 = vmatpush.msra.mxu0 0.0
        %1909 = vmatpush.msra.mxu0 0.0
        %1910 = vmatpush.msra.mxu0 0.0
        %1911 = vmatpush.msra.mxu0 0.0
        %1912 = vmatpush.msra.mxu0 0.0
        %1913 = vmatpush.msra.mxu0 0.0
        %1914 = vmatpush.msra.mxu0 0.0
        %1915 = vmatpush.msra.mxu0 0.0
        %1916 = vmatpush.msra.mxu0 0.0
        %1917 = vmatpush.msra.mxu0 0.0
        %1918 = vmatpush.msra.mxu0 0.0
        %1919 = vmatpush.msra.mxu0 %v1516
        %1920 = vmatmul.f32.gmra.mxu0 %v1477
        %v1921 = vpop.f32.mrf.mxu0
        %v1922 = vadd.f32 %v1394, %v1921
        %1923 = vdwg.mxu0
        %1924 = vmatpush.msra.mxu0 0.0
        %1925 = vmatpush.msra.mxu0 0.0
        %1926 = vmatpush.msra.mxu0 0.0
        %1927 = vmatpush.msra.mxu0 0.0
        %1928 = vmatpush.msra.mxu0 0.0
        %1929 = vmatpush.msra.mxu0 0.0
        %1930 = vmatpush.msra.mxu0 0.0
        %1931 = vmatpush.msra.mxu0 0.0
        %1932 = vmatpush.msra.mxu0 0.0
        %1933 = vmatpush.msra.mxu0 0.0
        %1934 = vmatpush.msra.mxu0 0.0
        %1935 = vmatpush.msra.mxu0 0.0
        %1936 = vmatpush.msra.mxu0 0.0
        %1937 = vmatpush.msra.mxu0 0.0
        %1938 = vmatpush.msra.mxu0 0.0
        %1939 = vmatpush.msra.mxu0 %v1518
        %1940 = vmatmul.f32.gmra.mxu0 %v1477
        %v1941 = vpop.f32.mrf.mxu0
        %v1942 = vadd.f32 %v1395, %v1941
        %1943 = vdwg.mxu0
        %1944 = vmatpush.msra.mxu0 0.0
        %1945 = vmatpush.msra.mxu0 0.0
        %1946 = vmatpush.msra.mxu0 0.0
        %1947 = vmatpush.msra.mxu0 0.0
        %1948 = vmatpush.msra.mxu0 0.0
        %1949 = vmatpush.msra.mxu0 0.0
        %1950 = vmatpush.msra.mxu0 0.0
        %1951 = vmatpush.msra.mxu0 0.0
        %1952 = vmatpush.msra.mxu0 0.0
        %1953 = vmatpush.msra.mxu0 0.0
        %1954 = vmatpush.msra.mxu0 0.0
        %1955 = vmatpush.msra.mxu0 0.0
        %1956 = vmatpush.msra.mxu0 0.0
        %1957 = vmatpush.msra.mxu0 0.0
        %1958 = vmatpush.msra.mxu0 0.0
        %1959 = vmatpush.msra.mxu0 %v1520
        %1960 = vmatmul.f32.gmra.mxu0 %v1477
        %v1961 = vpop.f32.mrf.mxu0
        %v1962 = vadd.f32 %v1396, %v1961
        %1963 = vdwg.mxu0
        %1964 = vmatpush.msra.mxu0 0.0
        %1965 = vmatpush.msra.mxu0 0.0
        %1966 = vmatpush.msra.mxu0 0.0
        %1967 = vmatpush.msra.mxu0 0.0
        %1968 = vmatpush.msra.mxu0 0.0
        %1969 = vmatpush.msra.mxu0 0.0
        %1970 = vmatpush.msra.mxu0 0.0
        %1971 = vmatpush.msra.mxu0 0.0
        %1972 = vmatpush.msra.mxu0 0.0
        %1973 = vmatpush.msra.mxu0 0.0
        %1974 = vmatpush.msra.mxu0 0.0
        %1975 = vmatpush.msra.mxu0 0.0
        %1976 = vmatpush.msra.mxu0 0.0
        %1977 = vmatpush.msra.mxu0 0.0
        %1978 = vmatpush.msra.mxu0 0.0
        %1979 = vmatpush.msra.mxu0 %v1522
        %1980 = vmatmul.f32.gmra.mxu0 %v1477
        %v1981 = vpop.f32.mrf.mxu0
        %v1982 = vadd.f32 %v1397, %v1981
        %1983 = vdwg.mxu0
        %1984 = vmatpush.msra.mxu0 0.0
        %1985 = vmatpush.msra.mxu0 0.0
        %1986 = vmatpush.msra.mxu0 0.0
        %1987 = vmatpush.msra.mxu0 0.0
        %1988 = vmatpush.msra.mxu0 0.0
        %1989 = vmatpush.msra.mxu0 0.0
        %1990 = vmatpush.msra.mxu0 0.0
        %1991 = vmatpush.msra.mxu0 0.0
        %1992 = vmatpush.msra.mxu0 0.0
        %1993 = vmatpush.msra.mxu0 0.0
        %1994 = vmatpush.msra.mxu0 0.0
        %1995 = vmatpush.msra.mxu0 0.0
        %1996 = vmatpush.msra.mxu0 0.0
        %1997 = vmatpush.msra.mxu0 0.0
        %1998 = vmatpush.msra.mxu0 0.0
        %1999 = vmatpush.msra.mxu0 %v1524
        %2000 = vmatmul.f32.gmra.mxu0 %v1477
        %v2001 = vpop.f32.mrf.mxu0
        %v2002 = vadd.f32 %v1398, %v2001
        %2003 = vdwg.mxu0
        %2004 = vmatpush.msra.mxu0 0.0
        %2005 = vmatpush.msra.mxu0 0.0
        %2006 = vmatpush.msra.mxu0 0.0
        %2007 = vmatpush.msra.mxu0 0.0
        %2008 = vmatpush.msra.mxu0 0.0
        %2009 = vmatpush.msra.mxu0 0.0
        %2010 = vmatpush.msra.mxu0 0.0
        %2011 = vmatpush.msra.mxu0 0.0
        %2012 = vmatpush.msra.mxu0 0.0
        %2013 = vmatpush.msra.mxu0 0.0
        %2014 = vmatpush.msra.mxu0 0.0
        %2015 = vmatpush.msra.mxu0 0.0
        %2016 = vmatpush.msra.mxu0 0.0
        %2017 = vmatpush.msra.mxu0 0.0
        %2018 = vmatpush.msra.mxu0 0.0
        %2019 = vmatpush.msra.mxu0 %v1526
        %2020 = vmatmul.f32.gmra.mxu0 %v1477
        %v2021 = vpop.f32.mrf.mxu0
        %v2022 = vadd.f32 %v1399, %v2021
        %2023 = vdwg.mxu0
        %2024 = vmatpush.msra.mxu0 0.0
        %2025 = vmatpush.msra.mxu0 0.0
        %2026 = vmatpush.msra.mxu0 0.0
        %2027 = vmatpush.msra.mxu0 0.0
        %2028 = vmatpush.msra.mxu0 0.0
        %2029 = vmatpush.msra.mxu0 0.0
        %2030 = vmatpush.msra.mxu0 0.0
        %2031 = vmatpush.msra.mxu0 0.0
        %2032 = vmatpush.msra.mxu0 0.0
        %2033 = vmatpush.msra.mxu0 0.0
        %2034 = vmatpush.msra.mxu0 0.0
        %2035 = vmatpush.msra.mxu0 0.0
        %2036 = vmatpush.msra.mxu0 0.0
        %2037 = vmatpush.msra.mxu0 0.0
        %2038 = vmatpush.msra.mxu0 0.0
        %2039 = vmatpush.msra.mxu0 %v1528
        %2040 = vmatmul.f32.gmra.mxu0 %v1477
        %v2041 = vpop.f32.mrf.mxu0
        %v2042 = vadd.f32 %v1400, %v2041
        %2043 = vdwg.mxu0
        %2044 = vmatpush.msra.mxu0 0.0
        %2045 = vmatpush.msra.mxu0 0.0
        %2046 = vmatpush.msra.mxu0 0.0
        %2047 = vmatpush.msra.mxu0 0.0
        %2048 = vmatpush.msra.mxu0 0.0
        %2049 = vmatpush.msra.mxu0 0.0
        %2050 = vmatpush.msra.mxu0 0.0
        %2051 = vmatpush.msra.mxu0 0.0
        %2052 = vmatpush.msra.mxu0 0.0
        %2053 = vmatpush.msra.mxu0 0.0
        %2054 = vmatpush.msra.mxu0 0.0
        %2055 = vmatpush.msra.mxu0 0.0
        %2056 = vmatpush.msra.mxu0 0.0
        %2057 = vmatpush.msra.mxu0 0.0
        %2058 = vmatpush.msra.mxu0 0.0
        %2059 = vmatpush.msra.mxu0 %v1530
        %2060 = vmatmul.f32.gmra.mxu0 %v1477
        %v2061 = vpop.f32.mrf.mxu0
        %v2062 = vadd.f32 %v1401, %v2061
        %2063 = vdwg.mxu0
        %2064 = vmatpush.msra.mxu0 0.0
        %2065 = vmatpush.msra.mxu0 0.0
        %2066 = vmatpush.msra.mxu0 0.0
        %2067 = vmatpush.msra.mxu0 0.0
        %2068 = vmatpush.msra.mxu0 0.0
        %2069 = vmatpush.msra.mxu0 0.0
        %2070 = vmatpush.msra.mxu0 0.0
        %2071 = vmatpush.msra.mxu0 0.0
        %2072 = vmatpush.msra.mxu0 0.0
        %2073 = vmatpush.msra.mxu0 0.0
        %2074 = vmatpush.msra.mxu0 0.0
        %2075 = vmatpush.msra.mxu0 0.0
        %2076 = vmatpush.msra.mxu0 0.0
        %2077 = vmatpush.msra.mxu0 0.0
        %2078 = vmatpush.msra.mxu0 0.0
        %2079 = vmatpush.msra.mxu0 %v1532
        %2080 = vmatmul.f32.gmra.mxu0 %v1477
        %v2081 = vpop.f32.mrf.mxu0
        %v2082 = vadd.f32 %v1402, %v2081
        %2083 = vdwg.mxu0
        %2084 = vmatpush.msra.mxu0 0.0
        %2085 = vmatpush.msra.mxu0 0.0
        %2086 = vmatpush.msra.mxu0 0.0
        %2087 = vmatpush.msra.mxu0 0.0
        %2088 = vmatpush.msra.mxu0 0.0
        %2089 = vmatpush.msra.mxu0 0.0
        %2090 = vmatpush.msra.mxu0 0.0
        %2091 = vmatpush.msra.mxu0 0.0
        %2092 = vmatpush.msra.mxu0 0.0
        %2093 = vmatpush.msra.mxu0 0.0
        %2094 = vmatpush.msra.mxu0 0.0
        %2095 = vmatpush.msra.mxu0 0.0
        %2096 = vmatpush.msra.mxu0 0.0
        %2097 = vmatpush.msra.mxu0 0.0
        %2098 = vmatpush.msra.mxu0 0.0
        %2099 = vmatpush.msra.mxu0 %v1534
        %2100 = vmatmul.f32.gmra.mxu0 %v1477
        %v2101 = vpop.f32.mrf.mxu0
        %v2102 = vadd.f32 %v1403, %v2101
        %2103 = vdwg.mxu0
        %2104 = vmatpush.msra.mxu0 0.0
        %2105 = vmatpush.msra.mxu0 0.0
        %2106 = vmatpush.msra.mxu0 0.0
        %2107 = vmatpush.msra.mxu0 0.0
        %2108 = vmatpush.msra.mxu0 0.0
        %2109 = vmatpush.msra.mxu0 0.0
        %2110 = vmatpush.msra.mxu0 0.0
        %2111 = vmatpush.msra.mxu0 0.0
        %2112 = vmatpush.msra.mxu0 0.0
        %2113 = vmatpush.msra.mxu0 0.0
        %2114 = vmatpush.msra.mxu0 0.0
        %2115 = vmatpush.msra.mxu0 0.0
        %2116 = vmatpush.msra.mxu0 0.0
        %2117 = vmatpush.msra.mxu0 0.0
        %2118 = vmatpush.msra.mxu0 0.0
        %2119 = vmatpush.msra.mxu0 %v1536
        %2120 = vmatmul.f32.gmra.mxu0 %v1477
        %v2121 = vpop.f32.mrf.mxu0
        %v2122 = vadd.f32 %v1404, %v2121
        %2123 = vdwg.mxu0
        %2124 = vmatpush.msra.mxu0 0.0
        %2125 = vmatpush.msra.mxu0 0.0
        %2126 = vmatpush.msra.mxu0 0.0
        %2127 = vmatpush.msra.mxu0 0.0
        %2128 = vmatpush.msra.mxu0 0.0
        %2129 = vmatpush.msra.mxu0 0.0
        %2130 = vmatpush.msra.mxu0 0.0
        %2131 = vmatpush.msra.mxu0 0.0
        %2132 = vmatpush.msra.mxu0 0.0
        %2133 = vmatpush.msra.mxu0 0.0
        %2134 = vmatpush.msra.mxu0 0.0
        %2135 = vmatpush.msra.mxu0 0.0
        %2136 = vmatpush.msra.mxu0 0.0
        %2137 = vmatpush.msra.mxu0 0.0
        %2138 = vmatpush.msra.mxu0 0.0
        %2139 = vmatpush.msra.mxu0 %v1538
        %2140 = vmatmul.f32.gmra.mxu0 %v1477
        %v2141 = vpop.f32.mrf.mxu0
        %v2142 = vadd.f32 %v1405, %v2141
        %2143 = vdwg.mxu0
        %2144 = vmatpush.msra.mxu0 0.0
        %2145 = vmatpush.msra.mxu0 0.0
        %2146 = vmatpush.msra.mxu0 0.0
        %2147 = vmatpush.msra.mxu0 0.0
        %2148 = vmatpush.msra.mxu0 0.0
        %2149 = vmatpush.msra.mxu0 0.0
        %2150 = vmatpush.msra.mxu0 0.0
        %2151 = vmatpush.msra.mxu0 0.0
        %2152 = vmatpush.msra.mxu0 0.0
        %2153 = vmatpush.msra.mxu0 0.0
        %2154 = vmatpush.msra.mxu0 0.0
        %2155 = vmatpush.msra.mxu0 0.0
        %2156 = vmatpush.msra.mxu0 0.0
        %2157 = vmatpush.msra.mxu0 0.0
        %2158 = vmatpush.msra.mxu0 0.0
        %2159 = vmatpush.msra.mxu0 %v1540
        %2160 = vmatmul.f32.gmra.mxu0 %v1477
        %v2161 = vpop.f32.mrf.mxu0
        %v2162 = vadd.f32 %v1406, %v2161
        %2163 = vdwg.mxu0
        %2164 = vmatpush.msra.mxu0 0.0
        %2165 = vmatpush.msra.mxu0 0.0
        %2166 = vmatpush.msra.mxu0 0.0
        %2167 = vmatpush.msra.mxu0 0.0
        %2168 = vmatpush.msra.mxu0 0.0
        %2169 = vmatpush.msra.mxu0 0.0
        %2170 = vmatpush.msra.mxu0 0.0
        %2171 = vmatpush.msra.mxu0 0.0
        %2172 = vmatpush.msra.mxu0 0.0
        %2173 = vmatpush.msra.mxu0 0.0
        %2174 = vmatpush.msra.mxu0 0.0
        %2175 = vmatpush.msra.mxu0 0.0
        %2176 = vmatpush.msra.mxu0 0.0
        %2177 = vmatpush.msra.mxu0 0.0
        %2178 = vmatpush.msra.mxu0 0.0
        %2179 = vmatpush.msra.mxu0 %v1542
        %2180 = vmatmul.f32.gmra.mxu0 %v1477
        %v2181 = vpop.f32.mrf.mxu0
        %v2182 = vadd.f32 %v1407, %v2181
        %2183 = vdwg.mxu0
        %v2184 = vmax.f32 %v1562, 0.0
        %v2185 = vmax.f32 %v1582, 0.0
        %v2186 = vmax.f32 %v1602, 0.0
        %v2187 = vmax.f32 %v1622, 0.0
        %v2188 = vmax.f32 %v1642, 0.0
        %v2189 = vmax.f32 %v1662, 0.0
        %v2190 = vmax.f32 %v1682, 0.0
        %v2191 = vmax.f32 %v1702, 0.0
        %v2192 = vmax.f32 %v1722, 0.0
        %v2193 = vmax.f32 %v1742, 0.0
        %v2194 = vmax.f32 %v1762, 0.0
        %v2195 = vmax.f32 %v1782, 0.0
        %v2196 = vmax.f32 %v1802, 0.0
        %v2197 = vmax.f32 %v1822, 0.0
        %v2198 = vmax.f32 %v1842, 0.0
        %v2199 = vmax.f32 %v1862, 0.0
        %v2200 = vmax.f32 %v1882, 0.0
        %v2201 = vmax.f32 %v1902, 0.0
        %v2202 = vmax.f32 %v1922, 0.0
        %v2203 = vmax.f32 %v1942, 0.0
        %v2204 = vmax.f32 %v1962, 0.0
        %v2205 = vmax.f32 %v1982, 0.0
        %v2206 = vmax.f32 %v2002, 0.0
        %v2207 = vmax.f32 %v2022, 0.0
        %v2208 = vmax.f32 %v2042, 0.0
        %v2209 = vmax.f32 %v2062, 0.0
        %v2210 = vmax.f32 %v2082, 0.0
        %v2211 = vmax.f32 %v2102, 0.0
        %v2212 = vmax.f32 %v2122, 0.0
        %v2213 = vmax.f32 %v2142, 0.0
        %v2214 = vmax.f32 %v2162, 0.0
        %v2215 = vmax.f32 %v2182, 0.0
        %v2216 = vld [vmem:[%s10] sm:$0xff]
        %2218 = vset.pattern.permute.xlu0 0
        %2219 = vperm.xlu0 %2218, %v2216
        %v2220 = vpop.permute.xlu0 %2219
        %v2222 = vmul.f32 %v2184, %v2220
        %v2223 = vmul.f32 %v2185, %v2220
        %v2224 = vmul.f32 %v2186, %v2220
        %v2225 = vmul.f32 %v2187, %v2220
        %v2226 = vmul.f32 %v2188, %v2220
        %v2227 = vmul.f32 %v2189, %v2220
        %v2228 = vmul.f32 %v2190, %v2220
        %v2229 = vmul.f32 %v2191, %v2220
        %v2230 = vmul.f32 %v2192, %v2220
        %v2231 = vmul.f32 %v2193, %v2220
        %v2232 = vmul.f32 %v2194, %v2220
        %v2233 = vmul.f32 %v2195, %v2220
        %v2234 = vmul.f32 %v2196, %v2220
        %v2235 = vmul.f32 %v2197, %v2220
        %v2236 = vmul.f32 %v2198, %v2220
        %v2237 = vmul.f32 %v2199, %v2220
        %v2238 = vmul.f32 %v2200, %v2220
        %v2239 = vmul.f32 %v2201, %v2220
        %v2240 = vmul.f32 %v2202, %v2220
        %v2241 = vmul.f32 %v2203, %v2220
        %v2242 = vmul.f32 %v2204, %v2220
        %v2243 = vmul.f32 %v2205, %v2220
        %v2244 = vmul.f32 %v2206, %v2220
        %v2245 = vmul.f32 %v2207, %v2220
        %v2246 = vmul.f32 %v2208, %v2220
        %v2247 = vmul.f32 %v2209, %v2220
        %v2248 = vmul.f32 %v2210, %v2220
        %v2249 = vmul.f32 %v2211, %v2220
        %v2250 = vmul.f32 %v2212, %v2220
        %v2251 = vmul.f32 %v2213, %v2220
        %v2252 = vmul.f32 %v2214, %v2220
        %v2253 = vmul.f32 %v2215, %v2220
        %v2254 = vrot.slane %v2222, 4
        %v2255 = vadd.f32 %v2222, %v2254
        %v2256 = vrot.slane %v2255, 2
        %v2257 = vadd.f32 %v2255, %v2256
        %v2258 = vrot.slane %v2257, 1
        %v2259 = vadd.f32 %v2257, %v2258
        %v2260 = vrot.slane %v2223, 4
        %v2261 = vadd.f32 %v2223, %v2260
        %v2262 = vrot.slane %v2261, 2
        %v2263 = vadd.f32 %v2261, %v2262
        %v2264 = vrot.slane %v2263, 1
        %v2265 = vadd.f32 %v2263, %v2264
        %v2266 = vrot.slane %v2224, 4
        %v2267 = vadd.f32 %v2224, %v2266
        %v2268 = vrot.slane %v2267, 2
        %v2269 = vadd.f32 %v2267, %v2268
        %v2270 = vrot.slane %v2269, 1
        %v2271 = vadd.f32 %v2269, %v2270
        %v2272 = vrot.slane %v2225, 4
        %v2273 = vadd.f32 %v2225, %v2272
        %v2274 = vrot.slane %v2273, 2
        %v2275 = vadd.f32 %v2273, %v2274
        %v2276 = vrot.slane %v2275, 1
        %v2277 = vadd.f32 %v2275, %v2276
        %v2278 = vrot.slane %v2226, 4
        %v2279 = vadd.f32 %v2226, %v2278
        %v2280 = vrot.slane %v2279, 2
        %v2281 = vadd.f32 %v2279, %v2280
        %v2282 = vrot.slane %v2281, 1
        %v2283 = vadd.f32 %v2281, %v2282
        %v2284 = vrot.slane %v2227, 4
        %v2285 = vadd.f32 %v2227, %v2284
        %v2286 = vrot.slane %v2285, 2
        %v2287 = vadd.f32 %v2285, %v2286
        %v2288 = vrot.slane %v2287, 1
        %v2289 = vadd.f32 %v2287, %v2288
        %v2290 = vrot.slane %v2228, 4
        %v2291 = vadd.f32 %v2228, %v2290
        %v2292 = vrot.slane %v2291, 2
        %v2293 = vadd.f32 %v2291, %v2292
        %v2294 = vrot.slane %v2293, 1
        %v2295 = vadd.f32 %v2293, %v2294
        %v2296 = vrot.slane %v2229, 4
        %v2297 = vadd.f32 %v2229, %v2296
        %v2298 = vrot.slane %v2297, 2
        %v2299 = vadd.f32 %v2297, %v2298
        %v2300 = vrot.slane %v2299, 1
        %v2301 = vadd.f32 %v2299, %v2300
        %v2302 = vrot.slane %v2230, 4
        %v2303 = vadd.f32 %v2230, %v2302
        %v2304 = vrot.slane %v2303, 2
        %v2305 = vadd.f32 %v2303, %v2304
        %v2306 = vrot.slane %v2305, 1
        %v2307 = vadd.f32 %v2305, %v2306
        %v2308 = vrot.slane %v2231, 4
        %v2309 = vadd.f32 %v2231, %v2308
        %v2310 = vrot.slane %v2309, 2
        %v2311 = vadd.f32 %v2309, %v2310
        %v2312 = vrot.slane %v2311, 1
        %v2313 = vadd.f32 %v2311, %v2312
        %v2314 = vrot.slane %v2232, 4
        %v2315 = vadd.f32 %v2232, %v2314
        %v2316 = vrot.slane %v2315, 2
        %v2317 = vadd.f32 %v2315, %v2316
        %v2318 = vrot.slane %v2317, 1
        %v2319 = vadd.f32 %v2317, %v2318
        %v2320 = vrot.slane %v2233, 4
        %v2321 = vadd.f32 %v2233, %v2320
        %v2322 = vrot.slane %v2321, 2
        %v2323 = vadd.f32 %v2321, %v2322
        %v2324 = vrot.slane %v2323, 1
        %v2325 = vadd.f32 %v2323, %v2324
        %v2326 = vrot.slane %v2234, 4
        %v2327 = vadd.f32 %v2234, %v2326
        %v2328 = vrot.slane %v2327, 2
        %v2329 = vadd.f32 %v2327, %v2328
        %v2330 = vrot.slane %v2329, 1
        %v2331 = vadd.f32 %v2329, %v2330
        %v2332 = vrot.slane %v2235, 4
        %v2333 = vadd.f32 %v2235, %v2332
        %v2334 = vrot.slane %v2333, 2
        %v2335 = vadd.f32 %v2333, %v2334
        %v2336 = vrot.slane %v2335, 1
        %v2337 = vadd.f32 %v2335, %v2336
        %v2338 = vrot.slane %v2236, 4
        %v2339 = vadd.f32 %v2236, %v2338
        %v2340 = vrot.slane %v2339, 2
        %v2341 = vadd.f32 %v2339, %v2340
        %v2342 = vrot.slane %v2341, 1
        %v2343 = vadd.f32 %v2341, %v2342
        %v2344 = vrot.slane %v2237, 4
        %v2345 = vadd.f32 %v2237, %v2344
        %v2346 = vrot.slane %v2345, 2
        %v2347 = vadd.f32 %v2345, %v2346
        %v2348 = vrot.slane %v2347, 1
        %v2349 = vadd.f32 %v2347, %v2348
        %v2350 = vrot.slane %v2238, 4
        %v2351 = vadd.f32 %v2238, %v2350
        %v2352 = vrot.slane %v2351, 2
        %v2353 = vadd.f32 %v2351, %v2352
        %v2354 = vrot.slane %v2353, 1
        %v2355 = vadd.f32 %v2353, %v2354
        %v2356 = vrot.slane %v2239, 4
        %v2357 = vadd.f32 %v2239, %v2356
        %v2358 = vrot.slane %v2357, 2
        %v2359 = vadd.f32 %v2357, %v2358
        %v2360 = vrot.slane %v2359, 1
        %v2361 = vadd.f32 %v2359, %v2360
        %v2362 = vrot.slane %v2240, 4
        %v2363 = vadd.f32 %v2240, %v2362
        %v2364 = vrot.slane %v2363, 2
        %v2365 = vadd.f32 %v2363, %v2364
        %v2366 = vrot.slane %v2365, 1
        %v2367 = vadd.f32 %v2365, %v2366
        %v2368 = vrot.slane %v2241, 4
        %v2369 = vadd.f32 %v2241, %v2368
        %v2370 = vrot.slane %v2369, 2
        %v2371 = vadd.f32 %v2369, %v2370
        %v2372 = vrot.slane %v2371, 1
        %v2373 = vadd.f32 %v2371, %v2372
        %v2374 = vrot.slane %v2242, 4
        %v2375 = vadd.f32 %v2242, %v2374
        %v2376 = vrot.slane %v2375, 2
        %v2377 = vadd.f32 %v2375, %v2376
        %v2378 = vrot.slane %v2377, 1
        %v2379 = vadd.f32 %v2377, %v2378
        %v2380 = vrot.slane %v2243, 4
        %v2381 = vadd.f32 %v2243, %v2380
        %v2382 = vrot.slane %v2381, 2
        %v2383 = vadd.f32 %v2381, %v2382
        %v2384 = vrot.slane %v2383, 1
        %v2385 = vadd.f32 %v2383, %v2384
        %v2386 = vrot.slane %v2244, 4
        %v2387 = vadd.f32 %v2244, %v2386
        %v2388 = vrot.slane %v2387, 2
        %v2389 = vadd.f32 %v2387, %v2388
        %v2390 = vrot.slane %v2389, 1
        %v2391 = vadd.f32 %v2389, %v2390
        %v2392 = vrot.slane %v2245, 4
        %v2393 = vadd.f32 %v2245, %v2392
        %v2394 = vrot.slane %v2393, 2
        %v2395 = vadd.f32 %v2393, %v2394
        %v2396 = vrot.slane %v2395, 1
        %v2397 = vadd.f32 %v2395, %v2396
        %v2398 = vrot.slane %v2246, 4
        %v2399 = vadd.f32 %v2246, %v2398
        %v2400 = vrot.slane %v2399, 2
        %v2401 = vadd.f32 %v2399, %v2400
        %v2402 = vrot.slane %v2401, 1
        %v2403 = vadd.f32 %v2401, %v2402
        %v2404 = vrot.slane %v2247, 4
        %v2405 = vadd.f32 %v2247, %v2404
        %v2406 = vrot.slane %v2405, 2
        %v2407 = vadd.f32 %v2405, %v2406
        %v2408 = vrot.slane %v2407, 1
        %v2409 = vadd.f32 %v2407, %v2408
        %v2410 = vrot.slane %v2248, 4
        %v2411 = vadd.f32 %v2248, %v2410
        %v2412 = vrot.slane %v2411, 2
        %v2413 = vadd.f32 %v2411, %v2412
        %v2414 = vrot.slane %v2413, 1
        %v2415 = vadd.f32 %v2413, %v2414
        %v2416 = vrot.slane %v2249, 4
        %v2417 = vadd.f32 %v2249, %v2416
        %v2418 = vrot.slane %v2417, 2
        %v2419 = vadd.f32 %v2417, %v2418
        %v2420 = vrot.slane %v2419, 1
        %v2421 = vadd.f32 %v2419, %v2420
        %v2422 = vrot.slane %v2250, 4
        %v2423 = vadd.f32 %v2250, %v2422
        %v2424 = vrot.slane %v2423, 2
        %v2425 = vadd.f32 %v2423, %v2424
        %v2426 = vrot.slane %v2425, 1
        %v2427 = vadd.f32 %v2425, %v2426
        %v2428 = vrot.slane %v2251, 4
        %v2429 = vadd.f32 %v2251, %v2428
        %v2430 = vrot.slane %v2429, 2
        %v2431 = vadd.f32 %v2429, %v2430
        %v2432 = vrot.slane %v2431, 1
        %v2433 = vadd.f32 %v2431, %v2432
        %v2434 = vrot.slane %v2252, 4
        %v2435 = vadd.f32 %v2252, %v2434
        %v2436 = vrot.slane %v2435, 2
        %v2437 = vadd.f32 %v2435, %v2436
        %v2438 = vrot.slane %v2437, 1
        %v2439 = vadd.f32 %v2437, %v2438
        %v2440 = vrot.slane %v2253, 4
        %v2441 = vadd.f32 %v2253, %v2440
        %v2442 = vrot.slane %v2441, 2
        %v2443 = vadd.f32 %v2441, %v2442
        %v2444 = vrot.slane %v2443, 1
        %v2445 = vadd.f32 %v2443, %v2444
        %s2446 = sld [smem:[#allocation8]]
        %v2447 = vstv %s2446
        %v2448 = vadd.f32 %v2259, %v2447
        %v2449 = vadd.f32 %v2265, %v2447
        %v2450 = vadd.f32 %v2271, %v2447
        %v2451 = vadd.f32 %v2277, %v2447
        %v2452 = vadd.f32 %v2283, %v2447
        %v2453 = vadd.f32 %v2289, %v2447
        %v2454 = vadd.f32 %v2295, %v2447
        %v2455 = vadd.f32 %v2301, %v2447
        %v2456 = vadd.f32 %v2307, %v2447
        %v2457 = vadd.f32 %v2313, %v2447
        %v2458 = vadd.f32 %v2319, %v2447
        %v2459 = vadd.f32 %v2325, %v2447
        %v2460 = vadd.f32 %v2331, %v2447
        %v2461 = vadd.f32 %v2337, %v2447
        %v2462 = vadd.f32 %v2343, %v2447
        %v2463 = vadd.f32 %v2349, %v2447
        %v2464 = vadd.f32 %v2355, %v2447
        %v2465 = vadd.f32 %v2361, %v2447
        %v2466 = vadd.f32 %v2367, %v2447
        %v2467 = vadd.f32 %v2373, %v2447
        %v2468 = vadd.f32 %v2379, %v2447
        %v2469 = vadd.f32 %v2385, %v2447
        %v2470 = vadd.f32 %v2391, %v2447
        %v2471 = vadd.f32 %v2397, %v2447
        %v2472 = vadd.f32 %v2403, %v2447
        %v2473 = vadd.f32 %v2409, %v2447
        %v2474 = vadd.f32 %v2415, %v2447
        %v2475 = vadd.f32 %v2421, %v2447
        %v2476 = vadd.f32 %v2427, %v2447
        %v2477 = vadd.f32 %v2433, %v2447
        %v2478 = vadd.f32 %v2439, %v2447
        %v2479 = vadd.f32 %v2445, %v2447
        %v2480 = vxor.u32 %v2448, 2147483648
        %v2481 = vxor.u32 %v2449, 2147483648
        %v2482 = vxor.u32 %v2450, 2147483648
        %v2483 = vxor.u32 %v2451, 2147483648
        %v2484 = vxor.u32 %v2452, 2147483648
        %v2485 = vxor.u32 %v2453, 2147483648
        %v2486 = vxor.u32 %v2454, 2147483648
        %v2487 = vxor.u32 %v2455, 2147483648
        %v2488 = vxor.u32 %v2456, 2147483648
        %v2489 = vxor.u32 %v2457, 2147483648
        %v2490 = vxor.u32 %v2458, 2147483648
        %v2491 = vxor.u32 %v2459, 2147483648
        %v2492 = vxor.u32 %v2460, 2147483648
        %v2493 = vxor.u32 %v2461, 2147483648
        %v2494 = vxor.u32 %v2462, 2147483648
        %v2495 = vxor.u32 %v2463, 2147483648
        %v2496 = vxor.u32 %v2464, 2147483648
        %v2497 = vxor.u32 %v2465, 2147483648
        %v2498 = vxor.u32 %v2466, 2147483648
        %v2499 = vxor.u32 %v2467, 2147483648
        %v2500 = vxor.u32 %v2468, 2147483648
        %v2501 = vxor.u32 %v2469, 2147483648
        %v2502 = vxor.u32 %v2470, 2147483648
        %v2503 = vxor.u32 %v2471, 2147483648
        %v2504 = vxor.u32 %v2472, 2147483648
        %v2505 = vxor.u32 %v2473, 2147483648
        %v2506 = vxor.u32 %v2474, 2147483648
        %v2507 = vxor.u32 %v2475, 2147483648
        %v2508 = vxor.u32 %v2476, 2147483648
        %v2509 = vxor.u32 %v2477, 2147483648
        %v2510 = vxor.u32 %v2478, 2147483648
        %v2511 = vxor.u32 %v2479, 2147483648
        %v2512 = vmul.f32 %v2480, 1.442695
        %v2513 = vpow.pop %v2512
        %v2514 = vmul.f32 %v2481, 1.442695
        %v2515 = vpow.pop %v2514
        %v2516 = vmul.f32 %v2482, 1.442695
        %v2517 = vpow.pop %v2516
        %v2518 = vmul.f32 %v2483, 1.442695
        %v2519 = vpow.pop %v2518
        %v2520 = vmul.f32 %v2484, 1.442695
        %v2521 = vpow.pop %v2520
        %v2522 = vmul.f32 %v2485, 1.442695
        %v2523 = vpow.pop %v2522
        %v2524 = vmul.f32 %v2486, 1.442695
        %v2525 = vpow.pop %v2524
        %v2526 = vmul.f32 %v2487, 1.442695
        %v2527 = vpow.pop %v2526
        %v2528 = vmul.f32 %v2488, 1.442695
        %v2529 = vpow.pop %v2528
        %v2530 = vmul.f32 %v2489, 1.442695
        %v2531 = vpow.pop %v2530
        %v2532 = vmul.f32 %v2490, 1.442695
        %v2533 = vpow.pop %v2532
        %v2534 = vmul.f32 %v2491, 1.442695
        %v2535 = vpow.pop %v2534
        %v2536 = vmul.f32 %v2492, 1.442695
        %v2537 = vpow.pop %v2536
        %v2538 = vmul.f32 %v2493, 1.442695
        %v2539 = vpow.pop %v2538
        %v2540 = vmul.f32 %v2494, 1.442695
        %v2541 = vpow.pop %v2540
        %v2542 = vmul.f32 %v2495, 1.442695
        %v2543 = vpow.pop %v2542
        %v2544 = vmul.f32 %v2496, 1.442695
        %v2545 = vpow.pop %v2544
        %v2546 = vmul.f32 %v2497, 1.442695
        %v2547 = vpow.pop %v2546
        %v2548 = vmul.f32 %v2498, 1.442695
        %v2549 = vpow.pop %v2548
        %v2550 = vmul.f32 %v2499, 1.442695
        %v2551 = vpow.pop %v2550
        %v2552 = vmul.f32 %v2500, 1.442695
        %v2553 = vpow.pop %v2552
        %v2554 = vmul.f32 %v2501, 1.442695
        %v2555 = vpow.pop %v2554
        %v2556 = vmul.f32 %v2502, 1.442695
        %v2557 = vpow.pop %v2556
        %v2558 = vmul.f32 %v2503, 1.442695
        %v2559 = vpow.pop %v2558
        %v2560 = vmul.f32 %v2504, 1.442695
        %v2561 = vpow.pop %v2560
        %v2562 = vmul.f32 %v2505, 1.442695
        %v2563 = vpow.pop %v2562
        %v2564 = vmul.f32 %v2506, 1.442695
        %v2565 = vpow.pop %v2564
        %v2566 = vmul.f32 %v2507, 1.442695
        %v2567 = vpow.pop %v2566
        %v2568 = vmul.f32 %v2508, 1.442695
        %v2569 = vpow.pop %v2568
        %v2570 = vmul.f32 %v2509, 1.442695
        %v2571 = vpow.pop %v2570
        %v2572 = vmul.f32 %v2510, 1.442695
        %v2573 = vpow.pop %v2572
        %v2574 = vmul.f32 %v2511, 1.442695
        %v2575 = vpow.pop %v2574
        %v2576 = vadd.f32 %v2513, 1.0
        %v2577 = vadd.f32 %v2515, 1.0
        %v2578 = vadd.f32 %v2517, 1.0
        %v2579 = vadd.f32 %v2519, 1.0
        %v2580 = vadd.f32 %v2521, 1.0
        %v2581 = vadd.f32 %v2523, 1.0
        %v2582 = vadd.f32 %v2525, 1.0
        %v2583 = vadd.f32 %v2527, 1.0
        %v2584 = vadd.f32 %v2529, 1.0
        %v2585 = vadd.f32 %v2531, 1.0
        %v2586 = vadd.f32 %v2533, 1.0
        %v2587 = vadd.f32 %v2535, 1.0
        %v2588 = vadd.f32 %v2537, 1.0
        %v2589 = vadd.f32 %v2539, 1.0
        %v2590 = vadd.f32 %v2541, 1.0
        %v2591 = vadd.f32 %v2543, 1.0
        %v2592 = vadd.f32 %v2545, 1.0
        %v2593 = vadd.f32 %v2547, 1.0
        %v2594 = vadd.f32 %v2549, 1.0
        %v2595 = vadd.f32 %v2551, 1.0
        %v2596 = vadd.f32 %v2553, 1.0
        %v2597 = vadd.f32 %v2555, 1.0
        %v2598 = vadd.f32 %v2557, 1.0
        %v2599 = vadd.f32 %v2559, 1.0
        %v2600 = vadd.f32 %v2561, 1.0
        %v2601 = vadd.f32 %v2563, 1.0
        %v2602 = vadd.f32 %v2565, 1.0
        %v2603 = vadd.f32 %v2567, 1.0
        %v2604 = vadd.f32 %v2569, 1.0
        %v2605 = vadd.f32 %v2571, 1.0
        %v2606 = vadd.f32 %v2573, 1.0
        %v2607 = vadd.f32 %v2575, 1.0
        %v2608 = vrcp.pop %v2576
        %v2609 = vmul.f32 %v2576, %v2608
        %v2610 = vsub.f32 1.0, %v2609
        %v2611 = vmul.f32 %v2608, %v2610
        %v2612 = vadd.f32 %v2608, %v2611
        %vm2613 = vweird.f32 %v2576
        %vm2614 = vweird.f32 %v2608
        %vm2615 = vmor %vm2613, %vm2614
        %v2616 = vsel %vm2615, %v2608, %v2612
        %v2617 = vand.u32 2147483647, %v2576
        %vm2618 = vcmp.eq.f32.partialorder %v2617, 8.507059e+37
        %v2619 = vand.u32 %v2576, 2147483648
        %v2620 = vor.u32 1.1754944e-38, %v2619
        %v2621 = vsel %vm2618, %v2620, %v2616
        %v2622 = vmul.f32 1.0, %v2621
        %v2623 = vrcp.pop %v2577
        %v2624 = vmul.f32 %v2577, %v2623
        %v2625 = vsub.f32 1.0, %v2624
        %v2626 = vmul.f32 %v2623, %v2625
        %v2627 = vadd.f32 %v2623, %v2626
        %vm2628 = vweird.f32 %v2577
        %vm2629 = vweird.f32 %v2623
        %vm2630 = vmor %vm2628, %vm2629
        %v2631 = vsel %vm2630, %v2623, %v2627
        %v2632 = vand.u32 2147483647, %v2577
        %vm2633 = vcmp.eq.f32.partialorder %v2632, 8.507059e+37
        %v2634 = vand.u32 %v2577, 2147483648
        %v2635 = vor.u32 1.1754944e-38, %v2634
        %v2636 = vsel %vm2633, %v2635, %v2631
        %v2637 = vmul.f32 1.0, %v2636
        %v2638 = vrcp.pop %v2578
        %v2639 = vmul.f32 %v2578, %v2638
        %v2640 = vsub.f32 1.0, %v2639
        %v2641 = vmul.f32 %v2638, %v2640
        %v2642 = vadd.f32 %v2638, %v2641
        %vm2643 = vweird.f32 %v2578
        %vm2644 = vweird.f32 %v2638
        %vm2645 = vmor %vm2643, %vm2644
        %v2646 = vsel %vm2645, %v2638, %v2642
        %v2647 = vand.u32 2147483647, %v2578
        %vm2648 = vcmp.eq.f32.partialorder %v2647, 8.507059e+37
        %v2649 = vand.u32 %v2578, 2147483648
        %v2650 = vor.u32 1.1754944e-38, %v2649
        %v2651 = vsel %vm2648, %v2650, %v2646
        %v2652 = vmul.f32 1.0, %v2651
        %v2653 = vrcp.pop %v2579
        %v2654 = vmul.f32 %v2579, %v2653
        %v2655 = vsub.f32 1.0, %v2654
        %v2656 = vmul.f32 %v2653, %v2655
        %v2657 = vadd.f32 %v2653, %v2656
        %vm2658 = vweird.f32 %v2579
        %vm2659 = vweird.f32 %v2653
        %vm2660 = vmor %vm2658, %vm2659
        %v2661 = vsel %vm2660, %v2653, %v2657
        %v2662 = vand.u32 2147483647, %v2579
        %vm2663 = vcmp.eq.f32.partialorder %v2662, 8.507059e+37
        %v2664 = vand.u32 %v2579, 2147483648
        %v2665 = vor.u32 1.1754944e-38, %v2664
        %v2666 = vsel %vm2663, %v2665, %v2661
        %v2667 = vmul.f32 1.0, %v2666
        %v2668 = vrcp.pop %v2580
        %v2669 = vmul.f32 %v2580, %v2668
        %v2670 = vsub.f32 1.0, %v2669
        %v2671 = vmul.f32 %v2668, %v2670
        %v2672 = vadd.f32 %v2668, %v2671
        %vm2673 = vweird.f32 %v2580
        %vm2674 = vweird.f32 %v2668
        %vm2675 = vmor %vm2673, %vm2674
        %v2676 = vsel %vm2675, %v2668, %v2672
        %v2677 = vand.u32 2147483647, %v2580
        %vm2678 = vcmp.eq.f32.partialorder %v2677, 8.507059e+37
        %v2679 = vand.u32 %v2580, 2147483648
        %v2680 = vor.u32 1.1754944e-38, %v2679
        %v2681 = vsel %vm2678, %v2680, %v2676
        %v2682 = vmul.f32 1.0, %v2681
        %v2683 = vrcp.pop %v2581
        %v2684 = vmul.f32 %v2581, %v2683
        %v2685 = vsub.f32 1.0, %v2684
        %v2686 = vmul.f32 %v2683, %v2685
        %v2687 = vadd.f32 %v2683, %v2686
        %vm2688 = vweird.f32 %v2581
        %vm2689 = vweird.f32 %v2683
        %vm2690 = vmor %vm2688, %vm2689
        %v2691 = vsel %vm2690, %v2683, %v2687
        %v2692 = vand.u32 2147483647, %v2581
        %vm2693 = vcmp.eq.f32.partialorder %v2692, 8.507059e+37
        %v2694 = vand.u32 %v2581, 2147483648
        %v2695 = vor.u32 1.1754944e-38, %v2694
        %v2696 = vsel %vm2693, %v2695, %v2691
        %v2697 = vmul.f32 1.0, %v2696
        %v2698 = vrcp.pop %v2582
        %v2699 = vmul.f32 %v2582, %v2698
        %v2700 = vsub.f32 1.0, %v2699
        %v2701 = vmul.f32 %v2698, %v2700
        %v2702 = vadd.f32 %v2698, %v2701
        %vm2703 = vweird.f32 %v2582
        %vm2704 = vweird.f32 %v2698
        %vm2705 = vmor %vm2703, %vm2704
        %v2706 = vsel %vm2705, %v2698, %v2702
        %v2707 = vand.u32 2147483647, %v2582
        %vm2708 = vcmp.eq.f32.partialorder %v2707, 8.507059e+37
        %v2709 = vand.u32 %v2582, 2147483648
        %v2710 = vor.u32 1.1754944e-38, %v2709
        %v2711 = vsel %vm2708, %v2710, %v2706
        %v2712 = vmul.f32 1.0, %v2711
        %v2713 = vrcp.pop %v2583
        %v2714 = vmul.f32 %v2583, %v2713
        %v2715 = vsub.f32 1.0, %v2714
        %v2716 = vmul.f32 %v2713, %v2715
        %v2717 = vadd.f32 %v2713, %v2716
        %vm2718 = vweird.f32 %v2583
        %vm2719 = vweird.f32 %v2713
        %vm2720 = vmor %vm2718, %vm2719
        %v2721 = vsel %vm2720, %v2713, %v2717
        %v2722 = vand.u32 2147483647, %v2583
        %vm2723 = vcmp.eq.f32.partialorder %v2722, 8.507059e+37
        %v2724 = vand.u32 %v2583, 2147483648
        %v2725 = vor.u32 1.1754944e-38, %v2724
        %v2726 = vsel %vm2723, %v2725, %v2721
        %v2727 = vmul.f32 1.0, %v2726
        %v2728 = vrcp.pop %v2584
        %v2729 = vmul.f32 %v2584, %v2728
        %v2730 = vsub.f32 1.0, %v2729
        %v2731 = vmul.f32 %v2728, %v2730
        %v2732 = vadd.f32 %v2728, %v2731
        %vm2733 = vweird.f32 %v2584
        %vm2734 = vweird.f32 %v2728
        %vm2735 = vmor %vm2733, %vm2734
        %v2736 = vsel %vm2735, %v2728, %v2732
        %v2737 = vand.u32 2147483647, %v2584
        %vm2738 = vcmp.eq.f32.partialorder %v2737, 8.507059e+37
        %v2739 = vand.u32 %v2584, 2147483648
        %v2740 = vor.u32 1.1754944e-38, %v2739
        %v2741 = vsel %vm2738, %v2740, %v2736
        %v2742 = vmul.f32 1.0, %v2741
        %v2743 = vrcp.pop %v2585
        %v2744 = vmul.f32 %v2585, %v2743
        %v2745 = vsub.f32 1.0, %v2744
        %v2746 = vmul.f32 %v2743, %v2745
        %v2747 = vadd.f32 %v2743, %v2746
        %vm2748 = vweird.f32 %v2585
        %vm2749 = vweird.f32 %v2743
        %vm2750 = vmor %vm2748, %vm2749
        %v2751 = vsel %vm2750, %v2743, %v2747
        %v2752 = vand.u32 2147483647, %v2585
        %vm2753 = vcmp.eq.f32.partialorder %v2752, 8.507059e+37
        %v2754 = vand.u32 %v2585, 2147483648
        %v2755 = vor.u32 1.1754944e-38, %v2754
        %v2756 = vsel %vm2753, %v2755, %v2751
        %v2757 = vmul.f32 1.0, %v2756
        %v2758 = vrcp.pop %v2586
        %v2759 = vmul.f32 %v2586, %v2758
        %v2760 = vsub.f32 1.0, %v2759
        %v2761 = vmul.f32 %v2758, %v2760
        %v2762 = vadd.f32 %v2758, %v2761
        %vm2763 = vweird.f32 %v2586
        %vm2764 = vweird.f32 %v2758
        %vm2765 = vmor %vm2763, %vm2764
        %v2766 = vsel %vm2765, %v2758, %v2762
        %v2767 = vand.u32 2147483647, %v2586
        %vm2768 = vcmp.eq.f32.partialorder %v2767, 8.507059e+37
        %v2769 = vand.u32 %v2586, 2147483648
        %v2770 = vor.u32 1.1754944e-38, %v2769
        %v2771 = vsel %vm2768, %v2770, %v2766
        %v2772 = vmul.f32 1.0, %v2771
        %v2773 = vrcp.pop %v2587
        %v2774 = vmul.f32 %v2587, %v2773
        %v2775 = vsub.f32 1.0, %v2774
        %v2776 = vmul.f32 %v2773, %v2775
        %v2777 = vadd.f32 %v2773, %v2776
        %vm2778 = vweird.f32 %v2587
        %vm2779 = vweird.f32 %v2773
        %vm2780 = vmor %vm2778, %vm2779
        %v2781 = vsel %vm2780, %v2773, %v2777
        %v2782 = vand.u32 2147483647, %v2587
        %vm2783 = vcmp.eq.f32.partialorder %v2782, 8.507059e+37
        %v2784 = vand.u32 %v2587, 2147483648
        %v2785 = vor.u32 1.1754944e-38, %v2784
        %v2786 = vsel %vm2783, %v2785, %v2781
        %v2787 = vmul.f32 1.0, %v2786
        %v2788 = vrcp.pop %v2588
        %v2789 = vmul.f32 %v2588, %v2788
        %v2790 = vsub.f32 1.0, %v2789
        %v2791 = vmul.f32 %v2788, %v2790
        %v2792 = vadd.f32 %v2788, %v2791
        %vm2793 = vweird.f32 %v2588
        %vm2794 = vweird.f32 %v2788
        %vm2795 = vmor %vm2793, %vm2794
        %v2796 = vsel %vm2795, %v2788, %v2792
        %v2797 = vand.u32 2147483647, %v2588
        %vm2798 = vcmp.eq.f32.partialorder %v2797, 8.507059e+37
        %v2799 = vand.u32 %v2588, 2147483648
        %v2800 = vor.u32 1.1754944e-38, %v2799
        %v2801 = vsel %vm2798, %v2800, %v2796
        %v2802 = vmul.f32 1.0, %v2801
        %v2803 = vrcp.pop %v2589
        %v2804 = vmul.f32 %v2589, %v2803
        %v2805 = vsub.f32 1.0, %v2804
        %v2806 = vmul.f32 %v2803, %v2805
        %v2807 = vadd.f32 %v2803, %v2806
        %vm2808 = vweird.f32 %v2589
        %vm2809 = vweird.f32 %v2803
        %vm2810 = vmor %vm2808, %vm2809
        %v2811 = vsel %vm2810, %v2803, %v2807
        %v2812 = vand.u32 2147483647, %v2589
        %vm2813 = vcmp.eq.f32.partialorder %v2812, 8.507059e+37
        %v2814 = vand.u32 %v2589, 2147483648
        %v2815 = vor.u32 1.1754944e-38, %v2814
        %v2816 = vsel %vm2813, %v2815, %v2811
        %v2817 = vmul.f32 1.0, %v2816
        %v2818 = vrcp.pop %v2590
        %v2819 = vmul.f32 %v2590, %v2818
        %v2820 = vsub.f32 1.0, %v2819
        %v2821 = vmul.f32 %v2818, %v2820
        %v2822 = vadd.f32 %v2818, %v2821
        %vm2823 = vweird.f32 %v2590
        %vm2824 = vweird.f32 %v2818
        %vm2825 = vmor %vm2823, %vm2824
        %v2826 = vsel %vm2825, %v2818, %v2822
        %v2827 = vand.u32 2147483647, %v2590
        %vm2828 = vcmp.eq.f32.partialorder %v2827, 8.507059e+37
        %v2829 = vand.u32 %v2590, 2147483648
        %v2830 = vor.u32 1.1754944e-38, %v2829
        %v2831 = vsel %vm2828, %v2830, %v2826
        %v2832 = vmul.f32 1.0, %v2831
        %v2833 = vrcp.pop %v2591
        %v2834 = vmul.f32 %v2591, %v2833
        %v2835 = vsub.f32 1.0, %v2834
        %v2836 = vmul.f32 %v2833, %v2835
        %v2837 = vadd.f32 %v2833, %v2836
        %vm2838 = vweird.f32 %v2591
        %vm2839 = vweird.f32 %v2833
        %vm2840 = vmor %vm2838, %vm2839
        %v2841 = vsel %vm2840, %v2833, %v2837
        %v2842 = vand.u32 2147483647, %v2591
        %vm2843 = vcmp.eq.f32.partialorder %v2842, 8.507059e+37
        %v2844 = vand.u32 %v2591, 2147483648
        %v2845 = vor.u32 1.1754944e-38, %v2844
        %v2846 = vsel %vm2843, %v2845, %v2841
        %v2847 = vmul.f32 1.0, %v2846
        %v2848 = vrcp.pop %v2592
        %v2849 = vmul.f32 %v2592, %v2848
        %v2850 = vsub.f32 1.0, %v2849
        %v2851 = vmul.f32 %v2848, %v2850
        %v2852 = vadd.f32 %v2848, %v2851
        %vm2853 = vweird.f32 %v2592
        %vm2854 = vweird.f32 %v2848
        %vm2855 = vmor %vm2853, %vm2854
        %v2856 = vsel %vm2855, %v2848, %v2852
        %v2857 = vand.u32 2147483647, %v2592
        %vm2858 = vcmp.eq.f32.partialorder %v2857, 8.507059e+37
        %v2859 = vand.u32 %v2592, 2147483648
        %v2860 = vor.u32 1.1754944e-38, %v2859
        %v2861 = vsel %vm2858, %v2860, %v2856
        %v2862 = vmul.f32 1.0, %v2861
        %v2863 = vrcp.pop %v2593
        %v2864 = vmul.f32 %v2593, %v2863
        %v2865 = vsub.f32 1.0, %v2864
        %v2866 = vmul.f32 %v2863, %v2865
        %v2867 = vadd.f32 %v2863, %v2866
        %vm2868 = vweird.f32 %v2593
        %vm2869 = vweird.f32 %v2863
        %vm2870 = vmor %vm2868, %vm2869
        %v2871 = vsel %vm2870, %v2863, %v2867
        %v2872 = vand.u32 2147483647, %v2593
        %vm2873 = vcmp.eq.f32.partialorder %v2872, 8.507059e+37
        %v2874 = vand.u32 %v2593, 2147483648
        %v2875 = vor.u32 1.1754944e-38, %v2874
        %v2876 = vsel %vm2873, %v2875, %v2871
        %v2877 = vmul.f32 1.0, %v2876
        %v2878 = vrcp.pop %v2594
        %v2879 = vmul.f32 %v2594, %v2878
        %v2880 = vsub.f32 1.0, %v2879
        %v2881 = vmul.f32 %v2878, %v2880
        %v2882 = vadd.f32 %v2878, %v2881
        %vm2883 = vweird.f32 %v2594
        %vm2884 = vweird.f32 %v2878
        %vm2885 = vmor %vm2883, %vm2884
        %v2886 = vsel %vm2885, %v2878, %v2882
        %v2887 = vand.u32 2147483647, %v2594
        %vm2888 = vcmp.eq.f32.partialorder %v2887, 8.507059e+37
        %v2889 = vand.u32 %v2594, 2147483648
        %v2890 = vor.u32 1.1754944e-38, %v2889
        %v2891 = vsel %vm2888, %v2890, %v2886
        %v2892 = vmul.f32 1.0, %v2891
        %v2893 = vrcp.pop %v2595
        %v2894 = vmul.f32 %v2595, %v2893
        %v2895 = vsub.f32 1.0, %v2894
        %v2896 = vmul.f32 %v2893, %v2895
        %v2897 = vadd.f32 %v2893, %v2896
        %vm2898 = vweird.f32 %v2595
        %vm2899 = vweird.f32 %v2893
        %vm2900 = vmor %vm2898, %vm2899
        %v2901 = vsel %vm2900, %v2893, %v2897
        %v2902 = vand.u32 2147483647, %v2595
        %vm2903 = vcmp.eq.f32.partialorder %v2902, 8.507059e+37
        %v2904 = vand.u32 %v2595, 2147483648
        %v2905 = vor.u32 1.1754944e-38, %v2904
        %v2906 = vsel %vm2903, %v2905, %v2901
        %v2907 = vmul.f32 1.0, %v2906
        %v2908 = vrcp.pop %v2596
        %v2909 = vmul.f32 %v2596, %v2908
        %v2910 = vsub.f32 1.0, %v2909
        %v2911 = vmul.f32 %v2908, %v2910
        %v2912 = vadd.f32 %v2908, %v2911
        %vm2913 = vweird.f32 %v2596
        %vm2914 = vweird.f32 %v2908
        %vm2915 = vmor %vm2913, %vm2914
        %v2916 = vsel %vm2915, %v2908, %v2912
        %v2917 = vand.u32 2147483647, %v2596
        %vm2918 = vcmp.eq.f32.partialorder %v2917, 8.507059e+37
        %v2919 = vand.u32 %v2596, 2147483648
        %v2920 = vor.u32 1.1754944e-38, %v2919
        %v2921 = vsel %vm2918, %v2920, %v2916
        %v2922 = vmul.f32 1.0, %v2921
        %v2923 = vrcp.pop %v2597
        %v2924 = vmul.f32 %v2597, %v2923
        %v2925 = vsub.f32 1.0, %v2924
        %v2926 = vmul.f32 %v2923, %v2925
        %v2927 = vadd.f32 %v2923, %v2926
        %vm2928 = vweird.f32 %v2597
        %vm2929 = vweird.f32 %v2923
        %vm2930 = vmor %vm2928, %vm2929
        %v2931 = vsel %vm2930, %v2923, %v2927
        %v2932 = vand.u32 2147483647, %v2597
        %vm2933 = vcmp.eq.f32.partialorder %v2932, 8.507059e+37
        %v2934 = vand.u32 %v2597, 2147483648
        %v2935 = vor.u32 1.1754944e-38, %v2934
        %v2936 = vsel %vm2933, %v2935, %v2931
        %v2937 = vmul.f32 1.0, %v2936
        %v2938 = vrcp.pop %v2598
        %v2939 = vmul.f32 %v2598, %v2938
        %v2940 = vsub.f32 1.0, %v2939
        %v2941 = vmul.f32 %v2938, %v2940
        %v2942 = vadd.f32 %v2938, %v2941
        %vm2943 = vweird.f32 %v2598
        %vm2944 = vweird.f32 %v2938
        %vm2945 = vmor %vm2943, %vm2944
        %v2946 = vsel %vm2945, %v2938, %v2942
        %v2947 = vand.u32 2147483647, %v2598
        %vm2948 = vcmp.eq.f32.partialorder %v2947, 8.507059e+37
        %v2949 = vand.u32 %v2598, 2147483648
        %v2950 = vor.u32 1.1754944e-38, %v2949
        %v2951 = vsel %vm2948, %v2950, %v2946
        %v2952 = vmul.f32 1.0, %v2951
        %v2953 = vrcp.pop %v2599
        %v2954 = vmul.f32 %v2599, %v2953
        %v2955 = vsub.f32 1.0, %v2954
        %v2956 = vmul.f32 %v2953, %v2955
        %v2957 = vadd.f32 %v2953, %v2956
        %vm2958 = vweird.f32 %v2599
        %vm2959 = vweird.f32 %v2953
        %vm2960 = vmor %vm2958, %vm2959
        %v2961 = vsel %vm2960, %v2953, %v2957
        %v2962 = vand.u32 2147483647, %v2599
        %vm2963 = vcmp.eq.f32.partialorder %v2962, 8.507059e+37
        %v2964 = vand.u32 %v2599, 2147483648
        %v2965 = vor.u32 1.1754944e-38, %v2964
        %v2966 = vsel %vm2963, %v2965, %v2961
        %v2967 = vmul.f32 1.0, %v2966
        %v2968 = vrcp.pop %v2600
        %v2969 = vmul.f32 %v2600, %v2968
        %v2970 = vsub.f32 1.0, %v2969
        %v2971 = vmul.f32 %v2968, %v2970
        %v2972 = vadd.f32 %v2968, %v2971
        %vm2973 = vweird.f32 %v2600
        %vm2974 = vweird.f32 %v2968
        %vm2975 = vmor %vm2973, %vm2974
        %v2976 = vsel %vm2975, %v2968, %v2972
        %v2977 = vand.u32 2147483647, %v2600
        %vm2978 = vcmp.eq.f32.partialorder %v2977, 8.507059e+37
        %v2979 = vand.u32 %v2600, 2147483648
        %v2980 = vor.u32 1.1754944e-38, %v2979
        %v2981 = vsel %vm2978, %v2980, %v2976
        %v2982 = vmul.f32 1.0, %v2981
        %v2983 = vrcp.pop %v2601
        %v2984 = vmul.f32 %v2601, %v2983
        %v2985 = vsub.f32 1.0, %v2984
        %v2986 = vmul.f32 %v2983, %v2985
        %v2987 = vadd.f32 %v2983, %v2986
        %vm2988 = vweird.f32 %v2601
        %vm2989 = vweird.f32 %v2983
        %vm2990 = vmor %vm2988, %vm2989
        %v2991 = vsel %vm2990, %v2983, %v2987
        %v2992 = vand.u32 2147483647, %v2601
        %vm2993 = vcmp.eq.f32.partialorder %v2992, 8.507059e+37
        %v2994 = vand.u32 %v2601, 2147483648
        %v2995 = vor.u32 1.1754944e-38, %v2994
        %v2996 = vsel %vm2993, %v2995, %v2991
        %v2997 = vmul.f32 1.0, %v2996
        %v2998 = vrcp.pop %v2602
        %v2999 = vmul.f32 %v2602, %v2998
        %v3000 = vsub.f32 1.0, %v2999
        %v3001 = vmul.f32 %v2998, %v3000
        %v3002 = vadd.f32 %v2998, %v3001
        %vm3003 = vweird.f32 %v2602
        %vm3004 = vweird.f32 %v2998
        %vm3005 = vmor %vm3003, %vm3004
        %v3006 = vsel %vm3005, %v2998, %v3002
        %v3007 = vand.u32 2147483647, %v2602
        %vm3008 = vcmp.eq.f32.partialorder %v3007, 8.507059e+37
        %v3009 = vand.u32 %v2602, 2147483648
        %v3010 = vor.u32 1.1754944e-38, %v3009
        %v3011 = vsel %vm3008, %v3010, %v3006
        %v3012 = vmul.f32 1.0, %v3011
        %v3013 = vrcp.pop %v2603
        %v3014 = vmul.f32 %v2603, %v3013
        %v3015 = vsub.f32 1.0, %v3014
        %v3016 = vmul.f32 %v3013, %v3015
        %v3017 = vadd.f32 %v3013, %v3016
        %vm3018 = vweird.f32 %v2603
        %vm3019 = vweird.f32 %v3013
        %vm3020 = vmor %vm3018, %vm3019
        %v3021 = vsel %vm3020, %v3013, %v3017
        %v3022 = vand.u32 2147483647, %v2603
        %vm3023 = vcmp.eq.f32.partialorder %v3022, 8.507059e+37
        %v3024 = vand.u32 %v2603, 2147483648
        %v3025 = vor.u32 1.1754944e-38, %v3024
        %v3026 = vsel %vm3023, %v3025, %v3021
        %v3027 = vmul.f32 1.0, %v3026
        %v3028 = vrcp.pop %v2604
        %v3029 = vmul.f32 %v2604, %v3028
        %v3030 = vsub.f32 1.0, %v3029
        %v3031 = vmul.f32 %v3028, %v3030
        %v3032 = vadd.f32 %v3028, %v3031
        %vm3033 = vweird.f32 %v2604
        %vm3034 = vweird.f32 %v3028
        %vm3035 = vmor %vm3033, %vm3034
        %v3036 = vsel %vm3035, %v3028, %v3032
        %v3037 = vand.u32 2147483647, %v2604
        %vm3038 = vcmp.eq.f32.partialorder %v3037, 8.507059e+37
        %v3039 = vand.u32 %v2604, 2147483648
        %v3040 = vor.u32 1.1754944e-38, %v3039
        %v3041 = vsel %vm3038, %v3040, %v3036
        %v3042 = vmul.f32 1.0, %v3041
        %v3043 = vrcp.pop %v2605
        %v3044 = vmul.f32 %v2605, %v3043
        %v3045 = vsub.f32 1.0, %v3044
        %v3046 = vmul.f32 %v3043, %v3045
        %v3047 = vadd.f32 %v3043, %v3046
        %vm3048 = vweird.f32 %v2605
        %vm3049 = vweird.f32 %v3043
        %vm3050 = vmor %vm3048, %vm3049
        %v3051 = vsel %vm3050, %v3043, %v3047
        %v3052 = vand.u32 2147483647, %v2605
        %vm3053 = vcmp.eq.f32.partialorder %v3052, 8.507059e+37
        %v3054 = vand.u32 %v2605, 2147483648
        %v3055 = vor.u32 1.1754944e-38, %v3054
        %v3056 = vsel %vm3053, %v3055, %v3051
        %v3057 = vmul.f32 1.0, %v3056
        %v3058 = vrcp.pop %v2606
        %v3059 = vmul.f32 %v2606, %v3058
        %v3060 = vsub.f32 1.0, %v3059
        %v3061 = vmul.f32 %v3058, %v3060
        %v3062 = vadd.f32 %v3058, %v3061
        %vm3063 = vweird.f32 %v2606
        %vm3064 = vweird.f32 %v3058
        %vm3065 = vmor %vm3063, %vm3064
        %v3066 = vsel %vm3065, %v3058, %v3062
        %v3067 = vand.u32 2147483647, %v2606
        %vm3068 = vcmp.eq.f32.partialorder %v3067, 8.507059e+37
        %v3069 = vand.u32 %v2606, 2147483648
        %v3070 = vor.u32 1.1754944e-38, %v3069
        %v3071 = vsel %vm3068, %v3070, %v3066
        %v3072 = vmul.f32 1.0, %v3071
        %v3073 = vrcp.pop %v2607
        %v3074 = vmul.f32 %v2607, %v3073
        %v3075 = vsub.f32 1.0, %v3074
        %v3076 = vmul.f32 %v3073, %v3075
        %v3077 = vadd.f32 %v3073, %v3076
        %vm3078 = vweird.f32 %v2607
        %vm3079 = vweird.f32 %v3073
        %vm3080 = vmor %vm3078, %vm3079
        %v3081 = vsel %vm3080, %v3073, %v3077
        %v3082 = vand.u32 2147483647, %v2607
        %vm3083 = vcmp.eq.f32.partialorder %v3082, 8.507059e+37
        %v3084 = vand.u32 %v2607, 2147483648
        %v3085 = vor.u32 1.1754944e-38, %v3084
        %v3086 = vsel %vm3083, %v3085, %v3081
        %v3087 = vmul.f32 1.0, %v3086
        %3088 = vst [vmem:[#allocation1] ss:$2 sm:$0xff] %v1359
        %s3089 = scalar_lea.vmem [#allocation1], 16
        %3090 = vst [vmem:[%s3089] ss:$2 sm:$0xff] %v1360
        %s3091 = scalar_lea.vmem [#allocation1], 32
        %3092 = vst [vmem:[%s3091] ss:$2 sm:$0xff] %v1361
        %s3093 = scalar_lea.vmem [#allocation1], 48
        %3094 = vst [vmem:[%s3093] ss:$2 sm:$0xff] %v1362
        %v3095 = vld.sshfl [vmem:[#allocation1] sm:$0xff pattern:$0x75316420]
        %v3096 = vld.sshfl [vmem:[#allocation1 + $0x8] sm:$0xff pattern:$0x75316420]
        %v3097 = vld.sshfl [vmem:[#allocation1 + $0x10] sm:$0xff pattern:$0x75316420]
        %v3098 = vld.sshfl [vmem:[#allocation1 + $0x18] sm:$0xff pattern:$0x75316420]
        %v3099 = vld.sshfl [vmem:[#allocation1 + $0x20] sm:$0xff pattern:$0x75316420]
        %v3100 = vld.sshfl [vmem:[#allocation1 + $0x28] sm:$0xff pattern:$0x75316420]
        %v3101 = vld.sshfl [vmem:[#allocation1 + $0x30] sm:$0xff pattern:$0x75316420]
        %v3102 = vld.sshfl [vmem:[#allocation1 + $0x38] sm:$0xff pattern:$0x75316420]
        %3103 = vst [vmem:[#allocation1] ss:$2 sm:$0xff] %v1363
        %3104 = vst [vmem:[%s3089] ss:$2 sm:$0xff] %v1364
        %3105 = vst [vmem:[%s3091] ss:$2 sm:$0xff] %v1365
        %3106 = vst [vmem:[%s3093] ss:$2 sm:$0xff] %v1366
        %v3107 = vld.sshfl [vmem:[#allocation1] sm:$0xff pattern:$0x75316420]
        %v3108 = vld.sshfl [vmem:[#allocation1 + $0x8] sm:$0xff pattern:$0x75316420]
        %v3109 = vld.sshfl [vmem:[#allocation1 + $0x10] sm:$0xff pattern:$0x75316420]
        %v3110 = vld.sshfl [vmem:[#allocation1 + $0x18] sm:$0xff pattern:$0x75316420]
        %v3111 = vld.sshfl [vmem:[#allocation1 + $0x20] sm:$0xff pattern:$0x75316420]
        %v3112 = vld.sshfl [vmem:[#allocation1 + $0x28] sm:$0xff pattern:$0x75316420]
        %v3113 = vld.sshfl [vmem:[#allocation1 + $0x30] sm:$0xff pattern:$0x75316420]
        %v3114 = vld.sshfl [vmem:[#allocation1 + $0x38] sm:$0xff pattern:$0x75316420]
        %3115 = vst [vmem:[#allocation1] ss:$2 sm:$0xff] %v1367
        %3116 = vst [vmem:[%s3089] ss:$2 sm:$0xff] %v1368
        %3117 = vst [vmem:[%s3091] ss:$2 sm:$0xff] %v1369
        %3118 = vst [vmem:[%s3093] ss:$2 sm:$0xff] %v1370
        %v3119 = vld.sshfl [vmem:[#allocation1] sm:$0xff pattern:$0x75316420]
        %v3120 = vld.sshfl [vmem:[#allocation1 + $0x8] sm:$0xff pattern:$0x75316420]
        %v3121 = vld.sshfl [vmem:[#allocation1 + $0x10] sm:$0xff pattern:$0x75316420]
        %v3122 = vld.sshfl [vmem:[#allocation1 + $0x18] sm:$0xff pattern:$0x75316420]
        %v3123 = vld.sshfl [vmem:[#allocation1 + $0x20] sm:$0xff pattern:$0x75316420]
        %v3124 = vld.sshfl [vmem:[#allocation1 + $0x28] sm:$0xff pattern:$0x75316420]
        %v3125 = vld.sshfl [vmem:[#allocation1 + $0x30] sm:$0xff pattern:$0x75316420]
        %v3126 = vld.sshfl [vmem:[#allocation1 + $0x38] sm:$0xff pattern:$0x75316420]
        %3127 = vst [vmem:[#allocation1] ss:$2 sm:$0xff] %v1371
        %3128 = vst [vmem:[%s3089] ss:$2 sm:$0xff] %v1372
        %3129 = vst [vmem:[%s3091] ss:$2 sm:$0xff] %v1373
        %3130 = vst [vmem:[%s3093] ss:$2 sm:$0xff] %v1374
        %v3131 = vld.sshfl [vmem:[#allocation1] sm:$0xff pattern:$0x75316420]
        %v3132 = vld.sshfl [vmem:[#allocation1 + $0x8] sm:$0xff pattern:$0x75316420]
        %v3133 = vld.sshfl [vmem:[#allocation1 + $0x10] sm:$0xff pattern:$0x75316420]
        %v3134 = vld.sshfl [vmem:[#allocation1 + $0x18] sm:$0xff pattern:$0x75316420]
        %v3135 = vld.sshfl [vmem:[#allocation1 + $0x20] sm:$0xff pattern:$0x75316420]
        %v3136 = vld.sshfl [vmem:[#allocation1 + $0x28] sm:$0xff pattern:$0x75316420]
        %v3137 = vld.sshfl [vmem:[#allocation1 + $0x30] sm:$0xff pattern:$0x75316420]
        %v3138 = vld.sshfl [vmem:[#allocation1 + $0x38] sm:$0xff pattern:$0x75316420]
        %v3171 = vmul.f32 %v2622, %v3095
        %v3172 = vmul.f32 %v2637, %v3096
        %v3173 = vmul.f32 %v2652, %v3097
        %v3174 = vmul.f32 %v2667, %v3098
        %v3175 = vmul.f32 %v2682, %v3099
        %v3176 = vmul.f32 %v2697, %v3100
        %v3177 = vmul.f32 %v2712, %v3101
        %v3178 = vmul.f32 %v2727, %v3102
        %v3179 = vmul.f32 %v2742, %v3107
        %v3180 = vmul.f32 %v2757, %v3108
        %v3181 = vmul.f32 %v2772, %v3109
        %v3182 = vmul.f32 %v2787, %v3110
        %v3183 = vmul.f32 %v2802, %v3111
        %v3184 = vmul.f32 %v2817, %v3112
        %v3185 = vmul.f32 %v2832, %v3113
        %v3186 = vmul.f32 %v2847, %v3114
        %v3187 = vmul.f32 %v2862, %v3119
        %v3188 = vmul.f32 %v2877, %v3120
        %v3189 = vmul.f32 %v2892, %v3121
        %v3190 = vmul.f32 %v2907, %v3122
        %v3191 = vmul.f32 %v2922, %v3123
        %v3192 = vmul.f32 %v2937, %v3124
        %v3193 = vmul.f32 %v2952, %v3125
        %v3194 = vmul.f32 %v2967, %v3126
        %v3195 = vmul.f32 %v2982, %v3131
        %v3196 = vmul.f32 %v2997, %v3132
        %v3197 = vmul.f32 %v3012, %v3133
        %v3198 = vmul.f32 %v3027, %v3134
        %v3199 = vmul.f32 %v3042, %v3135
        %v3200 = vmul.f32 %v3057, %v3136
        %v3201 = vmul.f32 %v3072, %v3137
        %v3202 = vmul.f32 %v3087, %v3138
        %v3235 = vrot.slane %v3172, 4
        %v3236 = vrot.slane %v3174, 4
        %v3237 = vrot.slane %v3176, 4
        %v3238 = vrot.slane %v3178, 4
        %v3239 = vrot.slane %v3180, 4
        %v3240 = vrot.slane %v3182, 4
        %v3241 = vrot.slane %v3184, 4
        %v3242 = vrot.slane %v3186, 4
        %v3243 = vrot.slane %v3188, 4
        %v3244 = vrot.slane %v3190, 4
        %v3245 = vrot.slane %v3192, 4
        %v3246 = vrot.slane %v3194, 4
        %v3247 = vrot.slane %v3196, 4
        %v3248 = vrot.slane %v3198, 4
        %v3249 = vrot.slane %v3200, 4
        %v3250 = vrot.slane %v3202, 4
        %v3251 = vsel %vm1479, %v3171, %v3235
        %v3252 = vsel %vm1479, %v3173, %v3236
        %v3253 = vsel %vm1479, %v3175, %v3237
        %v3254 = vsel %vm1479, %v3177, %v3238
        %v3255 = vsel %vm1479, %v3179, %v3239
        %v3256 = vsel %vm1479, %v3181, %v3240
        %v3257 = vsel %vm1479, %v3183, %v3241
        %v3258 = vsel %vm1479, %v3185, %v3242
        %v3259 = vsel %vm1479, %v3187, %v3243
        %v3260 = vsel %vm1479, %v3189, %v3244
        %v3261 = vsel %vm1479, %v3191, %v3245
        %v3262 = vsel %vm1479, %v3193, %v3246
        %v3263 = vsel %vm1479, %v3195, %v3247
        %v3264 = vsel %vm1479, %v3197, %v3248
        %v3265 = vsel %vm1479, %v3199, %v3249
        %v3266 = vsel %vm1479, %v3201, %v3250
        %3283 = vst [vmem:[%s352] sm:$0xff] %v3251
        %3284 = vst [vmem:[%s352 + $0x8] sm:$0xff] %v3252
        %3285 = vst [vmem:[%s352 + $0x10] sm:$0xff] %v3253
        %3286 = vst [vmem:[%s352 + $0x18] sm:$0xff] %v3254
        %3287 = vst [vmem:[%s352 + $0x20] sm:$0xff] %v3255
        %3288 = vst [vmem:[%s352 + $0x28] sm:$0xff] %v3256
        %3289 = vst [vmem:[%s352 + $0x30] sm:$0xff] %v3257
        %3290 = vst [vmem:[%s352 + $0x38] sm:$0xff] %v3258
        %3291 = vst [vmem:[%s352 + $0x40] sm:$0xff] %v3259
        %3292 = vst [vmem:[%s352 + $0x48] sm:$0xff] %v3260
        %3293 = vst [vmem:[%s352 + $0x50] sm:$0xff] %v3261
        %3294 = vst [vmem:[%s352 + $0x58] sm:$0xff] %v3262
        %3295 = vst [vmem:[%s352 + $0x60] sm:$0xff] %v3263
        %3296 = vst [vmem:[%s352 + $0x68] sm:$0xff] %v3264
        %3297 = vst [vmem:[%s352 + $0x70] sm:$0xff] %v3265
        %3298 = vst [vmem:[%s352 + $0x78] sm:$0xff] %v3266
        %s3299 = sand.u32 %s228, 1
        %s3300 = scalar_lea.sflag [#allocation11], %s3299
        %s3301 = sand.u32 %s228, 1
        %s3302 = smul.addr %s3301, 128
        %s3303 = scalar_lea.vmem [#allocation12], %s3302
        // Predicated region
        $region57: #{tpu_custom_call.1} parent=47 // pred_check
          %p3304 = pneg %p238
        $region58: #{tpu_custom_call.1} parent=47 // pred_check_branch
          %3306 = sbr.rel (%p3304) target = $region60
        $region59: #{tpu_custom_call.1} parent=47 // pred_region
          %s3307 = smul.u32 32, %s52
          %3309 = vsyncadd %s3300, 0
          %s3310 = smul.addr %s51, 32
          %s3311 = sadd.s32 %s3307, %s3310
          %s3312 = smul.addr %s3311, 4
          %s3313 = scalar_lea.hbm %s11, %s3312
          %s3315 = sshll.u32 %s3303, 4
          %s3316 = int_to_ptr.vmem [resolvable:$true] %s3315
          %s3317 = sshll.u32 %s3313, 4
          %s3318 = int_to_ptr.hbm [resolvable:$true] %s3317
          %3320 = dma.vmem_to_hbm [thread:$0]  %s3316, 2048, %s3318, %s3300
        $region60: #{tpu_custom_call.1} parent=47 // pred_fallthru
          _
      $region48: #{tpu_custom_call.1} parent=5 // pred_fallthru
        _
      %p3321 = scmp.le.s32.totalorder 2, %s42
      // Predicated region
      $region61: #{tpu_custom_call.1} parent=5 // pred_check
        %p3322 = pneg %p3321
      $region62: #{tpu_custom_call.1} parent=5 // pred_check_branch
        %3324 = sbr.rel (%p3322) target = $region64
      $region63: #{tpu_custom_call.1} parent=5 // pred_region
        %s3325 = ssub.s32 %s42, 2
        // Predicated region
        $region65: #{tpu_custom_call.1} parent=63 // pred_check
          %p3326 = pneg %p244
        $region66: #{tpu_custom_call.1} parent=63 // pred_check_branch
          %3328 = sbr.rel (%p3326) target = $region68
        $region67: #{tpu_custom_call.1} parent=63 // pred_region
          %s3329 = sand.u32 %s229, 1
          %s3330 = scalar_lea.sflag [#allocation11], %s3329
          %s3331 = sand.u32 %s229, 1
          %s3332 = smul.addr %s3331, 128
          %s3333 = scalar_lea.vmem [#allocation12], %s3332
          %3335 = dma.done %s3330, 2048
        $region68: #{tpu_custom_call.1} parent=63 // pred_fallthru
          _
      $region64: #{tpu_custom_call.1} parent=5 // pred_fallthru
        _
    $region6: #{tpu_custom_call.1} parent=1 // loop_footer
      %s46 = sadd.s32 1, %s42
    $region7: #{tpu_custom_call.1} parent=1 // loop_footer_branch
      %41 = sbr.rel target = $region3
    $region8: #{tpu_custom_call.1} parent=1 // loop_exit
      _
    %3336 = vsyncpa [#allocation10], 1
    %s3337 = scalar_lea.sflag [#allocation10], 1
    %3338 = vsyncpa %s3337, 1
    %3339 = vsyncpa [#allocation11], 1
    %s3340 = scalar_lea.sflag [#allocation11], 1
    %3341 = vsyncpa %s3340, 1

</llo_original>
